<compile_context>
chip_gen: v5e
topology: v5e:2x2
jax: 0.10.0
libtpu: 0.0.40
codegen_flags: <defaults>
</compile_context>

<pallas_src>
import math

import numpy as np
import jax
import jax.numpy as jnp
from jax.experimental import pallas as pl
from jax.experimental.pallas import tpu as pltpu

EPS = 1e-5


# ----------------------------------------------------------------------------
# Deterministic CQT kernel bank (mirrors nnAudio.utils.create_cqt_kernels with
# window='hann', norm=1, i.e. the defaults used by CQT1992v2).
# ----------------------------------------------------------------------------
def make_cqt_kernels(sr, fmin, fmax, bins_per_octave, filter_scale=1.0):
    Q = float(filter_scale) / (2.0 ** (1.0 / bins_per_octave) - 1.0)
    # fmax given -> n_bins is recomputed from fmax (nnAudio behaviour).
    n_bins = int(np.ceil(bins_per_octave * np.log2(fmax / fmin)))
    freqs = fmin * 2.0 ** (np.arange(n_bins) / float(bins_per_octave))
    assert np.max(freqs) <= sr / 2.0, "top CQT bin exceeds Nyquist"

    max_len = int(np.ceil(Q * sr / fmin))
    fft_len = int(2 ** math.ceil(math.log2(max_len)))

    kernels = np.zeros((n_bins, fft_len), dtype=np.complex128)
    lengths = np.ceil(Q * sr / freqs)
    for k in range(n_bins):
        freq = freqs[k]
        l = int(np.ceil(Q * sr / freq))
        if l % 2 == 1:
            start = int(np.ceil(fft_len / 2.0 - l / 2.0)) - 1
        else:
            start = int(np.ceil(fft_len / 2.0 - l / 2.0))
        n = np.arange(l)
        window = 0.5 - 0.5 * np.cos(2.0 * np.pi * n / l)   # periodic Hann
        phase = (np.arange(l) + (-l // 2)) * 1j * 2.0 * np.pi * freq / sr
        sig = window * np.exp(phase) / l
        sig = sig / np.linalg.norm(sig, 1)                  # norm=1 (L1)
        kernels[k, start:start + l] = sig

    # Fused conv weights laid out as (2*n_bins, W): real kernels on top,
    # imaginary kernels below -> a single matmul produces both parts.
    kT = np.concatenate([kernels.real, kernels.imag], axis=0).astype(np.float32)
    lengths = lengths.astype(np.float32).reshape(n_bins, 1)
    return jnp.asarray(kT), jnp.asarray(lengths), fft_len, n_bins


# ----------------------------------------------------------------------------
# Pallas kernel: one fused MXU matmul + |.|^2 + clamp + log.
# ----------------------------------------------------------------------------
def _logcqt_kernel(kT_ref, fT_ref, out_ref):
    # (2*n_bins, W) @ (W, TM) -> (2*n_bins, TM), f32 accumulation on the MXU.
    s = jnp.dot(kT_ref[...], fT_ref[...], preferred_element_type=jnp.float32)
    nb = out_ref.shape[0]
    real = s[:nb, :]
    imag = s[nb:, :]
    sq = real * real + imag * imag                     # |CQT'|^2, (n_bins, TM)
    # sqrt(lengths) is pre-folded into the weights, so:
    # log(max(sqrt(sq), EPS)) == 0.5 * log(max(sq, EPS^2))
    out_ref[...] = 0.5 * jnp.log(jnp.maximum(sq, EPS * EPS))


def _logcqt_pallas(frames_T, kT_scaled):
    W, M = frames_T.shape
    two_nb = kT_scaled.shape[0]
    n_bins = two_nb // 2

    # Lane tile along the frame axis.  256 lanes keeps the output lane-dense
    # (unmasked vst, full-width epilogue vregs) while the bf16 (W, TM) frame
    # tile is only 2 MiB -> comfortably inside the scoped-VMEM defaults on
    # v5e (16 MiB) and v7x (32 MiB) even double-buffered.  Keep >= 2 grid
    # steps so both v7x TensorCores get work.
    TM = 256 if M > 256 else 128
    n_steps = max(pl.cdiv(M, TM), 2)
    M_pad = n_steps * TM

    # bf16 matmul inputs; padded columns are zero -> clamped to log-floor and
    # sliced off below.
    frames_bf = jnp.pad(frames_T.astype(jnp.bfloat16), ((0, 0), (0, M_pad - M)))
    kT_bf = kT_scaled.astype(jnp.bfloat16)

    out = pl.pallas_call(
        _logcqt_kernel,
        out_shape=jax.ShapeDtypeStruct((n_bins, M_pad), jnp.float32),
        grid=(n_steps,),
        in_specs=[
            pl.BlockSpec((two_nb, W), lambda i: (0, 0)),     # fused, pre-scaled CQT bank
            pl.BlockSpec((W, TM), lambda i: (0, i)),         # frame columns
        ],
        out_specs=pl.BlockSpec((n_bins, TM), lambda i: (0, i)),
        compiler_params=pltpu.CompilerParams(
            dimension_semantics=("parallel",)),
    )(kT_bf, frames_bf)
    return out[:, :M]                                        # (n_bins, M)


# ----------------------------------------------------------------------------
# Full LogCQT forward (glue: pad + frame; compute lives in Pallas).
# ----------------------------------------------------------------------------
def log_cqt_forward(x, kT, lengths, hop_length, kernel_width):
    B, L = x.shape
    W = kernel_width
    n_bins = kT.shape[0] // 2
    assert L > W // 2, "reflect padding requires input longer than kernel_width//2"

    # center=True, pad_mode='reflect' (nnAudio default)
    x_pad = jnp.pad(x, ((0, 0), (W // 2, W // 2)), mode="reflect")
    Lp = x_pad.shape[1]
    n_frames = (Lp - W) // hop_length + 1

    # im2col framing, transposed so frames are lane-dense columns:
    # frames_T[w, b*n_frames + t] = x_pad[b, t*hop + w]
    idx = jnp.arange(n_frames)[:, None] * hop_length + jnp.arange(W)[None, :]
    frames = x_pad[:, idx].astype(jnp.float32)               # (B, T, W)
    frames_T = frames.reshape(B * n_frames, W).T             # (W, B*T)

    # Fold the librosa sqrt(lengths) normalization into the weight bank
    # (exact: sqrt(l*(r^2+i^2)) == sqrt((r*sqrt(l))^2 + (i*sqrt(l))^2)).
    scale = jnp.sqrt(lengths)                                # (n_bins, 1)
    kT_scaled = kT * jnp.concatenate([scale, scale], axis=0)  # (2*n_bins, W)

    out_T = _logcqt_pallas(frames_T, kT_scaled)              # (n_bins, B*T)
    out = out_T.reshape(n_bins, B, n_frames)
    return jnp.transpose(out, (1, 0, 2))                     # (B, n_bins, T)


def _reference(x, kT, lengths, hop_length, kernel_width):
    """Pure-JAX f32 reference (unfolded normalization) for a sanity check."""
    B, _ = x.shape
    W = kernel_width
    nb = kT.shape[0] // 2
    x_pad = jnp.pad(x, ((0, 0), (W // 2, W // 2)), mode="reflect")
    n_frames = (x_pad.shape[1] - W) // hop_length + 1
    idx = jnp.arange(n_frames)[:, None] * hop_length + jnp.arange(W)[None, :]
    frames = x_pad[:, idx]                                   # (B, T, W)
    real = jnp.einsum("btw,kw->btk", frames, kT[:nb])
    imag = jnp.einsum("btw,kw->btk", frames, kT[nb:])
    mag = jnp.sqrt(real * real + imag * imag) * jnp.sqrt(lengths[:, 0])
    out = jnp.log(jnp.maximum(mag, EPS))
    return jnp.transpose(out, (0, 2, 1))                     # (B, n_bins, T)


if __name__ == "__main__":
    # LogCQT(sample_rate=16000, n_bins=32, hop_length=256, bins_per_octave=4)
    # (fmin=32.7, fmax=8000 hard-coded in the module; with fmax given, nnAudio
    #  recomputes n_bins -> 32, kernel width -> 4096)
    SR, HOP, BPO = 16000, 256, 4
    FMIN, FMAX = 32.7, 8000.0

    kT, lengths, kernel_width, n_bins = make_cqt_kernels(SR, FMIN, FMAX, BPO)

    key = jax.random.PRNGKey(0)
    x = jax.random.normal(key, (2, 4096), dtype=jnp.float32)  # (batch, samples)

    out = log_cqt_forward(x, kT, lengths, HOP, kernel_width)
    out = jax.block_until_ready(out)

    n_frames = (4096 + 2 * (kernel_width // 2) - kernel_width) // HOP + 1
    assert out.shape == (2, n_bins, n_frames), out.shape
    assert bool(jnp.all(jnp.isfinite(out)))

    ref = _reference(x, kT, lengths, HOP, kernel_width)
    np.testing.assert_allclose(np.asarray(out), np.asarray(ref),
                               rtol=5e-2, atol=5e-2)

    print("KERNEL_OK")
</pallas_src>

<mosaic_0001>
module attributes {stable_mosaic.version = 11 : i64} {
  func.func @_logcqt_kernel(%arg0: i32, %arg1: memref<64x4096xbf16, #tpu.memory_space<vmem>>, %arg2: memref<4096x128xbf16, #tpu.memory_space<vmem>>, %arg3: memref<32x128xf32, #tpu.memory_space<vmem>>) attributes {dimension_semantics = [#tpu.dimension_semantics<parallel>], iteration_bounds = array<i64: 2>, scalar_prefetch = 0 : i64, scratch_operands = 0 : i64, tpu.core_type = #tpu.core_type<tc>, window_params = [{pipeline_mode = #tpu.pipeline_mode<synchronous>, transform_indices = @transform_0, window_bounds = array<i64: 64, 4096>}, {transform_indices = @transform_1, window_bounds = array<i64: 4096, 128>}, {transform_indices = @transform_2, window_bounds = array<i64: 32, 128>}]} {
    %c0 = arith.constant 0 : index
    %c0_0 = arith.constant 0 : index
    %0 = vector.load %arg1[%c0, %c0_0] : memref<64x4096xbf16, #tpu.memory_space<vmem>>, vector<64x4096xbf16>
    %c0_1 = arith.constant 0 : index
    %c0_2 = arith.constant 0 : index
    %1 = vector.load %arg2[%c0_1, %c0_2] : memref<4096x128xbf16, #tpu.memory_space<vmem>>, vector<4096x128xbf16>
    %cst = arith.constant dense<0.000000e+00> : vector<64x128xf32>
    %2 = tpu.matmul %0, %1, %cst {dimension_numbers = #tpu.dot_dimension_numbers<[1], [0], [0], [1], [0, 0, 1, 1], [], []>} : vector<64x4096xbf16>, vector<4096x128xbf16>, vector<64x128xf32> -> vector<64x128xf32>
    %3 = vector.extract_strided_slice %2 {offsets = [0, 0], sizes = [32, 128], strides = [1, 1]} : vector<64x128xf32> to vector<32x128xf32>
    %4 = vector.extract_strided_slice %2 {offsets = [32, 0], sizes = [32, 128], strides = [1, 1]} : vector<64x128xf32> to vector<32x128xf32>
    %5 = arith.mulf %3, %3 : vector<32x128xf32>
    %6 = arith.mulf %4, %4 : vector<32x128xf32>
    %7 = arith.addf %5, %6 : vector<32x128xf32>
    %cst_3 = arith.constant 1.000000e-10 : f32
    %8 = vector.broadcast %cst_3 : f32 to vector<32x128xf32>
    %9 = arith.maximumf %7, %8 : vector<32x128xf32>
    %10 = math.log %9 : vector<32x128xf32>
    %cst_4 = arith.constant 5.000000e-01 : f32
    %11 = vector.broadcast %cst_4 : f32 to vector<32x128xf32>
    %12 = arith.mulf %11, %10 : vector<32x128xf32>
    %c0_5 = arith.constant 0 : index
    %c0_6 = arith.constant 0 : index
    %13 = vector.load %arg3[%c0_5, %c0_6] : memref<32x128xf32, #tpu.memory_space<vmem>>, vector<32x128xf32>
    tpu.vector_store %arg3[%c0_5, %c0_6], %12 {strides = array<i32>} : memref<32x128xf32, #tpu.memory_space<vmem>>, vector<32x128xf32>,
    return
  }
  func.func @transform_0(%arg0: i32) -> (i32, i32) {
    %c0_i32 = arith.constant 0 : i32
    %c0_i32_0 = arith.constant 0 : i32
    %c0_i32_1 = arith.constant 0 : i32
    return %c0_i32, %c0_i32_0 : i32, i32
  }
  func.func @transform_1(%arg0: i32) -> (i32, i32) {
    %c0_i32 = arith.constant 0 : i32
    %c0_i32_0 = arith.constant 0 : i32
    return %c0_i32, %arg0 : i32, i32
  }
  func.func @transform_2(%arg0: i32) -> (i32, i32) {
    %c0_i32 = arith.constant 0 : i32
    %c0_i32_0 = arith.constant 0 : i32
    return %c0_i32, %arg0 : i32, i32
  }
}

</mosaic_0001>

<llo_original>
// kernel: tpu_custom_call.1
$region0: #{tpu_custom_call.1}
  #allocation0 [shape = 'u32[]', space=smem, size = 0x4, offset = 0x4, fixed_abs, tag = 'smem constant byte address 0x4 - core index']
  #allocation1 [shape = 'u32[72,128]{1,0:T(1,128)}', space=vmem, size = 0x9000, scoped, tag = 'internal scratch']
  %s0 = inlined_call_operand.hbm [shape: bf16[64,4096], index: 0, kind: input, shape index: {}]
  %s1 = inlined_call_operand.hbm [shape: bf16[4096,256], index: 1, kind: input, shape index: {}]
  %s2 = inlined_call_operand.hbm [shape: f32[32,256], index: 2, kind: output, shape index: {}]
  %s3 = sld [smem:[#allocation0]]
  $region49: #{tpu_custom_call.1} parent=0
    _
  %s5 = ssub.s32 1, %s3
  %s6 = scalar_select 0, %s5, %s3
  $region1: #{tpu_custom_call.1} parent=0
    #allocation2 [shape = 'u8[524288]{0}', space=vmem, size = 0x80000, scoped, tag = 'input window, operand 0, single buffered']
    #allocation3 [shape = 's32[2]{0}', space=sflag, size = 0x8, scoped, tag = 'scoped memory for tpu_custom_call.1']
    #allocation4 [shape = 's32[2]{0}', space=sflag, size = 0x8, scoped, tag = 'scoped memory for tpu_custom_call.1']
    #allocation5 [shape = 'u8[2097152]{0}', space=vmem, size = 0x200000, scoped, tag = 'input window, operand 1']
    #allocation6 [shape = 's32[2]{0}', space=sflag, size = 0x8, scoped, tag = 'scoped memory for tpu_custom_call.1']
    #allocation7 [shape = 'u8[32768]{0}', space=vmem, size = 0x8000, scoped, tag = 'output window, operand 0']
    %7 = vsyncpa [#allocation3], 0
    %8 = vsyncpa [#allocation6], 0
    %s9 = scalar_lea.sflag [#allocation6], 1
    %10 = vsyncpa %s9, 0
    %11 = vsyncpa [#allocation4], 0
    %s12 = scalar_lea.sflag [#allocation4], 1
    %13 = vsyncpa %s12, 0
    loop: start=0, step=1, limit=4
    $region2: #{tpu_custom_call.1} parent=1 // loop_pre_header
      _
    $region3: #{tpu_custom_call.1} parent=1 // loop_header
      %s15 = sphi 0, %s19
      %p16 = scmp.ge.s32.totalorder %s15, 4
      %s23 = sphi 0, %s23
      %s25 = sphi 0, %s23
      %s26 = sphi 0, %s25
      %s40 = sphi 0, %s26
      %s46 = sphi 0, %s48
      %s49 = sphi 0, %s46
      %s50 = sphi 0, %s49
      %s66 = sphi 0, %s50
      %s72 = sphi 0, %s74
      %s75 = sphi 0, %s72
      %s76 = sphi 0, %s75
      %s92 = sphi 0, %s76
    $region4: #{tpu_custom_call.1} parent=1 // loop_header_branch
      %18 = sbr.rel (%p16) target = $region8
    $region5: #{tpu_custom_call.1} parent=1 // loop_body
      %s20 = ssub.s32 %s15, 1
      %s21 = ssub.s32 %s15, 2
      %s22 = sadd.s32 %s15, 1
      %s24 = sadd.s32 %s23, 1
      %p27 = scmp.eq.s32.totalorder %s15, 1
      %p28 = scmp.ne.s32.totalorder %s23, %s25
      %p29 = scmp.eq.s32.totalorder %s15, 0
      %p30 = por %p28, %p29
      %p31 = scmp.ne.s32.totalorder %s23, %s25
      %p32 = scmp.eq.s32.totalorder %s20, 1
      %p33 = por %p31, %p32
      %p34 = scmp.ne.s32.totalorder %s25, %s26
      %p35 = scmp.eq.s32.totalorder %s20, 0
      %p36 = por %p34, %p35
      %p37 = scmp.ne.s32.totalorder %s25, %s26
      %p38 = scmp.eq.s32.totalorder %s21, 1
      %p39 = por %p37, %p38
      %p41 = scmp.ne.s32.totalorder %s26, %s40
      %p42 = scmp.eq.s32.totalorder %s21, 0
      %p43 = por %p41, %p42
      %s44 = ssub.s32 %s15, %s22
      %p45 = scmp.eq.s32.totalorder %s44, 0
      %s47 = sadd.s32 %s46, 1
      %s48 = scalar_select %p45, %s46, %s47
      %p51 = pneg %p45
      %p52 = scmp.eq.s32.totalorder %s15, 1
      %p53 = por %p51, %p52
      %p54 = scmp.ne.s32.totalorder %s46, %s49
      %p55 = scmp.eq.s32.totalorder %s15, 0
      %p56 = por %p54, %p55
      %p57 = scmp.ne.s32.totalorder %s46, %s49
      %p58 = scmp.eq.s32.totalorder %s20, 1
      %p59 = por %p57, %p58
      %p60 = scmp.ne.s32.totalorder %s49, %s50
      %p61 = scmp.eq.s32.totalorder %s20, 0
      %p62 = por %p60, %p61
      %p63 = scmp.ne.s32.totalorder %s49, %s50
      %p64 = scmp.eq.s32.totalorder %s21, 1
      %p65 = por %p63, %p64
      %p67 = scmp.ne.s32.totalorder %s50, %s66
      %p68 = scmp.eq.s32.totalorder %s21, 0
      %p69 = por %p67, %p68
      %s70 = ssub.s32 %s15, %s22
      %p71 = scmp.eq.s32.totalorder %s70, 0
      %s73 = sadd.s32 %s72, 1
      %s74 = scalar_select %p71, %s72, %s73
      %p77 = pneg %p71
      %p78 = scmp.eq.s32.totalorder %s15, 1
      %p79 = por %p77, %p78
      %p80 = scmp.ne.s32.totalorder %s72, %s75
      %p81 = scmp.eq.s32.totalorder %s15, 0
      %p82 = por %p80, %p81
      %p83 = scmp.ne.s32.totalorder %s72, %s75
      %p84 = scmp.eq.s32.totalorder %s20, 1
      %p85 = por %p83, %p84
      %p86 = scmp.ne.s32.totalorder %s75, %s76
      %p87 = scmp.eq.s32.totalorder %s20, 0
      %p88 = por %p86, %p87
      %p89 = scmp.ne.s32.totalorder %s75, %s76
      %p90 = scmp.eq.s32.totalorder %s21, 1
      %p91 = por %p89, %p90
      %p93 = scmp.ne.s32.totalorder %s76, %s92
      %p94 = scmp.eq.s32.totalorder %s21, 0
      %p95 = por %p93, %p94
      %p96 = scmp.le.s32.totalorder 1, %s15
      %p97 = scmp.lt.s32.totalorder %s15, 3
      %p98 = pnand %p96, %p97
      %p99 = pneg %p98
      // Predicated region
      $region9: #{tpu_custom_call.1} parent=5 // pred_check
        _
      $region10: #{tpu_custom_call.1} parent=5 // pred_check_branch
        %101 = sbr.rel (%p98) target = $region12
      $region11: #{tpu_custom_call.1} parent=5 // pred_region
        %s102 = ssub.s32 %s15, 1
        // Predicated region
        $region13: #{tpu_custom_call.1} parent=11 // pred_check
          %p103 = pneg %p36
        $region14: #{tpu_custom_call.1} parent=11 // pred_check_branch
          %105 = sbr.rel (%p103) target = $region16
        $region15: #{tpu_custom_call.1} parent=11 // pred_region
          %107 = vsyncadd [#allocation3], 0
          %s108 = sshll.u32 %s0, 4
          %s109 = int_to_ptr.hbm [resolvable:$true] %s108
          %s110 = sshll.u32 [#allocation2], 4
          %s111 = int_to_ptr.vmem [resolvable:$true] %s110
          %116 = dma.hbm_to_vmem [thread:$0]  %s109, 16384, %s111, [#allocation3], 2048, 2048, 128
        $region16: #{tpu_custom_call.1} parent=11 // pred_fallthru
          _
      $region12: #{tpu_custom_call.1} parent=5 // pred_fallthru
        _
      %p117 = scmp.lt.s32.totalorder %s15, 2
      // Predicated region
      $region17: #{tpu_custom_call.1} parent=5 // pred_check
        %p118 = pneg %p117
      $region18: #{tpu_custom_call.1} parent=5 // pred_check_branch
        %120 = sbr.rel (%p118) target = $region20
      $region19: #{tpu_custom_call.1} parent=5 // pred_region
        // Predicated region
        $region21: #{tpu_custom_call.1} parent=19 // pred_check
          %p121 = pneg %p56
        $region22: #{tpu_custom_call.1} parent=19 // pred_check_branch
          %123 = sbr.rel (%p121) target = $region24
        $region23: #{tpu_custom_call.1} parent=19 // pred_region
          %s124 = sand.u32 %s46, 1
          %s125 = scalar_lea.sflag [#allocation6], %s124
          %s126 = sand.u32 %s46, 1
          %s127 = smul.addr %s126, 2048
          %s128 = scalar_lea.vmem [#allocation5], %s127
          %130 = vsyncadd %s125, 0
          %s131 = smul.addr %s15, 4
          %s132 = scalar_lea.hbm %s1, %s131
          %s133 = sshll.u32 %s132, 4
          %s134 = int_to_ptr.hbm [resolvable:$true] %s133
          %s135 = sshll.u32 %s128, 4
          %s136 = int_to_ptr.vmem [resolvable:$true] %s135
          %141 = dma.hbm_to_vmem [thread:$0]  %s134, 32768, %s136, %s125, 128, 64, 4
        $region24: #{tpu_custom_call.1} parent=19 // pred_fallthru
          _
      $region20: #{tpu_custom_call.1} parent=5 // pred_fallthru
        _
      %p142 = scmp.le.s32.totalorder 1, %s15
      %p143 = scmp.lt.s32.totalorder %s15, 3
      %p144 = pnand %p142, %p143
      %p145 = pneg %p144
      // Predicated region
      $region25: #{tpu_custom_call.1} parent=5 // pred_check
        _
      $region26: #{tpu_custom_call.1} parent=5 // pred_check_branch
        %147 = sbr.rel (%p144) target = $region28
      $region27: #{tpu_custom_call.1} parent=5 // pred_region
        %s148 = ssub.s32 %s15, 1
        // Predicated region
        $region29: #{tpu_custom_call.1} parent=27 // pred_check
          %p149 = pneg %p36
        $region30: #{tpu_custom_call.1} parent=27 // pred_check_branch
          %151 = sbr.rel (%p149) target = $region32
        $region31: #{tpu_custom_call.1} parent=27 // pred_region
          %153 = dma.done [#allocation3], 16384
        $region32: #{tpu_custom_call.1} parent=27 // pred_fallthru
          _
        %s154 = sand.u32 %s49, 1
        %s155 = scalar_lea.sflag [#allocation6], %s154
        %s156 = sand.u32 %s49, 1
        %s157 = smul.addr %s156, 2048
        %s158 = scalar_lea.vmem [#allocation5], %s157
        // Predicated region
        $region33: #{tpu_custom_call.1} parent=27 // pred_check
          %p159 = pneg %p62
        $region34: #{tpu_custom_call.1} parent=27 // pred_check_branch
          %161 = sbr.rel (%p159) target = $region36
        $region35: #{tpu_custom_call.1} parent=27 // pred_region
          %163 = dma.done %s155, 32768
        $region36: #{tpu_custom_call.1} parent=27 // pred_fallthru
          _
        %p164 = pneg %p36
        %p165 = pneg %p33
        %s166 = sand.u32 %s49, 1
        %s167 = scalar_lea.sflag [#allocation6], %s166
        %s168 = sand.u32 %s49, 1
        %s169 = smul.addr %s168, 2048
        %s170 = scalar_lea.vmem [#allocation5], %s169
        %p171 = pneg %p62
        %p172 = pneg %p59
        %p173 = pneg %p88
        %p174 = pneg %p85
        %s175 = sand.u32 %s75, 1
        %s176 = scalar_lea.sflag [#allocation4], %s175
        %s177 = sand.u32 %s75, 1
        %s178 = smul.addr %s177, 32
        %s179 = scalar_lea.vmem [#allocation7], %s178
        %v180 = vld [vmem:[#allocation2] sm:$0xff]
        %v181 = vld [vmem:[#allocation2 + $0x8] sm:$0xff]
        %v182 = vld [vmem:[#allocation2 + $0x10] sm:$0xff]
        %v183 = vld [vmem:[#allocation2 + $0x18] sm:$0xff]
        %v184 = vld [vmem:[#allocation2 + $0x20] sm:$0xff]
        %v185 = vld [vmem:[#allocation2 + $0x28] sm:$0xff]
        %v186 = vld [vmem:[#allocation2 + $0x30] sm:$0xff]
        %v187 = vld [vmem:[#allocation2 + $0x38] sm:$0xff]
        %v188 = vld [vmem:[#allocation2 + $0x40] sm:$0xff]
        %v189 = vld [vmem:[#allocation2 + $0x48] sm:$0xff]
        %v190 = vld [vmem:[#allocation2 + $0x50] sm:$0xff]
        %v191 = vld [vmem:[#allocation2 + $0x58] sm:$0xff]
        %v192 = vld [vmem:[#allocation2 + $0x60] sm:$0xff]
        %v193 = vld [vmem:[#allocation2 + $0x68] sm:$0xff]
        %v194 = vld [vmem:[#allocation2 + $0x70] sm:$0xff]
        %v195 = vld [vmem:[#allocation2 + $0x78] sm:$0xff]
        %v196 = vld [vmem:[#allocation2 + $0x80] sm:$0xff]
        %v197 = vld [vmem:[#allocation2 + $0x88] sm:$0xff]
        %v198 = vld [vmem:[#allocation2 + $0x90] sm:$0xff]
        %v199 = vld [vmem:[#allocation2 + $0x98] sm:$0xff]
        %v200 = vld [vmem:[#allocation2 + $0xa0] sm:$0xff]
        %v201 = vld [vmem:[#allocation2 + $0xa8] sm:$0xff]
        %v202 = vld [vmem:[#allocation2 + $0xb0] sm:$0xff]
        %v203 = vld [vmem:[#allocation2 + $0xb8] sm:$0xff]
        %v204 = vld [vmem:[#allocation2 + $0xc0] sm:$0xff]
        %v205 = vld [vmem:[#allocation2 + $0xc8] sm:$0xff]
        %v206 = vld [vmem:[#allocation2 + $0xd0] sm:$0xff]
        %v207 = vld [vmem:[#allocation2 + $0xd8] sm:$0xff]
        %v208 = vld [vmem:[#allocation2 + $0xe0] sm:$0xff]
        %v209 = vld [vmem:[#allocation2 + $0xe8] sm:$0xff]
        %v210 = vld [vmem:[#allocation2 + $0xf0] sm:$0xff]
        %v211 = vld [vmem:[#allocation2 + $0xf8] sm:$0xff]
        %v212 = vld [vmem:[#allocation2 + $0x100] sm:$0xff]
        %v213 = vld [vmem:[#allocation2 + $0x108] sm:$0xff]
        %v214 = vld [vmem:[#allocation2 + $0x110] sm:$0xff]
        %v215 = vld [vmem:[#allocation2 + $0x118] sm:$0xff]
        %v216 = vld [vmem:[#allocation2 + $0x120] sm:$0xff]
        %v217 = vld [vmem:[#allocation2 + $0x128] sm:$0xff]
        %v218 = vld [vmem:[#allocation2 + $0x130] sm:$0xff]
        %v219 = vld [vmem:[#allocation2 + $0x138] sm:$0xff]
        %v220 = vld [vmem:[#allocation2 + $0x140] sm:$0xff]
        %v221 = vld [vmem:[#allocation2 + $0x148] sm:$0xff]
        %v222 = vld [vmem:[#allocation2 + $0x150] sm:$0xff]
        %v223 = vld [vmem:[#allocation2 + $0x158] sm:$0xff]
        %v224 = vld [vmem:[#allocation2 + $0x160] sm:$0xff]
        %v225 = vld [vmem:[#allocation2 + $0x168] sm:$0xff]
        %v226 = vld [vmem:[#allocation2 + $0x170] sm:$0xff]
        %v227 = vld [vmem:[#allocation2 + $0x178] sm:$0xff]
        %v228 = vld [vmem:[#allocation2 + $0x180] sm:$0xff]
        %v229 = vld [vmem:[#allocation2 + $0x188] sm:$0xff]
        %v230 = vld [vmem:[#allocation2 + $0x190] sm:$0xff]
        %v231 = vld [vmem:[#allocation2 + $0x198] sm:$0xff]
        %v232 = vld [vmem:[#allocation2 + $0x1a0] sm:$0xff]
        %v233 = vld [vmem:[#allocation2 + $0x1a8] sm:$0xff]
        %v234 = vld [vmem:[#allocation2 + $0x1b0] sm:$0xff]
        %v235 = vld [vmem:[#allocation2 + $0x1b8] sm:$0xff]
        %v236 = vld [vmem:[#allocation2 + $0x1c0] sm:$0xff]
        %v237 = vld [vmem:[#allocation2 + $0x1c8] sm:$0xff]
        %v238 = vld [vmem:[#allocation2 + $0x1d0] sm:$0xff]
        %v239 = vld [vmem:[#allocation2 + $0x1d8] sm:$0xff]
        %v240 = vld [vmem:[#allocation2 + $0x1e0] sm:$0xff]
        %v241 = vld [vmem:[#allocation2 + $0x1e8] sm:$0xff]
        %v242 = vld [vmem:[#allocation2 + $0x1f0] sm:$0xff]
        %v243 = vld [vmem:[#allocation2 + $0x1f8] sm:$0xff]
        %v244 = vld [vmem:[#allocation2 + $0x200] sm:$0xff]
        %v245 = vld [vmem:[#allocation2 + $0x208] sm:$0xff]
        %v246 = vld [vmem:[#allocation2 + $0x210] sm:$0xff]
        %v247 = vld [vmem:[#allocation2 + $0x218] sm:$0xff]
        %v248 = vld [vmem:[#allocation2 + $0x220] sm:$0xff]
        %v249 = vld [vmem:[#allocation2 + $0x228] sm:$0xff]
        %v250 = vld [vmem:[#allocation2 + $0x230] sm:$0xff]
        %v251 = vld [vmem:[#allocation2 + $0x238] sm:$0xff]
        %v252 = vld [vmem:[#allocation2 + $0x240] sm:$0xff]
        %v253 = vld [vmem:[#allocation2 + $0x248] sm:$0xff]
        %v254 = vld [vmem:[#allocation2 + $0x250] sm:$0xff]
        %v255 = vld [vmem:[#allocation2 + $0x258] sm:$0xff]
        %v256 = vld [vmem:[#allocation2 + $0x260] sm:$0xff]
        %v257 = vld [vmem:[#allocation2 + $0x268] sm:$0xff]
        %v258 = vld [vmem:[#allocation2 + $0x270] sm:$0xff]
        %v259 = vld [vmem:[#allocation2 + $0x278] sm:$0xff]
        %v260 = vld [vmem:[#allocation2 + $0x280] sm:$0xff]
        %v261 = vld [vmem:[#allocation2 + $0x288] sm:$0xff]
        %v262 = vld [vmem:[#allocation2 + $0x290] sm:$0xff]
        %v263 = vld [vmem:[#allocation2 + $0x298] sm:$0xff]
        %v264 = vld [vmem:[#allocation2 + $0x2a0] sm:$0xff]
        %v265 = vld [vmem:[#allocation2 + $0x2a8] sm:$0xff]
        %v266 = vld [vmem:[#allocation2 + $0x2b0] sm:$0xff]
        %v267 = vld [vmem:[#allocation2 + $0x2b8] sm:$0xff]
        %v268 = vld [vmem:[#allocation2 + $0x2c0] sm:$0xff]
        %v269 = vld [vmem:[#allocation2 + $0x2c8] sm:$0xff]
        %v270 = vld [vmem:[#allocation2 + $0x2d0] sm:$0xff]
        %v271 = vld [vmem:[#allocation2 + $0x2d8] sm:$0xff]
        %v272 = vld [vmem:[#allocation2 + $0x2e0] sm:$0xff]
        %v273 = vld [vmem:[#allocation2 + $0x2e8] sm:$0xff]
        %v274 = vld [vmem:[#allocation2 + $0x2f0] sm:$0xff]
        %v275 = vld [vmem:[#allocation2 + $0x2f8] sm:$0xff]
        %v276 = vld [vmem:[#allocation2 + $0x300] sm:$0xff]
        %v277 = vld [vmem:[#allocation2 + $0x308] sm:$0xff]
        %v278 = vld [vmem:[#allocation2 + $0x310] sm:$0xff]
        %v279 = vld [vmem:[#allocation2 + $0x318] sm:$0xff]
        %v280 = vld [vmem:[#allocation2 + $0x320] sm:$0xff]
        %v281 = vld [vmem:[#allocation2 + $0x328] sm:$0xff]
        %v282 = vld [vmem:[#allocation2 + $0x330] sm:$0xff]
        %v283 = vld [vmem:[#allocation2 + $0x338] sm:$0xff]
        %v284 = vld [vmem:[#allocation2 + $0x340] sm:$0xff]
        %v285 = vld [vmem:[#allocation2 + $0x348] sm:$0xff]
        %v286 = vld [vmem:[#allocation2 + $0x350] sm:$0xff]
        %v287 = vld [vmem:[#allocation2 + $0x358] sm:$0xff]
        %v288 = vld [vmem:[#allocation2 + $0x360] sm:$0xff]
        %v289 = vld [vmem:[#allocation2 + $0x368] sm:$0xff]
        %v290 = vld [vmem:[#allocation2 + $0x370] sm:$0xff]
        %v291 = vld [vmem:[#allocation2 + $0x378] sm:$0xff]
        %v292 = vld [vmem:[#allocation2 + $0x380] sm:$0xff]
        %v293 = vld [vmem:[#allocation2 + $0x388] sm:$0xff]
        %v294 = vld [vmem:[#allocation2 + $0x390] sm:$0xff]
        %v295 = vld [vmem:[#allocation2 + $0x398] sm:$0xff]
        %v296 = vld [vmem:[#allocation2 + $0x3a0] sm:$0xff]
        %v297 = vld [vmem:[#allocation2 + $0x3a8] sm:$0xff]
        %v298 = vld [vmem:[#allocation2 + $0x3b0] sm:$0xff]
        %v299 = vld [vmem:[#allocation2 + $0x3b8] sm:$0xff]
        %v300 = vld [vmem:[#allocation2 + $0x3c0] sm:$0xff]
        %v301 = vld [vmem:[#allocation2 + $0x3c8] sm:$0xff]
        %v302 = vld [vmem:[#allocation2 + $0x3d0] sm:$0xff]
        %v303 = vld [vmem:[#allocation2 + $0x3d8] sm:$0xff]
        %v304 = vld [vmem:[#allocation2 + $0x3e0] sm:$0xff]
        %v305 = vld [vmem:[#allocation2 + $0x3e8] sm:$0xff]
        %v306 = vld [vmem:[#allocation2 + $0x3f0] sm:$0xff]
        %v307 = vld [vmem:[#allocation2 + $0x3f8] sm:$0xff]
        %v308 = vld [vmem:[%s158] sm:$0xf]
        %v309 = vld [vmem:[%s158 + $0x4] sm:$0xf]
        %v310 = vld [vmem:[%s158 + $0x8] sm:$0xf]
        %v311 = vld [vmem:[%s158 + $0xc] sm:$0xf]
        %v312 = vld [vmem:[%s158 + $0x10] sm:$0xf]
        %v313 = vld [vmem:[%s158 + $0x14] sm:$0xf]
        %v314 = vld [vmem:[%s158 + $0x18] sm:$0xf]
        %v315 = vld [vmem:[%s158 + $0x1c] sm:$0xf]
        %v316 = vld [vmem:[%s158 + $0x20] sm:$0xf]
        %v317 = vld [vmem:[%s158 + $0x24] sm:$0xf]
        %v318 = vld [vmem:[%s158 + $0x28] sm:$0xf]
        %v319 = vld [vmem:[%s158 + $0x2c] sm:$0xf]
        %v320 = vld [vmem:[%s158 + $0x30] sm:$0xf]
        %v321 = vld [vmem:[%s158 + $0x34] sm:$0xf]
        %v322 = vld [vmem:[%s158 + $0x38] sm:$0xf]
        %v323 = vld [vmem:[%s158 + $0x3c] sm:$0xf]
        %v324 = vld [vmem:[%s158 + $0x40] sm:$0xf]
        %v325 = vld [vmem:[%s158 + $0x44] sm:$0xf]
        %v326 = vld [vmem:[%s158 + $0x48] sm:$0xf]
        %v327 = vld [vmem:[%s158 + $0x4c] sm:$0xf]
        %v328 = vld [vmem:[%s158 + $0x50] sm:$0xf]
        %v329 = vld [vmem:[%s158 + $0x54] sm:$0xf]
        %v330 = vld [vmem:[%s158 + $0x58] sm:$0xf]
        %v331 = vld [vmem:[%s158 + $0x5c] sm:$0xf]
        %v332 = vld [vmem:[%s158 + $0x60] sm:$0xf]
        %v333 = vld [vmem:[%s158 + $0x64] sm:$0xf]
        %v334 = vld [vmem:[%s158 + $0x68] sm:$0xf]
        %v335 = vld [vmem:[%s158 + $0x6c] sm:$0xf]
        %v336 = vld [vmem:[%s158 + $0x70] sm:$0xf]
        %v337 = vld [vmem:[%s158 + $0x74] sm:$0xf]
        %v338 = vld [vmem:[%s158 + $0x78] sm:$0xf]
        %v339 = vld [vmem:[%s158 + $0x7c] sm:$0xf]
        %v340 = vld [vmem:[%s158 + $0x80] sm:$0xf]
        %v341 = vld [vmem:[%s158 + $0x84] sm:$0xf]
        %v342 = vld [vmem:[%s158 + $0x88] sm:$0xf]
        %v343 = vld [vmem:[%s158 + $0x8c] sm:$0xf]
        %v344 = vld [vmem:[%s158 + $0x90] sm:$0xf]
        %v345 = vld [vmem:[%s158 + $0x94] sm:$0xf]
        %v346 = vld [vmem:[%s158 + $0x98] sm:$0xf]
        %v347 = vld [vmem:[%s158 + $0x9c] sm:$0xf]
        %v348 = vld [vmem:[%s158 + $0xa0] sm:$0xf]
        %v349 = vld [vmem:[%s158 + $0xa4] sm:$0xf]
        %v350 = vld [vmem:[%s158 + $0xa8] sm:$0xf]
        %v351 = vld [vmem:[%s158 + $0xac] sm:$0xf]
        %v352 = vld [vmem:[%s158 + $0xb0] sm:$0xf]
        %v353 = vld [vmem:[%s158 + $0xb4] sm:$0xf]
        %v354 = vld [vmem:[%s158 + $0xb8] sm:$0xf]
        %v355 = vld [vmem:[%s158 + $0xbc] sm:$0xf]
        %v356 = vld [vmem:[%s158 + $0xc0] sm:$0xf]
        %v357 = vld [vmem:[%s158 + $0xc4] sm:$0xf]
        %v358 = vld [vmem:[%s158 + $0xc8] sm:$0xf]
        %v359 = vld [vmem:[%s158 + $0xcc] sm:$0xf]
        %v360 = vld [vmem:[%s158 + $0xd0] sm:$0xf]
        %v361 = vld [vmem:[%s158 + $0xd4] sm:$0xf]
        %v362 = vld [vmem:[%s158 + $0xd8] sm:$0xf]
        %v363 = vld [vmem:[%s158 + $0xdc] sm:$0xf]
        %v364 = vld [vmem:[%s158 + $0xe0] sm:$0xf]
        %v365 = vld [vmem:[%s158 + $0xe4] sm:$0xf]
        %v366 = vld [vmem:[%s158 + $0xe8] sm:$0xf]
        %v367 = vld [vmem:[%s158 + $0xec] sm:$0xf]
        %v368 = vld [vmem:[%s158 + $0xf0] sm:$0xf]
        %v369 = vld [vmem:[%s158 + $0xf4] sm:$0xf]
        %v370 = vld [vmem:[%s158 + $0xf8] sm:$0xf]
        %v371 = vld [vmem:[%s158 + $0xfc] sm:$0xf]
        %v372 = vld [vmem:[%s158 + $0x100] sm:$0xf]
        %v373 = vld [vmem:[%s158 + $0x104] sm:$0xf]
        %v374 = vld [vmem:[%s158 + $0x108] sm:$0xf]
        %v375 = vld [vmem:[%s158 + $0x10c] sm:$0xf]
        %v376 = vld [vmem:[%s158 + $0x110] sm:$0xf]
        %v377 = vld [vmem:[%s158 + $0x114] sm:$0xf]
        %v378 = vld [vmem:[%s158 + $0x118] sm:$0xf]
        %v379 = vld [vmem:[%s158 + $0x11c] sm:$0xf]
        %v380 = vld [vmem:[%s158 + $0x120] sm:$0xf]
        %v381 = vld [vmem:[%s158 + $0x124] sm:$0xf]
        %v382 = vld [vmem:[%s158 + $0x128] sm:$0xf]
        %v383 = vld [vmem:[%s158 + $0x12c] sm:$0xf]
        %v384 = vld [vmem:[%s158 + $0x130] sm:$0xf]
        %v385 = vld [vmem:[%s158 + $0x134] sm:$0xf]
        %v386 = vld [vmem:[%s158 + $0x138] sm:$0xf]
        %v387 = vld [vmem:[%s158 + $0x13c] sm:$0xf]
        %v388 = vld [vmem:[%s158 + $0x140] sm:$0xf]
        %v389 = vld [vmem:[%s158 + $0x144] sm:$0xf]
        %v390 = vld [vmem:[%s158 + $0x148] sm:$0xf]
        %v391 = vld [vmem:[%s158 + $0x14c] sm:$0xf]
        %v392 = vld [vmem:[%s158 + $0x150] sm:$0xf]
        %v393 = vld [vmem:[%s158 + $0x154] sm:$0xf]
        %v394 = vld [vmem:[%s158 + $0x158] sm:$0xf]
        %v395 = vld [vmem:[%s158 + $0x15c] sm:$0xf]
        %v396 = vld [vmem:[%s158 + $0x160] sm:$0xf]
        %v397 = vld [vmem:[%s158 + $0x164] sm:$0xf]
        %v398 = vld [vmem:[%s158 + $0x168] sm:$0xf]
        %v399 = vld [vmem:[%s158 + $0x16c] sm:$0xf]
        %v400 = vld [vmem:[%s158 + $0x170] sm:$0xf]
        %v401 = vld [vmem:[%s158 + $0x174] sm:$0xf]
        %v402 = vld [vmem:[%s158 + $0x178] sm:$0xf]
        %v403 = vld [vmem:[%s158 + $0x17c] sm:$0xf]
        %v404 = vld [vmem:[%s158 + $0x180] sm:$0xf]
        %v405 = vld [vmem:[%s158 + $0x184] sm:$0xf]
        %v406 = vld [vmem:[%s158 + $0x188] sm:$0xf]
        %v407 = vld [vmem:[%s158 + $0x18c] sm:$0xf]
        %v408 = vld [vmem:[%s158 + $0x190] sm:$0xf]
        %v409 = vld [vmem:[%s158 + $0x194] sm:$0xf]
        %v410 = vld [vmem:[%s158 + $0x198] sm:$0xf]
        %v411 = vld [vmem:[%s158 + $0x19c] sm:$0xf]
        %v412 = vld [vmem:[%s158 + $0x1a0] sm:$0xf]
        %v413 = vld [vmem:[%s158 + $0x1a4] sm:$0xf]
        %v414 = vld [vmem:[%s158 + $0x1a8] sm:$0xf]
        %v415 = vld [vmem:[%s158 + $0x1ac] sm:$0xf]
        %v416 = vld [vmem:[%s158 + $0x1b0] sm:$0xf]
        %v417 = vld [vmem:[%s158 + $0x1b4] sm:$0xf]
        %v418 = vld [vmem:[%s158 + $0x1b8] sm:$0xf]
        %v419 = vld [vmem:[%s158 + $0x1bc] sm:$0xf]
        %v420 = vld [vmem:[%s158 + $0x1c0] sm:$0xf]
        %v421 = vld [vmem:[%s158 + $0x1c4] sm:$0xf]
        %v422 = vld [vmem:[%s158 + $0x1c8] sm:$0xf]
        %v423 = vld [vmem:[%s158 + $0x1cc] sm:$0xf]
        %v424 = vld [vmem:[%s158 + $0x1d0] sm:$0xf]
        %v425 = vld [vmem:[%s158 + $0x1d4] sm:$0xf]
        %v426 = vld [vmem:[%s158 + $0x1d8] sm:$0xf]
        %v427 = vld [vmem:[%s158 + $0x1dc] sm:$0xf]
        %v428 = vld [vmem:[%s158 + $0x1e0] sm:$0xf]
        %v429 = vld [vmem:[%s158 + $0x1e4] sm:$0xf]
        %v430 = vld [vmem:[%s158 + $0x1e8] sm:$0xf]
        %v431 = vld [vmem:[%s158 + $0x1ec] sm:$0xf]
        %v432 = vld [vmem:[%s158 + $0x1f0] sm:$0xf]
        %v433 = vld [vmem:[%s158 + $0x1f4] sm:$0xf]
        %v434 = vld [vmem:[%s158 + $0x1f8] sm:$0xf]
        %v435 = vld [vmem:[%s158 + $0x1fc] sm:$0xf]
        %v436 = vld [vmem:[%s158 + $0x200] sm:$0xf]
        %v437 = vld [vmem:[%s158 + $0x204] sm:$0xf]
        %v438 = vld [vmem:[%s158 + $0x208] sm:$0xf]
        %v439 = vld [vmem:[%s158 + $0x20c] sm:$0xf]
        %v440 = vld [vmem:[%s158 + $0x210] sm:$0xf]
        %v441 = vld [vmem:[%s158 + $0x214] sm:$0xf]
        %v442 = vld [vmem:[%s158 + $0x218] sm:$0xf]
        %v443 = vld [vmem:[%s158 + $0x21c] sm:$0xf]
        %v444 = vld [vmem:[%s158 + $0x220] sm:$0xf]
        %v445 = vld [vmem:[%s158 + $0x224] sm:$0xf]
        %v446 = vld [vmem:[%s158 + $0x228] sm:$0xf]
        %v447 = vld [vmem:[%s158 + $0x22c] sm:$0xf]
        %v448 = vld [vmem:[%s158 + $0x230] sm:$0xf]
        %v449 = vld [vmem:[%s158 + $0x234] sm:$0xf]
        %v450 = vld [vmem:[%s158 + $0x238] sm:$0xf]
        %v451 = vld [vmem:[%s158 + $0x23c] sm:$0xf]
        %v452 = vld [vmem:[%s158 + $0x240] sm:$0xf]
        %v453 = vld [vmem:[%s158 + $0x244] sm:$0xf]
        %v454 = vld [vmem:[%s158 + $0x248] sm:$0xf]
        %v455 = vld [vmem:[%s158 + $0x24c] sm:$0xf]
        %v456 = vld [vmem:[%s158 + $0x250] sm:$0xf]
        %v457 = vld [vmem:[%s158 + $0x254] sm:$0xf]
        %v458 = vld [vmem:[%s158 + $0x258] sm:$0xf]
        %v459 = vld [vmem:[%s158 + $0x25c] sm:$0xf]
        %v460 = vld [vmem:[%s158 + $0x260] sm:$0xf]
        %v461 = vld [vmem:[%s158 + $0x264] sm:$0xf]
        %v462 = vld [vmem:[%s158 + $0x268] sm:$0xf]
        %v463 = vld [vmem:[%s158 + $0x26c] sm:$0xf]
        %v464 = vld [vmem:[%s158 + $0x270] sm:$0xf]
        %v465 = vld [vmem:[%s158 + $0x274] sm:$0xf]
        %v466 = vld [vmem:[%s158 + $0x278] sm:$0xf]
        %v467 = vld [vmem:[%s158 + $0x27c] sm:$0xf]
        %v468 = vld [vmem:[%s158 + $0x280] sm:$0xf]
        %v469 = vld [vmem:[%s158 + $0x284] sm:$0xf]
        %v470 = vld [vmem:[%s158 + $0x288] sm:$0xf]
        %v471 = vld [vmem:[%s158 + $0x28c] sm:$0xf]
        %v472 = vld [vmem:[%s158 + $0x290] sm:$0xf]
        %v473 = vld [vmem:[%s158 + $0x294] sm:$0xf]
        %v474 = vld [vmem:[%s158 + $0x298] sm:$0xf]
        %v475 = vld [vmem:[%s158 + $0x29c] sm:$0xf]
        %v476 = vld [vmem:[%s158 + $0x2a0] sm:$0xf]
        %v477 = vld [vmem:[%s158 + $0x2a4] sm:$0xf]
        %v478 = vld [vmem:[%s158 + $0x2a8] sm:$0xf]
        %v479 = vld [vmem:[%s158 + $0x2ac] sm:$0xf]
        %v480 = vld [vmem:[%s158 + $0x2b0] sm:$0xf]
        %v481 = vld [vmem:[%s158 + $0x2b4] sm:$0xf]
        %v482 = vld [vmem:[%s158 + $0x2b8] sm:$0xf]
        %v483 = vld [vmem:[%s158 + $0x2bc] sm:$0xf]
        %v484 = vld [vmem:[%s158 + $0x2c0] sm:$0xf]
        %v485 = vld [vmem:[%s158 + $0x2c4] sm:$0xf]
        %v486 = vld [vmem:[%s158 + $0x2c8] sm:$0xf]
        %v487 = vld [vmem:[%s158 + $0x2cc] sm:$0xf]
        %v488 = vld [vmem:[%s158 + $0x2d0] sm:$0xf]
        %v489 = vld [vmem:[%s158 + $0x2d4] sm:$0xf]
        %v490 = vld [vmem:[%s158 + $0x2d8] sm:$0xf]
        %v491 = vld [vmem:[%s158 + $0x2dc] sm:$0xf]
        %v492 = vld [vmem:[%s158 + $0x2e0] sm:$0xf]
        %v493 = vld [vmem:[%s158 + $0x2e4] sm:$0xf]
        %v494 = vld [vmem:[%s158 + $0x2e8] sm:$0xf]
        %v495 = vld [vmem:[%s158 + $0x2ec] sm:$0xf]
        %v496 = vld [vmem:[%s158 + $0x2f0] sm:$0xf]
        %v497 = vld [vmem:[%s158 + $0x2f4] sm:$0xf]
        %v498 = vld [vmem:[%s158 + $0x2f8] sm:$0xf]
        %v499 = vld [vmem:[%s158 + $0x2fc] sm:$0xf]
        %v500 = vld [vmem:[%s158 + $0x300] sm:$0xf]
        %v501 = vld [vmem:[%s158 + $0x304] sm:$0xf]
        %v502 = vld [vmem:[%s158 + $0x308] sm:$0xf]
        %v503 = vld [vmem:[%s158 + $0x30c] sm:$0xf]
        %v504 = vld [vmem:[%s158 + $0x310] sm:$0xf]
        %v505 = vld [vmem:[%s158 + $0x314] sm:$0xf]
        %v506 = vld [vmem:[%s158 + $0x318] sm:$0xf]
        %v507 = vld [vmem:[%s158 + $0x31c] sm:$0xf]
        %v508 = vld [vmem:[%s158 + $0x320] sm:$0xf]
        %v509 = vld [vmem:[%s158 + $0x324] sm:$0xf]
        %v510 = vld [vmem:[%s158 + $0x328] sm:$0xf]
        %v511 = vld [vmem:[%s158 + $0x32c] sm:$0xf]
        %v512 = vld [vmem:[%s158 + $0x330] sm:$0xf]
        %v513 = vld [vmem:[%s158 + $0x334] sm:$0xf]
        %v514 = vld [vmem:[%s158 + $0x338] sm:$0xf]
        %v515 = vld [vmem:[%s158 + $0x33c] sm:$0xf]
        %v516 = vld [vmem:[%s158 + $0x340] sm:$0xf]
        %v517 = vld [vmem:[%s158 + $0x344] sm:$0xf]
        %v518 = vld [vmem:[%s158 + $0x348] sm:$0xf]
        %v519 = vld [vmem:[%s158 + $0x34c] sm:$0xf]
        %v520 = vld [vmem:[%s158 + $0x350] sm:$0xf]
        %v521 = vld [vmem:[%s158 + $0x354] sm:$0xf]
        %v522 = vld [vmem:[%s158 + $0x358] sm:$0xf]
        %v523 = vld [vmem:[%s158 + $0x35c] sm:$0xf]
        %v524 = vld [vmem:[%s158 + $0x360] sm:$0xf]
        %v525 = vld [vmem:[%s158 + $0x364] sm:$0xf]
        %v526 = vld [vmem:[%s158 + $0x368] sm:$0xf]
        %v527 = vld [vmem:[%s158 + $0x36c] sm:$0xf]
        %v528 = vld [vmem:[%s158 + $0x370] sm:$0xf]
        %v529 = vld [vmem:[%s158 + $0x374] sm:$0xf]
        %v530 = vld [vmem:[%s158 + $0x378] sm:$0xf]
        %v531 = vld [vmem:[%s158 + $0x37c] sm:$0xf]
        %v532 = vld [vmem:[%s158 + $0x380] sm:$0xf]
        %v533 = vld [vmem:[%s158 + $0x384] sm:$0xf]
        %v534 = vld [vmem:[%s158 + $0x388] sm:$0xf]
        %v535 = vld [vmem:[%s158 + $0x38c] sm:$0xf]
        %v536 = vld [vmem:[%s158 + $0x390] sm:$0xf]
        %v537 = vld [vmem:[%s158 + $0x394] sm:$0xf]
        %v538 = vld [vmem:[%s158 + $0x398] sm:$0xf]
        %v539 = vld [vmem:[%s158 + $0x39c] sm:$0xf]
        %v540 = vld [vmem:[%s158 + $0x3a0] sm:$0xf]
        %v541 = vld [vmem:[%s158 + $0x3a4] sm:$0xf]
        %v542 = vld [vmem:[%s158 + $0x3a8] sm:$0xf]
        %v543 = vld [vmem:[%s158 + $0x3ac] sm:$0xf]
        %v544 = vld [vmem:[%s158 + $0x3b0] sm:$0xf]
        %v545 = vld [vmem:[%s158 + $0x3b4] sm:$0xf]
        %v546 = vld [vmem:[%s158 + $0x3b8] sm:$0xf]
        %v547 = vld [vmem:[%s158 + $0x3bc] sm:$0xf]
        %v548 = vld [vmem:[%s158 + $0x3c0] sm:$0xf]
        %v549 = vld [vmem:[%s158 + $0x3c4] sm:$0xf]
        %v550 = vld [vmem:[%s158 + $0x3c8] sm:$0xf]
        %v551 = vld [vmem:[%s158 + $0x3cc] sm:$0xf]
        %v552 = vld [vmem:[%s158 + $0x3d0] sm:$0xf]
        %v553 = vld [vmem:[%s158 + $0x3d4] sm:$0xf]
        %v554 = vld [vmem:[%s158 + $0x3d8] sm:$0xf]
        %v555 = vld [vmem:[%s158 + $0x3dc] sm:$0xf]
        %v556 = vld [vmem:[%s158 + $0x3e0] sm:$0xf]
        %v557 = vld [vmem:[%s158 + $0x3e4] sm:$0xf]
        %v558 = vld [vmem:[%s158 + $0x3e8] sm:$0xf]
        %v559 = vld [vmem:[%s158 + $0x3ec] sm:$0xf]
        %v560 = vld [vmem:[%s158 + $0x3f0] sm:$0xf]
        %v561 = vld [vmem:[%s158 + $0x3f4] sm:$0xf]
        %v562 = vld [vmem:[%s158 + $0x3f8] sm:$0xf]
        %v563 = vld [vmem:[%s158 + $0x3fc] sm:$0xf]
        %v564 = vld [vmem:[%s158 + $0x400] sm:$0xf]
        %v565 = vld [vmem:[%s158 + $0x404] sm:$0xf]
        %v566 = vld [vmem:[%s158 + $0x408] sm:$0xf]
        %v567 = vld [vmem:[%s158 + $0x40c] sm:$0xf]
        %v568 = vld [vmem:[%s158 + $0x410] sm:$0xf]
        %v569 = vld [vmem:[%s158 + $0x414] sm:$0xf]
        %v570 = vld [vmem:[%s158 + $0x418] sm:$0xf]
        %v571 = vld [vmem:[%s158 + $0x41c] sm:$0xf]
        %v572 = vld [vmem:[%s158 + $0x420] sm:$0xf]
        %v573 = vld [vmem:[%s158 + $0x424] sm:$0xf]
        %v574 = vld [vmem:[%s158 + $0x428] sm:$0xf]
        %v575 = vld [vmem:[%s158 + $0x42c] sm:$0xf]
        %v576 = vld [vmem:[%s158 + $0x430] sm:$0xf]
        %v577 = vld [vmem:[%s158 + $0x434] sm:$0xf]
        %v578 = vld [vmem:[%s158 + $0x438] sm:$0xf]
        %v579 = vld [vmem:[%s158 + $0x43c] sm:$0xf]
        %v580 = vld [vmem:[%s158 + $0x440] sm:$0xf]
        %v581 = vld [vmem:[%s158 + $0x444] sm:$0xf]
        %v582 = vld [vmem:[%s158 + $0x448] sm:$0xf]
        %v583 = vld [vmem:[%s158 + $0x44c] sm:$0xf]
        %v584 = vld [vmem:[%s158 + $0x450] sm:$0xf]
        %v585 = vld [vmem:[%s158 + $0x454] sm:$0xf]
        %v586 = vld [vmem:[%s158 + $0x458] sm:$0xf]
        %v587 = vld [vmem:[%s158 + $0x45c] sm:$0xf]
        %v588 = vld [vmem:[%s158 + $0x460] sm:$0xf]
        %v589 = vld [vmem:[%s158 + $0x464] sm:$0xf]
        %v590 = vld [vmem:[%s158 + $0x468] sm:$0xf]
        %v591 = vld [vmem:[%s158 + $0x46c] sm:$0xf]
        %v592 = vld [vmem:[%s158 + $0x470] sm:$0xf]
        %v593 = vld [vmem:[%s158 + $0x474] sm:$0xf]
        %v594 = vld [vmem:[%s158 + $0x478] sm:$0xf]
        %v595 = vld [vmem:[%s158 + $0x47c] sm:$0xf]
        %v596 = vld [vmem:[%s158 + $0x480] sm:$0xf]
        %v597 = vld [vmem:[%s158 + $0x484] sm:$0xf]
        %v598 = vld [vmem:[%s158 + $0x488] sm:$0xf]
        %v599 = vld [vmem:[%s158 + $0x48c] sm:$0xf]
        %v600 = vld [vmem:[%s158 + $0x490] sm:$0xf]
        %v601 = vld [vmem:[%s158 + $0x494] sm:$0xf]
        %v602 = vld [vmem:[%s158 + $0x498] sm:$0xf]
        %v603 = vld [vmem:[%s158 + $0x49c] sm:$0xf]
        %v604 = vld [vmem:[%s158 + $0x4a0] sm:$0xf]
        %v605 = vld [vmem:[%s158 + $0x4a4] sm:$0xf]
        %v606 = vld [vmem:[%s158 + $0x4a8] sm:$0xf]
        %v607 = vld [vmem:[%s158 + $0x4ac] sm:$0xf]
        %v608 = vld [vmem:[%s158 + $0x4b0] sm:$0xf]
        %v609 = vld [vmem:[%s158 + $0x4b4] sm:$0xf]
        %v610 = vld [vmem:[%s158 + $0x4b8] sm:$0xf]
        %v611 = vld [vmem:[%s158 + $0x4bc] sm:$0xf]
        %v612 = vld [vmem:[%s158 + $0x4c0] sm:$0xf]
        %v613 = vld [vmem:[%s158 + $0x4c4] sm:$0xf]
        %v614 = vld [vmem:[%s158 + $0x4c8] sm:$0xf]
        %v615 = vld [vmem:[%s158 + $0x4cc] sm:$0xf]
        %v616 = vld [vmem:[%s158 + $0x4d0] sm:$0xf]
        %v617 = vld [vmem:[%s158 + $0x4d4] sm:$0xf]
        %v618 = vld [vmem:[%s158 + $0x4d8] sm:$0xf]
        %v619 = vld [vmem:[%s158 + $0x4dc] sm:$0xf]
        %v620 = vld [vmem:[%s158 + $0x4e0] sm:$0xf]
        %v621 = vld [vmem:[%s158 + $0x4e4] sm:$0xf]
        %v622 = vld [vmem:[%s158 + $0x4e8] sm:$0xf]
        %v623 = vld [vmem:[%s158 + $0x4ec] sm:$0xf]
        %v624 = vld [vmem:[%s158 + $0x4f0] sm:$0xf]
        %v625 = vld [vmem:[%s158 + $0x4f4] sm:$0xf]
        %v626 = vld [vmem:[%s158 + $0x4f8] sm:$0xf]
        %v627 = vld [vmem:[%s158 + $0x4fc] sm:$0xf]
        %v628 = vld [vmem:[%s158 + $0x500] sm:$0xf]
        %v629 = vld [vmem:[%s158 + $0x504] sm:$0xf]
        %v630 = vld [vmem:[%s158 + $0x508] sm:$0xf]
        %v631 = vld [vmem:[%s158 + $0x50c] sm:$0xf]
        %v632 = vld [vmem:[%s158 + $0x510] sm:$0xf]
        %v633 = vld [vmem:[%s158 + $0x514] sm:$0xf]
        %v634 = vld [vmem:[%s158 + $0x518] sm:$0xf]
        %v635 = vld [vmem:[%s158 + $0x51c] sm:$0xf]
        %v636 = vld [vmem:[%s158 + $0x520] sm:$0xf]
        %v637 = vld [vmem:[%s158 + $0x524] sm:$0xf]
        %v638 = vld [vmem:[%s158 + $0x528] sm:$0xf]
        %v639 = vld [vmem:[%s158 + $0x52c] sm:$0xf]
        %v640 = vld [vmem:[%s158 + $0x530] sm:$0xf]
        %v641 = vld [vmem:[%s158 + $0x534] sm:$0xf]
        %v642 = vld [vmem:[%s158 + $0x538] sm:$0xf]
        %v643 = vld [vmem:[%s158 + $0x53c] sm:$0xf]
        %v644 = vld [vmem:[%s158 + $0x540] sm:$0xf]
        %v645 = vld [vmem:[%s158 + $0x544] sm:$0xf]
        %v646 = vld [vmem:[%s158 + $0x548] sm:$0xf]
        %v647 = vld [vmem:[%s158 + $0x54c] sm:$0xf]
        %v648 = vld [vmem:[%s158 + $0x550] sm:$0xf]
        %v649 = vld [vmem:[%s158 + $0x554] sm:$0xf]
        %v650 = vld [vmem:[%s158 + $0x558] sm:$0xf]
        %v651 = vld [vmem:[%s158 + $0x55c] sm:$0xf]
        %v652 = vld [vmem:[%s158 + $0x560] sm:$0xf]
        %v653 = vld [vmem:[%s158 + $0x564] sm:$0xf]
        %v654 = vld [vmem:[%s158 + $0x568] sm:$0xf]
        %v655 = vld [vmem:[%s158 + $0x56c] sm:$0xf]
        %v656 = vld [vmem:[%s158 + $0x570] sm:$0xf]
        %v657 = vld [vmem:[%s158 + $0x574] sm:$0xf]
        %v658 = vld [vmem:[%s158 + $0x578] sm:$0xf]
        %v659 = vld [vmem:[%s158 + $0x57c] sm:$0xf]
        %v660 = vld [vmem:[%s158 + $0x580] sm:$0xf]
        %v661 = vld [vmem:[%s158 + $0x584] sm:$0xf]
        %v662 = vld [vmem:[%s158 + $0x588] sm:$0xf]
        %v663 = vld [vmem:[%s158 + $0x58c] sm:$0xf]
        %v664 = vld [vmem:[%s158 + $0x590] sm:$0xf]
        %v665 = vld [vmem:[%s158 + $0x594] sm:$0xf]
        %v666 = vld [vmem:[%s158 + $0x598] sm:$0xf]
        %v667 = vld [vmem:[%s158 + $0x59c] sm:$0xf]
        %v668 = vld [vmem:[%s158 + $0x5a0] sm:$0xf]
        %v669 = vld [vmem:[%s158 + $0x5a4] sm:$0xf]
        %v670 = vld [vmem:[%s158 + $0x5a8] sm:$0xf]
        %v671 = vld [vmem:[%s158 + $0x5ac] sm:$0xf]
        %v672 = vld [vmem:[%s158 + $0x5b0] sm:$0xf]
        %v673 = vld [vmem:[%s158 + $0x5b4] sm:$0xf]
        %v674 = vld [vmem:[%s158 + $0x5b8] sm:$0xf]
        %v675 = vld [vmem:[%s158 + $0x5bc] sm:$0xf]
        %v676 = vld [vmem:[%s158 + $0x5c0] sm:$0xf]
        %v677 = vld [vmem:[%s158 + $0x5c4] sm:$0xf]
        %v678 = vld [vmem:[%s158 + $0x5c8] sm:$0xf]
        %v679 = vld [vmem:[%s158 + $0x5cc] sm:$0xf]
        %v680 = vld [vmem:[%s158 + $0x5d0] sm:$0xf]
        %v681 = vld [vmem:[%s158 + $0x5d4] sm:$0xf]
        %v682 = vld [vmem:[%s158 + $0x5d8] sm:$0xf]
        %v683 = vld [vmem:[%s158 + $0x5dc] sm:$0xf]
        %v684 = vld [vmem:[%s158 + $0x5e0] sm:$0xf]
        %v685 = vld [vmem:[%s158 + $0x5e4] sm:$0xf]
        %v686 = vld [vmem:[%s158 + $0x5e8] sm:$0xf]
        %v687 = vld [vmem:[%s158 + $0x5ec] sm:$0xf]
        %v688 = vld [vmem:[%s158 + $0x5f0] sm:$0xf]
        %v689 = vld [vmem:[%s158 + $0x5f4] sm:$0xf]
        %v690 = vld [vmem:[%s158 + $0x5f8] sm:$0xf]
        %v691 = vld [vmem:[%s158 + $0x5fc] sm:$0xf]
        %v692 = vld [vmem:[%s158 + $0x600] sm:$0xf]
        %v693 = vld [vmem:[%s158 + $0x604] sm:$0xf]
        %v694 = vld [vmem:[%s158 + $0x608] sm:$0xf]
        %v695 = vld [vmem:[%s158 + $0x60c] sm:$0xf]
        %v696 = vld [vmem:[%s158 + $0x610] sm:$0xf]
        %v697 = vld [vmem:[%s158 + $0x614] sm:$0xf]
        %v698 = vld [vmem:[%s158 + $0x618] sm:$0xf]
        %v699 = vld [vmem:[%s158 + $0x61c] sm:$0xf]
        %v700 = vld [vmem:[%s158 + $0x620] sm:$0xf]
        %v701 = vld [vmem:[%s158 + $0x624] sm:$0xf]
        %v702 = vld [vmem:[%s158 + $0x628] sm:$0xf]
        %v703 = vld [vmem:[%s158 + $0x62c] sm:$0xf]
        %v704 = vld [vmem:[%s158 + $0x630] sm:$0xf]
        %v705 = vld [vmem:[%s158 + $0x634] sm:$0xf]
        %v706 = vld [vmem:[%s158 + $0x638] sm:$0xf]
        %v707 = vld [vmem:[%s158 + $0x63c] sm:$0xf]
        %v708 = vld [vmem:[%s158 + $0x640] sm:$0xf]
        %v709 = vld [vmem:[%s158 + $0x644] sm:$0xf]
        %v710 = vld [vmem:[%s158 + $0x648] sm:$0xf]
        %v711 = vld [vmem:[%s158 + $0x64c] sm:$0xf]
        %v712 = vld [vmem:[%s158 + $0x650] sm:$0xf]
        %v713 = vld [vmem:[%s158 + $0x654] sm:$0xf]
        %v714 = vld [vmem:[%s158 + $0x658] sm:$0xf]
        %v715 = vld [vmem:[%s158 + $0x65c] sm:$0xf]
        %v716 = vld [vmem:[%s158 + $0x660] sm:$0xf]
        %v717 = vld [vmem:[%s158 + $0x664] sm:$0xf]
        %v718 = vld [vmem:[%s158 + $0x668] sm:$0xf]
        %v719 = vld [vmem:[%s158 + $0x66c] sm:$0xf]
        %v720 = vld [vmem:[%s158 + $0x670] sm:$0xf]
        %v721 = vld [vmem:[%s158 + $0x674] sm:$0xf]
        %v722 = vld [vmem:[%s158 + $0x678] sm:$0xf]
        %v723 = vld [vmem:[%s158 + $0x67c] sm:$0xf]
        %v724 = vld [vmem:[%s158 + $0x680] sm:$0xf]
        %v725 = vld [vmem:[%s158 + $0x684] sm:$0xf]
        %v726 = vld [vmem:[%s158 + $0x688] sm:$0xf]
        %v727 = vld [vmem:[%s158 + $0x68c] sm:$0xf]
        %v728 = vld [vmem:[%s158 + $0x690] sm:$0xf]
        %v729 = vld [vmem:[%s158 + $0x694] sm:$0xf]
        %v730 = vld [vmem:[%s158 + $0x698] sm:$0xf]
        %v731 = vld [vmem:[%s158 + $0x69c] sm:$0xf]
        %v732 = vld [vmem:[%s158 + $0x6a0] sm:$0xf]
        %v733 = vld [vmem:[%s158 + $0x6a4] sm:$0xf]
        %v734 = vld [vmem:[%s158 + $0x6a8] sm:$0xf]
        %v735 = vld [vmem:[%s158 + $0x6ac] sm:$0xf]
        %v736 = vld [vmem:[%s158 + $0x6b0] sm:$0xf]
        %v737 = vld [vmem:[%s158 + $0x6b4] sm:$0xf]
        %v738 = vld [vmem:[%s158 + $0x6b8] sm:$0xf]
        %v739 = vld [vmem:[%s158 + $0x6bc] sm:$0xf]
        %v740 = vld [vmem:[%s158 + $0x6c0] sm:$0xf]
        %v741 = vld [vmem:[%s158 + $0x6c4] sm:$0xf]
        %v742 = vld [vmem:[%s158 + $0x6c8] sm:$0xf]
        %v743 = vld [vmem:[%s158 + $0x6cc] sm:$0xf]
        %v744 = vld [vmem:[%s158 + $0x6d0] sm:$0xf]
        %v745 = vld [vmem:[%s158 + $0x6d4] sm:$0xf]
        %v746 = vld [vmem:[%s158 + $0x6d8] sm:$0xf]
        %v747 = vld [vmem:[%s158 + $0x6dc] sm:$0xf]
        %v748 = vld [vmem:[%s158 + $0x6e0] sm:$0xf]
        %v749 = vld [vmem:[%s158 + $0x6e4] sm:$0xf]
        %v750 = vld [vmem:[%s158 + $0x6e8] sm:$0xf]
        %v751 = vld [vmem:[%s158 + $0x6ec] sm:$0xf]
        %v752 = vld [vmem:[%s158 + $0x6f0] sm:$0xf]
        %v753 = vld [vmem:[%s158 + $0x6f4] sm:$0xf]
        %v754 = vld [vmem:[%s158 + $0x6f8] sm:$0xf]
        %v755 = vld [vmem:[%s158 + $0x6fc] sm:$0xf]
        %v756 = vld [vmem:[%s158 + $0x700] sm:$0xf]
        %v757 = vld [vmem:[%s158 + $0x704] sm:$0xf]
        %v758 = vld [vmem:[%s158 + $0x708] sm:$0xf]
        %v759 = vld [vmem:[%s158 + $0x70c] sm:$0xf]
        %v760 = vld [vmem:[%s158 + $0x710] sm:$0xf]
        %v761 = vld [vmem:[%s158 + $0x714] sm:$0xf]
        %v762 = vld [vmem:[%s158 + $0x718] sm:$0xf]
        %v763 = vld [vmem:[%s158 + $0x71c] sm:$0xf]
        %v764 = vld [vmem:[%s158 + $0x720] sm:$0xf]
        %v765 = vld [vmem:[%s158 + $0x724] sm:$0xf]
        %v766 = vld [vmem:[%s158 + $0x728] sm:$0xf]
        %v767 = vld [vmem:[%s158 + $0x72c] sm:$0xf]
        %v768 = vld [vmem:[%s158 + $0x730] sm:$0xf]
        %v769 = vld [vmem:[%s158 + $0x734] sm:$0xf]
        %v770 = vld [vmem:[%s158 + $0x738] sm:$0xf]
        %v771 = vld [vmem:[%s158 + $0x73c] sm:$0xf]
        %v772 = vld [vmem:[%s158 + $0x740] sm:$0xf]
        %v773 = vld [vmem:[%s158 + $0x744] sm:$0xf]
        %v774 = vld [vmem:[%s158 + $0x748] sm:$0xf]
        %v775 = vld [vmem:[%s158 + $0x74c] sm:$0xf]
        %v776 = vld [vmem:[%s158 + $0x750] sm:$0xf]
        %v777 = vld [vmem:[%s158 + $0x754] sm:$0xf]
        %v778 = vld [vmem:[%s158 + $0x758] sm:$0xf]
        %v779 = vld [vmem:[%s158 + $0x75c] sm:$0xf]
        %v780 = vld [vmem:[%s158 + $0x760] sm:$0xf]
        %v781 = vld [vmem:[%s158 + $0x764] sm:$0xf]
        %v782 = vld [vmem:[%s158 + $0x768] sm:$0xf]
        %v783 = vld [vmem:[%s158 + $0x76c] sm:$0xf]
        %v784 = vld [vmem:[%s158 + $0x770] sm:$0xf]
        %v785 = vld [vmem:[%s158 + $0x774] sm:$0xf]
        %v786 = vld [vmem:[%s158 + $0x778] sm:$0xf]
        %v787 = vld [vmem:[%s158 + $0x77c] sm:$0xf]
        %v788 = vld [vmem:[%s158 + $0x780] sm:$0xf]
        %v789 = vld [vmem:[%s158 + $0x784] sm:$0xf]
        %v790 = vld [vmem:[%s158 + $0x788] sm:$0xf]
        %v791 = vld [vmem:[%s158 + $0x78c] sm:$0xf]
        %v792 = vld [vmem:[%s158 + $0x790] sm:$0xf]
        %v793 = vld [vmem:[%s158 + $0x794] sm:$0xf]
        %v794 = vld [vmem:[%s158 + $0x798] sm:$0xf]
        %v795 = vld [vmem:[%s158 + $0x79c] sm:$0xf]
        %v796 = vld [vmem:[%s158 + $0x7a0] sm:$0xf]
        %v797 = vld [vmem:[%s158 + $0x7a4] sm:$0xf]
        %v798 = vld [vmem:[%s158 + $0x7a8] sm:$0xf]
        %v799 = vld [vmem:[%s158 + $0x7ac] sm:$0xf]
        %v800 = vld [vmem:[%s158 + $0x7b0] sm:$0xf]
        %v801 = vld [vmem:[%s158 + $0x7b4] sm:$0xf]
        %v802 = vld [vmem:[%s158 + $0x7b8] sm:$0xf]
        %v803 = vld [vmem:[%s158 + $0x7bc] sm:$0xf]
        %v804 = vld [vmem:[%s158 + $0x7c0] sm:$0xf]
        %v805 = vld [vmem:[%s158 + $0x7c4] sm:$0xf]
        %v806 = vld [vmem:[%s158 + $0x7c8] sm:$0xf]
        %v807 = vld [vmem:[%s158 + $0x7cc] sm:$0xf]
        %v808 = vld [vmem:[%s158 + $0x7d0] sm:$0xf]
        %v809 = vld [vmem:[%s158 + $0x7d4] sm:$0xf]
        %v810 = vld [vmem:[%s158 + $0x7d8] sm:$0xf]
        %v811 = vld [vmem:[%s158 + $0x7dc] sm:$0xf]
        %v812 = vld [vmem:[%s158 + $0x7e0] sm:$0xf]
        %v813 = vld [vmem:[%s158 + $0x7e4] sm:$0xf]
        %v814 = vld [vmem:[%s158 + $0x7e8] sm:$0xf]
        %v815 = vld [vmem:[%s158 + $0x7ec] sm:$0xf]
        %v816 = vld [vmem:[%s158 + $0x7f0] sm:$0xf]
        %v817 = vld [vmem:[%s158 + $0x7f4] sm:$0xf]
        %v818 = vld [vmem:[%s158 + $0x7f8] sm:$0xf]
        %v819 = vld [vmem:[%s158 + $0x7fc] sm:$0xf]
        %v948 = vunpack.c.l.b16 %v180
        %v949 = vunpack.c.h.b16 %v180
        %v950 = vunpack.c.l.b16 %v181
        %v951 = vunpack.c.h.b16 %v181
        %v952 = vunpack.c.l.b16 %v182
        %v953 = vunpack.c.h.b16 %v182
        %v954 = vunpack.c.l.b16 %v183
        %v955 = vunpack.c.h.b16 %v183
        %v956 = vunpack.c.l.b16 %v184
        %v957 = vunpack.c.h.b16 %v184
        %v958 = vunpack.c.l.b16 %v185
        %v959 = vunpack.c.h.b16 %v185
        %v960 = vunpack.c.l.b16 %v186
        %v961 = vunpack.c.h.b16 %v186
        %v962 = vunpack.c.l.b16 %v187
        %v963 = vunpack.c.h.b16 %v187
        %v964 = vunpack.c.l.b16 %v188
        %v965 = vunpack.c.h.b16 %v188
        %v966 = vunpack.c.l.b16 %v189
        %v967 = vunpack.c.h.b16 %v189
        %v968 = vunpack.c.l.b16 %v190
        %v969 = vunpack.c.h.b16 %v190
        %v970 = vunpack.c.l.b16 %v191
        %v971 = vunpack.c.h.b16 %v191
        %v972 = vunpack.c.l.b16 %v192
        %v973 = vunpack.c.h.b16 %v192
        %v974 = vunpack.c.l.b16 %v193
        %v975 = vunpack.c.h.b16 %v193
        %v976 = vunpack.c.l.b16 %v194
        %v977 = vunpack.c.h.b16 %v194
        %v978 = vunpack.c.l.b16 %v195
        %v979 = vunpack.c.h.b16 %v195
        %v980 = vunpack.c.l.b16 %v196
        %v981 = vunpack.c.h.b16 %v196
        %v982 = vunpack.c.l.b16 %v197
        %v983 = vunpack.c.h.b16 %v197
        %v984 = vunpack.c.l.b16 %v198
        %v985 = vunpack.c.h.b16 %v198
        %v986 = vunpack.c.l.b16 %v199
        %v987 = vunpack.c.h.b16 %v199
        %v988 = vunpack.c.l.b16 %v200
        %v989 = vunpack.c.h.b16 %v200
        %v990 = vunpack.c.l.b16 %v201
        %v991 = vunpack.c.h.b16 %v201
        %v992 = vunpack.c.l.b16 %v202
        %v993 = vunpack.c.h.b16 %v202
        %v994 = vunpack.c.l.b16 %v203
        %v995 = vunpack.c.h.b16 %v203
        %v996 = vunpack.c.l.b16 %v204
        %v997 = vunpack.c.h.b16 %v204
        %v998 = vunpack.c.l.b16 %v205
        %v999 = vunpack.c.h.b16 %v205
        %v1000 = vunpack.c.l.b16 %v206
        %v1001 = vunpack.c.h.b16 %v206
        %v1002 = vunpack.c.l.b16 %v207
        %v1003 = vunpack.c.h.b16 %v207
        %v1004 = vunpack.c.l.b16 %v208
        %v1005 = vunpack.c.h.b16 %v208
        %v1006 = vunpack.c.l.b16 %v209
        %v1007 = vunpack.c.h.b16 %v209
        %v1008 = vunpack.c.l.b16 %v210
        %v1009 = vunpack.c.h.b16 %v210
        %v1010 = vunpack.c.l.b16 %v211
        %v1011 = vunpack.c.h.b16 %v211
        %v1012 = vunpack.c.l.b16 %v212
        %v1013 = vunpack.c.h.b16 %v212
        %v1014 = vunpack.c.l.b16 %v213
        %v1015 = vunpack.c.h.b16 %v213
        %v1016 = vunpack.c.l.b16 %v214
        %v1017 = vunpack.c.h.b16 %v214
        %v1018 = vunpack.c.l.b16 %v215
        %v1019 = vunpack.c.h.b16 %v215
        %v1020 = vunpack.c.l.b16 %v216
        %v1021 = vunpack.c.h.b16 %v216
        %v1022 = vunpack.c.l.b16 %v217
        %v1023 = vunpack.c.h.b16 %v217
        %v1024 = vunpack.c.l.b16 %v218
        %v1025 = vunpack.c.h.b16 %v218
        %v1026 = vunpack.c.l.b16 %v219
        %v1027 = vunpack.c.h.b16 %v219
        %v1028 = vunpack.c.l.b16 %v220
        %v1029 = vunpack.c.h.b16 %v220
        %v1030 = vunpack.c.l.b16 %v221
        %v1031 = vunpack.c.h.b16 %v221
        %v1032 = vunpack.c.l.b16 %v222
        %v1033 = vunpack.c.h.b16 %v222
        %v1034 = vunpack.c.l.b16 %v223
        %v1035 = vunpack.c.h.b16 %v223
        %v1036 = vunpack.c.l.b16 %v224
        %v1037 = vunpack.c.h.b16 %v224
        %v1038 = vunpack.c.l.b16 %v225
        %v1039 = vunpack.c.h.b16 %v225
        %v1040 = vunpack.c.l.b16 %v226
        %v1041 = vunpack.c.h.b16 %v226
        %v1042 = vunpack.c.l.b16 %v227
        %v1043 = vunpack.c.h.b16 %v227
        %v1044 = vunpack.c.l.b16 %v228
        %v1045 = vunpack.c.h.b16 %v228
        %v1046 = vunpack.c.l.b16 %v229
        %v1047 = vunpack.c.h.b16 %v229
        %v1048 = vunpack.c.l.b16 %v230
        %v1049 = vunpack.c.h.b16 %v230
        %v1050 = vunpack.c.l.b16 %v231
        %v1051 = vunpack.c.h.b16 %v231
        %v1052 = vunpack.c.l.b16 %v232
        %v1053 = vunpack.c.h.b16 %v232
        %v1054 = vunpack.c.l.b16 %v233
        %v1055 = vunpack.c.h.b16 %v233
        %v1056 = vunpack.c.l.b16 %v234
        %v1057 = vunpack.c.h.b16 %v234
        %v1058 = vunpack.c.l.b16 %v235
        %v1059 = vunpack.c.h.b16 %v235
        %v1060 = vunpack.c.l.b16 %v236
        %v1061 = vunpack.c.h.b16 %v236
        %v1062 = vunpack.c.l.b16 %v237
        %v1063 = vunpack.c.h.b16 %v237
        %v1064 = vunpack.c.l.b16 %v238
        %v1065 = vunpack.c.h.b16 %v238
        %v1066 = vunpack.c.l.b16 %v239
        %v1067 = vunpack.c.h.b16 %v239
        %v1068 = vunpack.c.l.b16 %v240
        %v1069 = vunpack.c.h.b16 %v240
        %v1070 = vunpack.c.l.b16 %v241
        %v1071 = vunpack.c.h.b16 %v241
        %v1072 = vunpack.c.l.b16 %v242
        %v1073 = vunpack.c.h.b16 %v242
        %v1074 = vunpack.c.l.b16 %v243
        %v1075 = vunpack.c.h.b16 %v243
        %v1076 = vunpack.c.l.b16 %v244
        %v1077 = vunpack.c.h.b16 %v244
        %v1078 = vunpack.c.l.b16 %v245
        %v1079 = vunpack.c.h.b16 %v245
        %v1080 = vunpack.c.l.b16 %v246
        %v1081 = vunpack.c.h.b16 %v246
        %v1082 = vunpack.c.l.b16 %v247
        %v1083 = vunpack.c.h.b16 %v247
        %v1084 = vunpack.c.l.b16 %v248
        %v1085 = vunpack.c.h.b16 %v248
        %v1086 = vunpack.c.l.b16 %v249
        %v1087 = vunpack.c.h.b16 %v249
        %v1088 = vunpack.c.l.b16 %v250
        %v1089 = vunpack.c.h.b16 %v250
        %v1090 = vunpack.c.l.b16 %v251
        %v1091 = vunpack.c.h.b16 %v251
        %v1092 = vunpack.c.l.b16 %v252
        %v1093 = vunpack.c.h.b16 %v252
        %v1094 = vunpack.c.l.b16 %v253
        %v1095 = vunpack.c.h.b16 %v253
        %v1096 = vunpack.c.l.b16 %v254
        %v1097 = vunpack.c.h.b16 %v254
        %v1098 = vunpack.c.l.b16 %v255
        %v1099 = vunpack.c.h.b16 %v255
        %v1100 = vunpack.c.l.b16 %v256
        %v1101 = vunpack.c.h.b16 %v256
        %v1102 = vunpack.c.l.b16 %v257
        %v1103 = vunpack.c.h.b16 %v257
        %v1104 = vunpack.c.l.b16 %v258
        %v1105 = vunpack.c.h.b16 %v258
        %v1106 = vunpack.c.l.b16 %v259
        %v1107 = vunpack.c.h.b16 %v259
        %v1108 = vunpack.c.l.b16 %v260
        %v1109 = vunpack.c.h.b16 %v260
        %v1110 = vunpack.c.l.b16 %v261
        %v1111 = vunpack.c.h.b16 %v261
        %v1112 = vunpack.c.l.b16 %v262
        %v1113 = vunpack.c.h.b16 %v262
        %v1114 = vunpack.c.l.b16 %v263
        %v1115 = vunpack.c.h.b16 %v263
        %v1116 = vunpack.c.l.b16 %v264
        %v1117 = vunpack.c.h.b16 %v264
        %v1118 = vunpack.c.l.b16 %v265
        %v1119 = vunpack.c.h.b16 %v265
        %v1120 = vunpack.c.l.b16 %v266
        %v1121 = vunpack.c.h.b16 %v266
        %v1122 = vunpack.c.l.b16 %v267
        %v1123 = vunpack.c.h.b16 %v267
        %v1124 = vunpack.c.l.b16 %v268
        %v1125 = vunpack.c.h.b16 %v268
        %v1126 = vunpack.c.l.b16 %v269
        %v1127 = vunpack.c.h.b16 %v269
        %v1128 = vunpack.c.l.b16 %v270
        %v1129 = vunpack.c.h.b16 %v270
        %v1130 = vunpack.c.l.b16 %v271
        %v1131 = vunpack.c.h.b16 %v271
        %v1132 = vunpack.c.l.b16 %v272
        %v1133 = vunpack.c.h.b16 %v272
        %v1134 = vunpack.c.l.b16 %v273
        %v1135 = vunpack.c.h.b16 %v273
        %v1136 = vunpack.c.l.b16 %v274
        %v1137 = vunpack.c.h.b16 %v274
        %v1138 = vunpack.c.l.b16 %v275
        %v1139 = vunpack.c.h.b16 %v275
        %v1140 = vunpack.c.l.b16 %v276
        %v1141 = vunpack.c.h.b16 %v276
        %v1142 = vunpack.c.l.b16 %v277
        %v1143 = vunpack.c.h.b16 %v277
        %v1144 = vunpack.c.l.b16 %v278
        %v1145 = vunpack.c.h.b16 %v278
        %v1146 = vunpack.c.l.b16 %v279
        %v1147 = vunpack.c.h.b16 %v279
        %v1148 = vunpack.c.l.b16 %v280
        %v1149 = vunpack.c.h.b16 %v280
        %v1150 = vunpack.c.l.b16 %v281
        %v1151 = vunpack.c.h.b16 %v281
        %v1152 = vunpack.c.l.b16 %v282
        %v1153 = vunpack.c.h.b16 %v282
        %v1154 = vunpack.c.l.b16 %v283
        %v1155 = vunpack.c.h.b16 %v283
        %v1156 = vunpack.c.l.b16 %v284
        %v1157 = vunpack.c.h.b16 %v284
        %v1158 = vunpack.c.l.b16 %v285
        %v1159 = vunpack.c.h.b16 %v285
        %v1160 = vunpack.c.l.b16 %v286
        %v1161 = vunpack.c.h.b16 %v286
        %v1162 = vunpack.c.l.b16 %v287
        %v1163 = vunpack.c.h.b16 %v287
        %v1164 = vunpack.c.l.b16 %v288
        %v1165 = vunpack.c.h.b16 %v288
        %v1166 = vunpack.c.l.b16 %v289
        %v1167 = vunpack.c.h.b16 %v289
        %v1168 = vunpack.c.l.b16 %v290
        %v1169 = vunpack.c.h.b16 %v290
        %v1170 = vunpack.c.l.b16 %v291
        %v1171 = vunpack.c.h.b16 %v291
        %v1172 = vunpack.c.l.b16 %v292
        %v1173 = vunpack.c.h.b16 %v292
        %v1174 = vunpack.c.l.b16 %v293
        %v1175 = vunpack.c.h.b16 %v293
        %v1176 = vunpack.c.l.b16 %v294
        %v1177 = vunpack.c.h.b16 %v294
        %v1178 = vunpack.c.l.b16 %v295
        %v1179 = vunpack.c.h.b16 %v295
        %v1180 = vunpack.c.l.b16 %v296
        %v1181 = vunpack.c.h.b16 %v296
        %v1182 = vunpack.c.l.b16 %v297
        %v1183 = vunpack.c.h.b16 %v297
        %v1184 = vunpack.c.l.b16 %v298
        %v1185 = vunpack.c.h.b16 %v298
        %v1186 = vunpack.c.l.b16 %v299
        %v1187 = vunpack.c.h.b16 %v299
        %v1188 = vunpack.c.l.b16 %v300
        %v1189 = vunpack.c.h.b16 %v300
        %v1190 = vunpack.c.l.b16 %v301
        %v1191 = vunpack.c.h.b16 %v301
        %v1192 = vunpack.c.l.b16 %v302
        %v1193 = vunpack.c.h.b16 %v302
        %v1194 = vunpack.c.l.b16 %v303
        %v1195 = vunpack.c.h.b16 %v303
        %v1196 = vunpack.c.l.b16 %v304
        %v1197 = vunpack.c.h.b16 %v304
        %v1198 = vunpack.c.l.b16 %v305
        %v1199 = vunpack.c.h.b16 %v305
        %v1200 = vunpack.c.l.b16 %v306
        %v1201 = vunpack.c.h.b16 %v306
        %v1202 = vunpack.c.l.b16 %v307
        %v1203 = vunpack.c.h.b16 %v307
        %v1204 = vpack.c.b16 %v980, %v948
        %v1205 = vpack.c.b16 %v981, %v949
        %v1206 = vpack.c.b16 %v982, %v950
        %v1207 = vpack.c.b16 %v983, %v951
        %v1208 = vpack.c.b16 %v984, %v952
        %v1209 = vpack.c.b16 %v985, %v953
        %v1210 = vpack.c.b16 %v986, %v954
        %v1211 = vpack.c.b16 %v987, %v955
        %v1212 = vpack.c.b16 %v988, %v956
        %v1213 = vpack.c.b16 %v989, %v957
        %v1214 = vpack.c.b16 %v990, %v958
        %v1215 = vpack.c.b16 %v991, %v959
        %v1216 = vpack.c.b16 %v992, %v960
        %v1217 = vpack.c.b16 %v993, %v961
        %v1218 = vpack.c.b16 %v994, %v962
        %v1219 = vpack.c.b16 %v995, %v963
        %v1220 = vpack.c.b16 %v996, %v964
        %v1221 = vpack.c.b16 %v997, %v965
        %v1222 = vpack.c.b16 %v998, %v966
        %v1223 = vpack.c.b16 %v999, %v967
        %v1224 = vpack.c.b16 %v1000, %v968
        %v1225 = vpack.c.b16 %v1001, %v969
        %v1226 = vpack.c.b16 %v1002, %v970
        %v1227 = vpack.c.b16 %v1003, %v971
        %v1228 = vpack.c.b16 %v1004, %v972
        %v1229 = vpack.c.b16 %v1005, %v973
        %v1230 = vpack.c.b16 %v1006, %v974
        %v1231 = vpack.c.b16 %v1007, %v975
        %v1232 = vpack.c.b16 %v1008, %v976
        %v1233 = vpack.c.b16 %v1009, %v977
        %v1234 = vpack.c.b16 %v1010, %v978
        %v1235 = vpack.c.b16 %v1011, %v979
        %v1236 = vpack.c.b16 %v1044, %v1012
        %v1237 = vpack.c.b16 %v1045, %v1013
        %v1238 = vpack.c.b16 %v1046, %v1014
        %v1239 = vpack.c.b16 %v1047, %v1015
        %v1240 = vpack.c.b16 %v1048, %v1016
        %v1241 = vpack.c.b16 %v1049, %v1017
        %v1242 = vpack.c.b16 %v1050, %v1018
        %v1243 = vpack.c.b16 %v1051, %v1019
        %v1244 = vpack.c.b16 %v1052, %v1020
        %v1245 = vpack.c.b16 %v1053, %v1021
        %v1246 = vpack.c.b16 %v1054, %v1022
        %v1247 = vpack.c.b16 %v1055, %v1023
        %v1248 = vpack.c.b16 %v1056, %v1024
        %v1249 = vpack.c.b16 %v1057, %v1025
        %v1250 = vpack.c.b16 %v1058, %v1026
        %v1251 = vpack.c.b16 %v1059, %v1027
        %v1252 = vpack.c.b16 %v1060, %v1028
        %v1253 = vpack.c.b16 %v1061, %v1029
        %v1254 = vpack.c.b16 %v1062, %v1030
        %v1255 = vpack.c.b16 %v1063, %v1031
        %v1256 = vpack.c.b16 %v1064, %v1032
        %v1257 = vpack.c.b16 %v1065, %v1033
        %v1258 = vpack.c.b16 %v1066, %v1034
        %v1259 = vpack.c.b16 %v1067, %v1035
        %v1260 = vpack.c.b16 %v1068, %v1036
        %v1261 = vpack.c.b16 %v1069, %v1037
        %v1262 = vpack.c.b16 %v1070, %v1038
        %v1263 = vpack.c.b16 %v1071, %v1039
        %v1264 = vpack.c.b16 %v1072, %v1040
        %v1265 = vpack.c.b16 %v1073, %v1041
        %v1266 = vpack.c.b16 %v1074, %v1042
        %v1267 = vpack.c.b16 %v1075, %v1043
        %v1268 = vpack.c.b16 %v1108, %v1076
        %v1269 = vpack.c.b16 %v1109, %v1077
        %v1270 = vpack.c.b16 %v1110, %v1078
        %v1271 = vpack.c.b16 %v1111, %v1079
        %v1272 = vpack.c.b16 %v1112, %v1080
        %v1273 = vpack.c.b16 %v1113, %v1081
        %v1274 = vpack.c.b16 %v1114, %v1082
        %v1275 = vpack.c.b16 %v1115, %v1083
        %v1276 = vpack.c.b16 %v1116, %v1084
        %v1277 = vpack.c.b16 %v1117, %v1085
        %v1278 = vpack.c.b16 %v1118, %v1086
        %v1279 = vpack.c.b16 %v1119, %v1087
        %v1280 = vpack.c.b16 %v1120, %v1088
        %v1281 = vpack.c.b16 %v1121, %v1089
        %v1282 = vpack.c.b16 %v1122, %v1090
        %v1283 = vpack.c.b16 %v1123, %v1091
        %v1284 = vpack.c.b16 %v1124, %v1092
        %v1285 = vpack.c.b16 %v1125, %v1093
        %v1286 = vpack.c.b16 %v1126, %v1094
        %v1287 = vpack.c.b16 %v1127, %v1095
        %v1288 = vpack.c.b16 %v1128, %v1096
        %v1289 = vpack.c.b16 %v1129, %v1097
        %v1290 = vpack.c.b16 %v1130, %v1098
        %v1291 = vpack.c.b16 %v1131, %v1099
        %v1292 = vpack.c.b16 %v1132, %v1100
        %v1293 = vpack.c.b16 %v1133, %v1101
        %v1294 = vpack.c.b16 %v1134, %v1102
        %v1295 = vpack.c.b16 %v1135, %v1103
        %v1296 = vpack.c.b16 %v1136, %v1104
        %v1297 = vpack.c.b16 %v1137, %v1105
        %v1298 = vpack.c.b16 %v1138, %v1106
        %v1299 = vpack.c.b16 %v1139, %v1107
        %v1300 = vpack.c.b16 %v1172, %v1140
        %v1301 = vpack.c.b16 %v1173, %v1141
        %v1302 = vpack.c.b16 %v1174, %v1142
        %v1303 = vpack.c.b16 %v1175, %v1143
        %v1304 = vpack.c.b16 %v1176, %v1144
        %v1305 = vpack.c.b16 %v1177, %v1145
        %v1306 = vpack.c.b16 %v1178, %v1146
        %v1307 = vpack.c.b16 %v1179, %v1147
        %v1308 = vpack.c.b16 %v1180, %v1148
        %v1309 = vpack.c.b16 %v1181, %v1149
        %v1310 = vpack.c.b16 %v1182, %v1150
        %v1311 = vpack.c.b16 %v1183, %v1151
        %v1312 = vpack.c.b16 %v1184, %v1152
        %v1313 = vpack.c.b16 %v1185, %v1153
        %v1314 = vpack.c.b16 %v1186, %v1154
        %v1315 = vpack.c.b16 %v1187, %v1155
        %v1316 = vpack.c.b16 %v1188, %v1156
        %v1317 = vpack.c.b16 %v1189, %v1157
        %v1318 = vpack.c.b16 %v1190, %v1158
        %v1319 = vpack.c.b16 %v1191, %v1159
        %v1320 = vpack.c.b16 %v1192, %v1160
        %v1321 = vpack.c.b16 %v1193, %v1161
        %v1322 = vpack.c.b16 %v1194, %v1162
        %v1323 = vpack.c.b16 %v1195, %v1163
        %v1324 = vpack.c.b16 %v1196, %v1164
        %v1325 = vpack.c.b16 %v1197, %v1165
        %v1326 = vpack.c.b16 %v1198, %v1166
        %v1327 = vpack.c.b16 %v1199, %v1167
        %v1328 = vpack.c.b16 %v1200, %v1168
        %v1329 = vpack.c.b16 %v1201, %v1169
        %v1330 = vpack.c.b16 %v1202, %v1170
        %v1331 = vpack.c.b16 %v1203, %v1171
        %v1972 = vunpack.c.l.b16 %v308
        %v1973 = vunpack.c.l.b16 %v309
        %v1974 = vunpack.c.l.b16 %v310
        %v1975 = vunpack.c.l.b16 %v311
        %v1976 = vunpack.c.l.b16 %v312
        %v1977 = vunpack.c.l.b16 %v313
        %v1978 = vunpack.c.l.b16 %v314
        %v1979 = vunpack.c.l.b16 %v315
        %v1980 = vunpack.c.l.b16 %v316
        %v1981 = vunpack.c.l.b16 %v317
        %v1982 = vunpack.c.l.b16 %v318
        %v1983 = vunpack.c.l.b16 %v319
        %v1984 = vunpack.c.l.b16 %v320
        %v1985 = vunpack.c.l.b16 %v321
        %v1986 = vunpack.c.l.b16 %v322
        %v1987 = vunpack.c.l.b16 %v323
        %v1988 = vunpack.c.l.b16 %v324
        %v1989 = vunpack.c.l.b16 %v325
        %v1990 = vunpack.c.l.b16 %v326
        %v1991 = vunpack.c.l.b16 %v327
        %v1992 = vunpack.c.l.b16 %v328
        %v1993 = vunpack.c.l.b16 %v329
        %v1994 = vunpack.c.l.b16 %v330
        %v1995 = vunpack.c.l.b16 %v331
        %v1996 = vunpack.c.l.b16 %v332
        %v1997 = vunpack.c.l.b16 %v333
        %v1998 = vunpack.c.l.b16 %v334
        %v1999 = vunpack.c.l.b16 %v335
        %v2000 = vunpack.c.l.b16 %v336
        %v2001 = vunpack.c.l.b16 %v337
        %v2002 = vunpack.c.l.b16 %v338
        %v2003 = vunpack.c.l.b16 %v339
        %v2004 = vunpack.c.l.b16 %v340
        %v2005 = vunpack.c.l.b16 %v341
        %v2006 = vunpack.c.l.b16 %v342
        %v2007 = vunpack.c.l.b16 %v343
        %v2008 = vunpack.c.l.b16 %v344
        %v2009 = vunpack.c.l.b16 %v345
        %v2010 = vunpack.c.l.b16 %v346
        %v2011 = vunpack.c.l.b16 %v347
        %v2012 = vunpack.c.l.b16 %v348
        %v2013 = vunpack.c.l.b16 %v349
        %v2014 = vunpack.c.l.b16 %v350
        %v2015 = vunpack.c.l.b16 %v351
        %v2016 = vunpack.c.l.b16 %v352
        %v2017 = vunpack.c.l.b16 %v353
        %v2018 = vunpack.c.l.b16 %v354
        %v2019 = vunpack.c.l.b16 %v355
        %v2020 = vunpack.c.l.b16 %v356
        %v2021 = vunpack.c.l.b16 %v357
        %v2022 = vunpack.c.l.b16 %v358
        %v2023 = vunpack.c.l.b16 %v359
        %v2024 = vunpack.c.l.b16 %v360
        %v2025 = vunpack.c.l.b16 %v361
        %v2026 = vunpack.c.l.b16 %v362
        %v2027 = vunpack.c.l.b16 %v363
        %v2028 = vunpack.c.l.b16 %v364
        %v2029 = vunpack.c.l.b16 %v365
        %v2030 = vunpack.c.l.b16 %v366
        %v2031 = vunpack.c.l.b16 %v367
        %v2032 = vunpack.c.l.b16 %v368
        %v2033 = vunpack.c.l.b16 %v369
        %v2034 = vunpack.c.l.b16 %v370
        %v2035 = vunpack.c.l.b16 %v371
        %v2036 = vunpack.c.l.b16 %v372
        %v2037 = vunpack.c.l.b16 %v373
        %v2038 = vunpack.c.l.b16 %v374
        %v2039 = vunpack.c.l.b16 %v375
        %v2040 = vunpack.c.l.b16 %v376
        %v2041 = vunpack.c.l.b16 %v377
        %v2042 = vunpack.c.l.b16 %v378
        %v2043 = vunpack.c.l.b16 %v379
        %v2044 = vunpack.c.l.b16 %v380
        %v2045 = vunpack.c.l.b16 %v381
        %v2046 = vunpack.c.l.b16 %v382
        %v2047 = vunpack.c.l.b16 %v383
        %v2048 = vunpack.c.l.b16 %v384
        %v2049 = vunpack.c.l.b16 %v385
        %v2050 = vunpack.c.l.b16 %v386
        %v2051 = vunpack.c.l.b16 %v387
        %v2052 = vunpack.c.l.b16 %v388
        %v2053 = vunpack.c.l.b16 %v389
        %v2054 = vunpack.c.l.b16 %v390
        %v2055 = vunpack.c.l.b16 %v391
        %v2056 = vunpack.c.l.b16 %v392
        %v2057 = vunpack.c.l.b16 %v393
        %v2058 = vunpack.c.l.b16 %v394
        %v2059 = vunpack.c.l.b16 %v395
        %v2060 = vunpack.c.l.b16 %v396
        %v2061 = vunpack.c.l.b16 %v397
        %v2062 = vunpack.c.l.b16 %v398
        %v2063 = vunpack.c.l.b16 %v399
        %v2064 = vunpack.c.l.b16 %v400
        %v2065 = vunpack.c.l.b16 %v401
        %v2066 = vunpack.c.l.b16 %v402
        %v2067 = vunpack.c.l.b16 %v403
        %v2068 = vunpack.c.l.b16 %v404
        %v2069 = vunpack.c.l.b16 %v405
        %v2070 = vunpack.c.l.b16 %v406
        %v2071 = vunpack.c.l.b16 %v407
        %v2072 = vunpack.c.l.b16 %v408
        %v2073 = vunpack.c.l.b16 %v409
        %v2074 = vunpack.c.l.b16 %v410
        %v2075 = vunpack.c.l.b16 %v411
        %v2076 = vunpack.c.l.b16 %v412
        %v2077 = vunpack.c.l.b16 %v413
        %v2078 = vunpack.c.l.b16 %v414
        %v2079 = vunpack.c.l.b16 %v415
        %v2080 = vunpack.c.l.b16 %v416
        %v2081 = vunpack.c.l.b16 %v417
        %v2082 = vunpack.c.l.b16 %v418
        %v2083 = vunpack.c.l.b16 %v419
        %v2084 = vunpack.c.l.b16 %v420
        %v2085 = vunpack.c.l.b16 %v421
        %v2086 = vunpack.c.l.b16 %v422
        %v2087 = vunpack.c.l.b16 %v423
        %v2088 = vunpack.c.l.b16 %v424
        %v2089 = vunpack.c.l.b16 %v425
        %v2090 = vunpack.c.l.b16 %v426
        %v2091 = vunpack.c.l.b16 %v427
        %v2092 = vunpack.c.l.b16 %v428
        %v2093 = vunpack.c.l.b16 %v429
        %v2094 = vunpack.c.l.b16 %v430
        %v2095 = vunpack.c.l.b16 %v431
        %v2096 = vunpack.c.l.b16 %v432
        %v2097 = vunpack.c.l.b16 %v433
        %v2098 = vunpack.c.l.b16 %v434
        %v2099 = vunpack.c.l.b16 %v435
        %v2100 = vunpack.c.l.b16 %v436
        %v2101 = vunpack.c.l.b16 %v437
        %v2102 = vunpack.c.l.b16 %v438
        %v2103 = vunpack.c.l.b16 %v439
        %v2104 = vunpack.c.l.b16 %v440
        %v2105 = vunpack.c.l.b16 %v441
        %v2106 = vunpack.c.l.b16 %v442
        %v2107 = vunpack.c.l.b16 %v443
        %v2108 = vunpack.c.l.b16 %v444
        %v2109 = vunpack.c.l.b16 %v445
        %v2110 = vunpack.c.l.b16 %v446
        %v2111 = vunpack.c.l.b16 %v447
        %v2112 = vunpack.c.l.b16 %v448
        %v2113 = vunpack.c.l.b16 %v449
        %v2114 = vunpack.c.l.b16 %v450
        %v2115 = vunpack.c.l.b16 %v451
        %v2116 = vunpack.c.l.b16 %v452
        %v2117 = vunpack.c.l.b16 %v453
        %v2118 = vunpack.c.l.b16 %v454
        %v2119 = vunpack.c.l.b16 %v455
        %v2120 = vunpack.c.l.b16 %v456
        %v2121 = vunpack.c.l.b16 %v457
        %v2122 = vunpack.c.l.b16 %v458
        %v2123 = vunpack.c.l.b16 %v459
        %v2124 = vunpack.c.l.b16 %v460
        %v2125 = vunpack.c.l.b16 %v461
        %v2126 = vunpack.c.l.b16 %v462
        %v2127 = vunpack.c.l.b16 %v463
        %v2128 = vunpack.c.l.b16 %v464
        %v2129 = vunpack.c.l.b16 %v465
        %v2130 = vunpack.c.l.b16 %v466
        %v2131 = vunpack.c.l.b16 %v467
        %v2132 = vunpack.c.l.b16 %v468
        %v2133 = vunpack.c.l.b16 %v469
        %v2134 = vunpack.c.l.b16 %v470
        %v2135 = vunpack.c.l.b16 %v471
        %v2136 = vunpack.c.l.b16 %v472
        %v2137 = vunpack.c.l.b16 %v473
        %v2138 = vunpack.c.l.b16 %v474
        %v2139 = vunpack.c.l.b16 %v475
        %v2140 = vunpack.c.l.b16 %v476
        %v2141 = vunpack.c.l.b16 %v477
        %v2142 = vunpack.c.l.b16 %v478
        %v2143 = vunpack.c.l.b16 %v479
        %v2144 = vunpack.c.l.b16 %v480
        %v2145 = vunpack.c.l.b16 %v481
        %v2146 = vunpack.c.l.b16 %v482
        %v2147 = vunpack.c.l.b16 %v483
        %v2148 = vunpack.c.l.b16 %v484
        %v2149 = vunpack.c.l.b16 %v485
        %v2150 = vunpack.c.l.b16 %v486
        %v2151 = vunpack.c.l.b16 %v487
        %v2152 = vunpack.c.l.b16 %v488
        %v2153 = vunpack.c.l.b16 %v489
        %v2154 = vunpack.c.l.b16 %v490
        %v2155 = vunpack.c.l.b16 %v491
        %v2156 = vunpack.c.l.b16 %v492
        %v2157 = vunpack.c.l.b16 %v493
        %v2158 = vunpack.c.l.b16 %v494
        %v2159 = vunpack.c.l.b16 %v495
        %v2160 = vunpack.c.l.b16 %v496
        %v2161 = vunpack.c.l.b16 %v497
        %v2162 = vunpack.c.l.b16 %v498
        %v2163 = vunpack.c.l.b16 %v499
        %v2164 = vunpack.c.l.b16 %v500
        %v2165 = vunpack.c.l.b16 %v501
        %v2166 = vunpack.c.l.b16 %v502
        %v2167 = vunpack.c.l.b16 %v503
        %v2168 = vunpack.c.l.b16 %v504
        %v2169 = vunpack.c.l.b16 %v505
        %v2170 = vunpack.c.l.b16 %v506
        %v2171 = vunpack.c.l.b16 %v507
        %v2172 = vunpack.c.l.b16 %v508
        %v2173 = vunpack.c.l.b16 %v509
        %v2174 = vunpack.c.l.b16 %v510
        %v2175 = vunpack.c.l.b16 %v511
        %v2176 = vunpack.c.l.b16 %v512
        %v2177 = vunpack.c.l.b16 %v513
        %v2178 = vunpack.c.l.b16 %v514
        %v2179 = vunpack.c.l.b16 %v515
        %v2180 = vunpack.c.l.b16 %v516
        %v2181 = vunpack.c.l.b16 %v517
        %v2182 = vunpack.c.l.b16 %v518
        %v2183 = vunpack.c.l.b16 %v519
        %v2184 = vunpack.c.l.b16 %v520
        %v2185 = vunpack.c.l.b16 %v521
        %v2186 = vunpack.c.l.b16 %v522
        %v2187 = vunpack.c.l.b16 %v523
        %v2188 = vunpack.c.l.b16 %v524
        %v2189 = vunpack.c.l.b16 %v525
        %v2190 = vunpack.c.l.b16 %v526
        %v2191 = vunpack.c.l.b16 %v527
        %v2192 = vunpack.c.l.b16 %v528
        %v2193 = vunpack.c.l.b16 %v529
        %v2194 = vunpack.c.l.b16 %v530
        %v2195 = vunpack.c.l.b16 %v531
        %v2196 = vunpack.c.l.b16 %v532
        %v2197 = vunpack.c.l.b16 %v533
        %v2198 = vunpack.c.l.b16 %v534
        %v2199 = vunpack.c.l.b16 %v535
        %v2200 = vunpack.c.l.b16 %v536
        %v2201 = vunpack.c.l.b16 %v537
        %v2202 = vunpack.c.l.b16 %v538
        %v2203 = vunpack.c.l.b16 %v539
        %v2204 = vunpack.c.l.b16 %v540
        %v2205 = vunpack.c.l.b16 %v541
        %v2206 = vunpack.c.l.b16 %v542
        %v2207 = vunpack.c.l.b16 %v543
        %v2208 = vunpack.c.l.b16 %v544
        %v2209 = vunpack.c.l.b16 %v545
        %v2210 = vunpack.c.l.b16 %v546
        %v2211 = vunpack.c.l.b16 %v547
        %v2212 = vunpack.c.l.b16 %v548
        %v2213 = vunpack.c.l.b16 %v549
        %v2214 = vunpack.c.l.b16 %v550
        %v2215 = vunpack.c.l.b16 %v551
        %v2216 = vunpack.c.l.b16 %v552
        %v2217 = vunpack.c.l.b16 %v553
        %v2218 = vunpack.c.l.b16 %v554
        %v2219 = vunpack.c.l.b16 %v555
        %v2220 = vunpack.c.l.b16 %v556
        %v2221 = vunpack.c.l.b16 %v557
        %v2222 = vunpack.c.l.b16 %v558
        %v2223 = vunpack.c.l.b16 %v559
        %v2224 = vunpack.c.l.b16 %v560
        %v2225 = vunpack.c.l.b16 %v561
        %v2226 = vunpack.c.l.b16 %v562
        %v2227 = vunpack.c.l.b16 %v563
        %v2228 = vunpack.c.l.b16 %v564
        %v2229 = vunpack.c.l.b16 %v565
        %v2230 = vunpack.c.l.b16 %v566
        %v2231 = vunpack.c.l.b16 %v567
        %v2232 = vunpack.c.l.b16 %v568
        %v2233 = vunpack.c.l.b16 %v569
        %v2234 = vunpack.c.l.b16 %v570
        %v2235 = vunpack.c.l.b16 %v571
        %v2236 = vunpack.c.l.b16 %v572
        %v2237 = vunpack.c.l.b16 %v573
        %v2238 = vunpack.c.l.b16 %v574
        %v2239 = vunpack.c.l.b16 %v575
        %v2240 = vunpack.c.l.b16 %v576
        %v2241 = vunpack.c.l.b16 %v577
        %v2242 = vunpack.c.l.b16 %v578
        %v2243 = vunpack.c.l.b16 %v579
        %v2244 = vunpack.c.l.b16 %v580
        %v2245 = vunpack.c.l.b16 %v581
        %v2246 = vunpack.c.l.b16 %v582
        %v2247 = vunpack.c.l.b16 %v583
        %v2248 = vunpack.c.l.b16 %v584
        %v2249 = vunpack.c.l.b16 %v585
        %v2250 = vunpack.c.l.b16 %v586
        %v2251 = vunpack.c.l.b16 %v587
        %v2252 = vunpack.c.l.b16 %v588
        %v2253 = vunpack.c.l.b16 %v589
        %v2254 = vunpack.c.l.b16 %v590
        %v2255 = vunpack.c.l.b16 %v591
        %v2256 = vunpack.c.l.b16 %v592
        %v2257 = vunpack.c.l.b16 %v593
        %v2258 = vunpack.c.l.b16 %v594
        %v2259 = vunpack.c.l.b16 %v595
        %v2260 = vunpack.c.l.b16 %v596
        %v2261 = vunpack.c.l.b16 %v597
        %v2262 = vunpack.c.l.b16 %v598
        %v2263 = vunpack.c.l.b16 %v599
        %v2264 = vunpack.c.l.b16 %v600
        %v2265 = vunpack.c.l.b16 %v601
        %v2266 = vunpack.c.l.b16 %v602
        %v2267 = vunpack.c.l.b16 %v603
        %v2268 = vunpack.c.l.b16 %v604
        %v2269 = vunpack.c.l.b16 %v605
        %v2270 = vunpack.c.l.b16 %v606
        %v2271 = vunpack.c.l.b16 %v607
        %v2272 = vunpack.c.l.b16 %v608
        %v2273 = vunpack.c.l.b16 %v609
        %v2274 = vunpack.c.l.b16 %v610
        %v2275 = vunpack.c.l.b16 %v611
        %v2276 = vunpack.c.l.b16 %v612
        %v2277 = vunpack.c.l.b16 %v613
        %v2278 = vunpack.c.l.b16 %v614
        %v2279 = vunpack.c.l.b16 %v615
        %v2280 = vunpack.c.l.b16 %v616
        %v2281 = vunpack.c.l.b16 %v617
        %v2282 = vunpack.c.l.b16 %v618
        %v2283 = vunpack.c.l.b16 %v619
        %v2284 = vunpack.c.l.b16 %v620
        %v2285 = vunpack.c.l.b16 %v621
        %v2286 = vunpack.c.l.b16 %v622
        %v2287 = vunpack.c.l.b16 %v623
        %v2288 = vunpack.c.l.b16 %v624
        %v2289 = vunpack.c.l.b16 %v625
        %v2290 = vunpack.c.l.b16 %v626
        %v2291 = vunpack.c.l.b16 %v627
        %v2292 = vunpack.c.l.b16 %v628
        %v2293 = vunpack.c.l.b16 %v629
        %v2294 = vunpack.c.l.b16 %v630
        %v2295 = vunpack.c.l.b16 %v631
        %v2296 = vunpack.c.l.b16 %v632
        %v2297 = vunpack.c.l.b16 %v633
        %v2298 = vunpack.c.l.b16 %v634
        %v2299 = vunpack.c.l.b16 %v635
        %v2300 = vunpack.c.l.b16 %v636
        %v2301 = vunpack.c.l.b16 %v637
        %v2302 = vunpack.c.l.b16 %v638
        %v2303 = vunpack.c.l.b16 %v639
        %v2304 = vunpack.c.l.b16 %v640
        %v2305 = vunpack.c.l.b16 %v641
        %v2306 = vunpack.c.l.b16 %v642
        %v2307 = vunpack.c.l.b16 %v643
        %v2308 = vunpack.c.l.b16 %v644
        %v2309 = vunpack.c.l.b16 %v645
        %v2310 = vunpack.c.l.b16 %v646
        %v2311 = vunpack.c.l.b16 %v647
        %v2312 = vunpack.c.l.b16 %v648
        %v2313 = vunpack.c.l.b16 %v649
        %v2314 = vunpack.c.l.b16 %v650
        %v2315 = vunpack.c.l.b16 %v651
        %v2316 = vunpack.c.l.b16 %v652
        %v2317 = vunpack.c.l.b16 %v653
        %v2318 = vunpack.c.l.b16 %v654
        %v2319 = vunpack.c.l.b16 %v655
        %v2320 = vunpack.c.l.b16 %v656
        %v2321 = vunpack.c.l.b16 %v657
        %v2322 = vunpack.c.l.b16 %v658
        %v2323 = vunpack.c.l.b16 %v659
        %v2324 = vunpack.c.l.b16 %v660
        %v2325 = vunpack.c.l.b16 %v661
        %v2326 = vunpack.c.l.b16 %v662
        %v2327 = vunpack.c.l.b16 %v663
        %v2328 = vunpack.c.l.b16 %v664
        %v2329 = vunpack.c.l.b16 %v665
        %v2330 = vunpack.c.l.b16 %v666
        %v2331 = vunpack.c.l.b16 %v667
        %v2332 = vunpack.c.l.b16 %v668
        %v2333 = vunpack.c.l.b16 %v669
        %v2334 = vunpack.c.l.b16 %v670
        %v2335 = vunpack.c.l.b16 %v671
        %v2336 = vunpack.c.l.b16 %v672
        %v2337 = vunpack.c.l.b16 %v673
        %v2338 = vunpack.c.l.b16 %v674
        %v2339 = vunpack.c.l.b16 %v675
        %v2340 = vunpack.c.l.b16 %v676
        %v2341 = vunpack.c.l.b16 %v677
        %v2342 = vunpack.c.l.b16 %v678
        %v2343 = vunpack.c.l.b16 %v679
        %v2344 = vunpack.c.l.b16 %v680
        %v2345 = vunpack.c.l.b16 %v681
        %v2346 = vunpack.c.l.b16 %v682
        %v2347 = vunpack.c.l.b16 %v683
        %v2348 = vunpack.c.l.b16 %v684
        %v2349 = vunpack.c.l.b16 %v685
        %v2350 = vunpack.c.l.b16 %v686
        %v2351 = vunpack.c.l.b16 %v687
        %v2352 = vunpack.c.l.b16 %v688
        %v2353 = vunpack.c.l.b16 %v689
        %v2354 = vunpack.c.l.b16 %v690
        %v2355 = vunpack.c.l.b16 %v691
        %v2356 = vunpack.c.l.b16 %v692
        %v2357 = vunpack.c.l.b16 %v693
        %v2358 = vunpack.c.l.b16 %v694
        %v2359 = vunpack.c.l.b16 %v695
        %v2360 = vunpack.c.l.b16 %v696
        %v2361 = vunpack.c.l.b16 %v697
        %v2362 = vunpack.c.l.b16 %v698
        %v2363 = vunpack.c.l.b16 %v699
        %v2364 = vunpack.c.l.b16 %v700
        %v2365 = vunpack.c.l.b16 %v701
        %v2366 = vunpack.c.l.b16 %v702
        %v2367 = vunpack.c.l.b16 %v703
        %v2368 = vunpack.c.l.b16 %v704
        %v2369 = vunpack.c.l.b16 %v705
        %v2370 = vunpack.c.l.b16 %v706
        %v2371 = vunpack.c.l.b16 %v707
        %v2372 = vunpack.c.l.b16 %v708
        %v2373 = vunpack.c.l.b16 %v709
        %v2374 = vunpack.c.l.b16 %v710
        %v2375 = vunpack.c.l.b16 %v711
        %v2376 = vunpack.c.l.b16 %v712
        %v2377 = vunpack.c.l.b16 %v713
        %v2378 = vunpack.c.l.b16 %v714
        %v2379 = vunpack.c.l.b16 %v715
        %v2380 = vunpack.c.l.b16 %v716
        %v2381 = vunpack.c.l.b16 %v717
        %v2382 = vunpack.c.l.b16 %v718
        %v2383 = vunpack.c.l.b16 %v719
        %v2384 = vunpack.c.l.b16 %v720
        %v2385 = vunpack.c.l.b16 %v721
        %v2386 = vunpack.c.l.b16 %v722
        %v2387 = vunpack.c.l.b16 %v723
        %v2388 = vunpack.c.l.b16 %v724
        %v2389 = vunpack.c.l.b16 %v725
        %v2390 = vunpack.c.l.b16 %v726
        %v2391 = vunpack.c.l.b16 %v727
        %v2392 = vunpack.c.l.b16 %v728
        %v2393 = vunpack.c.l.b16 %v729
        %v2394 = vunpack.c.l.b16 %v730
        %v2395 = vunpack.c.l.b16 %v731
        %v2396 = vunpack.c.l.b16 %v732
        %v2397 = vunpack.c.l.b16 %v733
        %v2398 = vunpack.c.l.b16 %v734
        %v2399 = vunpack.c.l.b16 %v735
        %v2400 = vunpack.c.l.b16 %v736
        %v2401 = vunpack.c.l.b16 %v737
        %v2402 = vunpack.c.l.b16 %v738
        %v2403 = vunpack.c.l.b16 %v739
        %v2404 = vunpack.c.l.b16 %v740
        %v2405 = vunpack.c.l.b16 %v741
        %v2406 = vunpack.c.l.b16 %v742
        %v2407 = vunpack.c.l.b16 %v743
        %v2408 = vunpack.c.l.b16 %v744
        %v2409 = vunpack.c.l.b16 %v745
        %v2410 = vunpack.c.l.b16 %v746
        %v2411 = vunpack.c.l.b16 %v747
        %v2412 = vunpack.c.l.b16 %v748
        %v2413 = vunpack.c.l.b16 %v749
        %v2414 = vunpack.c.l.b16 %v750
        %v2415 = vunpack.c.l.b16 %v751
        %v2416 = vunpack.c.l.b16 %v752
        %v2417 = vunpack.c.l.b16 %v753
        %v2418 = vunpack.c.l.b16 %v754
        %v2419 = vunpack.c.l.b16 %v755
        %v2420 = vunpack.c.l.b16 %v756
        %v2421 = vunpack.c.l.b16 %v757
        %v2422 = vunpack.c.l.b16 %v758
        %v2423 = vunpack.c.l.b16 %v759
        %v2424 = vunpack.c.l.b16 %v760
        %v2425 = vunpack.c.l.b16 %v761
        %v2426 = vunpack.c.l.b16 %v762
        %v2427 = vunpack.c.l.b16 %v763
        %v2428 = vunpack.c.l.b16 %v764
        %v2429 = vunpack.c.l.b16 %v765
        %v2430 = vunpack.c.l.b16 %v766
        %v2431 = vunpack.c.l.b16 %v767
        %v2432 = vunpack.c.l.b16 %v768
        %v2433 = vunpack.c.l.b16 %v769
        %v2434 = vunpack.c.l.b16 %v770
        %v2435 = vunpack.c.l.b16 %v771
        %v2436 = vunpack.c.l.b16 %v772
        %v2437 = vunpack.c.l.b16 %v773
        %v2438 = vunpack.c.l.b16 %v774
        %v2439 = vunpack.c.l.b16 %v775
        %v2440 = vunpack.c.l.b16 %v776
        %v2441 = vunpack.c.l.b16 %v777
        %v2442 = vunpack.c.l.b16 %v778
        %v2443 = vunpack.c.l.b16 %v779
        %v2444 = vunpack.c.l.b16 %v780
        %v2445 = vunpack.c.l.b16 %v781
        %v2446 = vunpack.c.l.b16 %v782
        %v2447 = vunpack.c.l.b16 %v783
        %v2448 = vunpack.c.l.b16 %v784
        %v2449 = vunpack.c.l.b16 %v785
        %v2450 = vunpack.c.l.b16 %v786
        %v2451 = vunpack.c.l.b16 %v787
        %v2452 = vunpack.c.l.b16 %v788
        %v2453 = vunpack.c.l.b16 %v789
        %v2454 = vunpack.c.l.b16 %v790
        %v2455 = vunpack.c.l.b16 %v791
        %v2456 = vunpack.c.l.b16 %v792
        %v2457 = vunpack.c.l.b16 %v793
        %v2458 = vunpack.c.l.b16 %v794
        %v2459 = vunpack.c.l.b16 %v795
        %v2460 = vunpack.c.l.b16 %v796
        %v2461 = vunpack.c.l.b16 %v797
        %v2462 = vunpack.c.l.b16 %v798
        %v2463 = vunpack.c.l.b16 %v799
        %v2464 = vunpack.c.l.b16 %v800
        %v2465 = vunpack.c.l.b16 %v801
        %v2466 = vunpack.c.l.b16 %v802
        %v2467 = vunpack.c.l.b16 %v803
        %v2468 = vunpack.c.l.b16 %v804
        %v2469 = vunpack.c.l.b16 %v805
        %v2470 = vunpack.c.l.b16 %v806
        %v2471 = vunpack.c.l.b16 %v807
        %v2472 = vunpack.c.l.b16 %v808
        %v2473 = vunpack.c.l.b16 %v809
        %v2474 = vunpack.c.l.b16 %v810
        %v2475 = vunpack.c.l.b16 %v811
        %v2476 = vunpack.c.l.b16 %v812
        %v2477 = vunpack.c.l.b16 %v813
        %v2478 = vunpack.c.l.b16 %v814
        %v2479 = vunpack.c.l.b16 %v815
        %v2480 = vunpack.c.l.b16 %v816
        %v2481 = vunpack.c.l.b16 %v817
        %v2482 = vunpack.c.l.b16 %v818
        %v2483 = vunpack.c.l.b16 %v819
        %v2484 = vpack.c.b16 %v1973, %v1972
        %v2485 = vpack.c.b16 %v1975, %v1974
        %v2486 = vpack.c.b16 %v1977, %v1976
        %v2487 = vpack.c.b16 %v1979, %v1978
        %v2488 = vpack.c.b16 %v1981, %v1980
        %v2489 = vpack.c.b16 %v1983, %v1982
        %v2490 = vpack.c.b16 %v1985, %v1984
        %v2491 = vpack.c.b16 %v1987, %v1986
        %v2492 = vpack.c.b16 %v1989, %v1988
        %v2493 = vpack.c.b16 %v1991, %v1990
        %v2494 = vpack.c.b16 %v1993, %v1992
        %v2495 = vpack.c.b16 %v1995, %v1994
        %v2496 = vpack.c.b16 %v1997, %v1996
        %v2497 = vpack.c.b16 %v1999, %v1998
        %v2498 = vpack.c.b16 %v2001, %v2000
        %v2499 = vpack.c.b16 %v2003, %v2002
        %v2500 = vpack.c.b16 %v2005, %v2004
        %v2501 = vpack.c.b16 %v2007, %v2006
        %v2502 = vpack.c.b16 %v2009, %v2008
        %v2503 = vpack.c.b16 %v2011, %v2010
        %v2504 = vpack.c.b16 %v2013, %v2012
        %v2505 = vpack.c.b16 %v2015, %v2014
        %v2506 = vpack.c.b16 %v2017, %v2016
        %v2507 = vpack.c.b16 %v2019, %v2018
        %v2508 = vpack.c.b16 %v2021, %v2020
        %v2509 = vpack.c.b16 %v2023, %v2022
        %v2510 = vpack.c.b16 %v2025, %v2024
        %v2511 = vpack.c.b16 %v2027, %v2026
        %v2512 = vpack.c.b16 %v2029, %v2028
        %v2513 = vpack.c.b16 %v2031, %v2030
        %v2514 = vpack.c.b16 %v2033, %v2032
        %v2515 = vpack.c.b16 %v2035, %v2034
        %v2516 = vpack.c.b16 %v2037, %v2036
        %v2517 = vpack.c.b16 %v2039, %v2038
        %v2518 = vpack.c.b16 %v2041, %v2040
        %v2519 = vpack.c.b16 %v2043, %v2042
        %v2520 = vpack.c.b16 %v2045, %v2044
        %v2521 = vpack.c.b16 %v2047, %v2046
        %v2522 = vpack.c.b16 %v2049, %v2048
        %v2523 = vpack.c.b16 %v2051, %v2050
        %v2524 = vpack.c.b16 %v2053, %v2052
        %v2525 = vpack.c.b16 %v2055, %v2054
        %v2526 = vpack.c.b16 %v2057, %v2056
        %v2527 = vpack.c.b16 %v2059, %v2058
        %v2528 = vpack.c.b16 %v2061, %v2060
        %v2529 = vpack.c.b16 %v2063, %v2062
        %v2530 = vpack.c.b16 %v2065, %v2064
        %v2531 = vpack.c.b16 %v2067, %v2066
        %v2532 = vpack.c.b16 %v2069, %v2068
        %v2533 = vpack.c.b16 %v2071, %v2070
        %v2534 = vpack.c.b16 %v2073, %v2072
        %v2535 = vpack.c.b16 %v2075, %v2074
        %v2536 = vpack.c.b16 %v2077, %v2076
        %v2537 = vpack.c.b16 %v2079, %v2078
        %v2538 = vpack.c.b16 %v2081, %v2080
        %v2539 = vpack.c.b16 %v2083, %v2082
        %v2540 = vpack.c.b16 %v2085, %v2084
        %v2541 = vpack.c.b16 %v2087, %v2086
        %v2542 = vpack.c.b16 %v2089, %v2088
        %v2543 = vpack.c.b16 %v2091, %v2090
        %v2544 = vpack.c.b16 %v2093, %v2092
        %v2545 = vpack.c.b16 %v2095, %v2094
        %v2546 = vpack.c.b16 %v2097, %v2096
        %v2547 = vpack.c.b16 %v2099, %v2098
        %v2548 = vpack.c.b16 %v2101, %v2100
        %v2549 = vpack.c.b16 %v2103, %v2102
        %v2550 = vpack.c.b16 %v2105, %v2104
        %v2551 = vpack.c.b16 %v2107, %v2106
        %v2552 = vpack.c.b16 %v2109, %v2108
        %v2553 = vpack.c.b16 %v2111, %v2110
        %v2554 = vpack.c.b16 %v2113, %v2112
        %v2555 = vpack.c.b16 %v2115, %v2114
        %v2556 = vpack.c.b16 %v2117, %v2116
        %v2557 = vpack.c.b16 %v2119, %v2118
        %v2558 = vpack.c.b16 %v2121, %v2120
        %v2559 = vpack.c.b16 %v2123, %v2122
        %v2560 = vpack.c.b16 %v2125, %v2124
        %v2561 = vpack.c.b16 %v2127, %v2126
        %v2562 = vpack.c.b16 %v2129, %v2128
        %v2563 = vpack.c.b16 %v2131, %v2130
        %v2564 = vpack.c.b16 %v2133, %v2132
        %v2565 = vpack.c.b16 %v2135, %v2134
        %v2566 = vpack.c.b16 %v2137, %v2136
        %v2567 = vpack.c.b16 %v2139, %v2138
        %v2568 = vpack.c.b16 %v2141, %v2140
        %v2569 = vpack.c.b16 %v2143, %v2142
        %v2570 = vpack.c.b16 %v2145, %v2144
        %v2571 = vpack.c.b16 %v2147, %v2146
        %v2572 = vpack.c.b16 %v2149, %v2148
        %v2573 = vpack.c.b16 %v2151, %v2150
        %v2574 = vpack.c.b16 %v2153, %v2152
        %v2575 = vpack.c.b16 %v2155, %v2154
        %v2576 = vpack.c.b16 %v2157, %v2156
        %v2577 = vpack.c.b16 %v2159, %v2158
        %v2578 = vpack.c.b16 %v2161, %v2160
        %v2579 = vpack.c.b16 %v2163, %v2162
        %v2580 = vpack.c.b16 %v2165, %v2164
        %v2581 = vpack.c.b16 %v2167, %v2166
        %v2582 = vpack.c.b16 %v2169, %v2168
        %v2583 = vpack.c.b16 %v2171, %v2170
        %v2584 = vpack.c.b16 %v2173, %v2172
        %v2585 = vpack.c.b16 %v2175, %v2174
        %v2586 = vpack.c.b16 %v2177, %v2176
        %v2587 = vpack.c.b16 %v2179, %v2178
        %v2588 = vpack.c.b16 %v2181, %v2180
        %v2589 = vpack.c.b16 %v2183, %v2182
        %v2590 = vpack.c.b16 %v2185, %v2184
        %v2591 = vpack.c.b16 %v2187, %v2186
        %v2592 = vpack.c.b16 %v2189, %v2188
        %v2593 = vpack.c.b16 %v2191, %v2190
        %v2594 = vpack.c.b16 %v2193, %v2192
        %v2595 = vpack.c.b16 %v2195, %v2194
        %v2596 = vpack.c.b16 %v2197, %v2196
        %v2597 = vpack.c.b16 %v2199, %v2198
        %v2598 = vpack.c.b16 %v2201, %v2200
        %v2599 = vpack.c.b16 %v2203, %v2202
        %v2600 = vpack.c.b16 %v2205, %v2204
        %v2601 = vpack.c.b16 %v2207, %v2206
        %v2602 = vpack.c.b16 %v2209, %v2208
        %v2603 = vpack.c.b16 %v2211, %v2210
        %v2604 = vpack.c.b16 %v2213, %v2212
        %v2605 = vpack.c.b16 %v2215, %v2214
        %v2606 = vpack.c.b16 %v2217, %v2216
        %v2607 = vpack.c.b16 %v2219, %v2218
        %v2608 = vpack.c.b16 %v2221, %v2220
        %v2609 = vpack.c.b16 %v2223, %v2222
        %v2610 = vpack.c.b16 %v2225, %v2224
        %v2611 = vpack.c.b16 %v2227, %v2226
        %v2612 = vpack.c.b16 %v2229, %v2228
        %v2613 = vpack.c.b16 %v2231, %v2230
        %v2614 = vpack.c.b16 %v2233, %v2232
        %v2615 = vpack.c.b16 %v2235, %v2234
        %v2616 = vpack.c.b16 %v2237, %v2236
        %v2617 = vpack.c.b16 %v2239, %v2238
        %v2618 = vpack.c.b16 %v2241, %v2240
        %v2619 = vpack.c.b16 %v2243, %v2242
        %v2620 = vpack.c.b16 %v2245, %v2244
        %v2621 = vpack.c.b16 %v2247, %v2246
        %v2622 = vpack.c.b16 %v2249, %v2248
        %v2623 = vpack.c.b16 %v2251, %v2250
        %v2624 = vpack.c.b16 %v2253, %v2252
        %v2625 = vpack.c.b16 %v2255, %v2254
        %v2626 = vpack.c.b16 %v2257, %v2256
        %v2627 = vpack.c.b16 %v2259, %v2258
        %v2628 = vpack.c.b16 %v2261, %v2260
        %v2629 = vpack.c.b16 %v2263, %v2262
        %v2630 = vpack.c.b16 %v2265, %v2264
        %v2631 = vpack.c.b16 %v2267, %v2266
        %v2632 = vpack.c.b16 %v2269, %v2268
        %v2633 = vpack.c.b16 %v2271, %v2270
        %v2634 = vpack.c.b16 %v2273, %v2272
        %v2635 = vpack.c.b16 %v2275, %v2274
        %v2636 = vpack.c.b16 %v2277, %v2276
        %v2637 = vpack.c.b16 %v2279, %v2278
        %v2638 = vpack.c.b16 %v2281, %v2280
        %v2639 = vpack.c.b16 %v2283, %v2282
        %v2640 = vpack.c.b16 %v2285, %v2284
        %v2641 = vpack.c.b16 %v2287, %v2286
        %v2642 = vpack.c.b16 %v2289, %v2288
        %v2643 = vpack.c.b16 %v2291, %v2290
        %v2644 = vpack.c.b16 %v2293, %v2292
        %v2645 = vpack.c.b16 %v2295, %v2294
        %v2646 = vpack.c.b16 %v2297, %v2296
        %v2647 = vpack.c.b16 %v2299, %v2298
        %v2648 = vpack.c.b16 %v2301, %v2300
        %v2649 = vpack.c.b16 %v2303, %v2302
        %v2650 = vpack.c.b16 %v2305, %v2304
        %v2651 = vpack.c.b16 %v2307, %v2306
        %v2652 = vpack.c.b16 %v2309, %v2308
        %v2653 = vpack.c.b16 %v2311, %v2310
        %v2654 = vpack.c.b16 %v2313, %v2312
        %v2655 = vpack.c.b16 %v2315, %v2314
        %v2656 = vpack.c.b16 %v2317, %v2316
        %v2657 = vpack.c.b16 %v2319, %v2318
        %v2658 = vpack.c.b16 %v2321, %v2320
        %v2659 = vpack.c.b16 %v2323, %v2322
        %v2660 = vpack.c.b16 %v2325, %v2324
        %v2661 = vpack.c.b16 %v2327, %v2326
        %v2662 = vpack.c.b16 %v2329, %v2328
        %v2663 = vpack.c.b16 %v2331, %v2330
        %v2664 = vpack.c.b16 %v2333, %v2332
        %v2665 = vpack.c.b16 %v2335, %v2334
        %v2666 = vpack.c.b16 %v2337, %v2336
        %v2667 = vpack.c.b16 %v2339, %v2338
        %v2668 = vpack.c.b16 %v2341, %v2340
        %v2669 = vpack.c.b16 %v2343, %v2342
        %v2670 = vpack.c.b16 %v2345, %v2344
        %v2671 = vpack.c.b16 %v2347, %v2346
        %v2672 = vpack.c.b16 %v2349, %v2348
        %v2673 = vpack.c.b16 %v2351, %v2350
        %v2674 = vpack.c.b16 %v2353, %v2352
        %v2675 = vpack.c.b16 %v2355, %v2354
        %v2676 = vpack.c.b16 %v2357, %v2356
        %v2677 = vpack.c.b16 %v2359, %v2358
        %v2678 = vpack.c.b16 %v2361, %v2360
        %v2679 = vpack.c.b16 %v2363, %v2362
        %v2680 = vpack.c.b16 %v2365, %v2364
        %v2681 = vpack.c.b16 %v2367, %v2366
        %v2682 = vpack.c.b16 %v2369, %v2368
        %v2683 = vpack.c.b16 %v2371, %v2370
        %v2684 = vpack.c.b16 %v2373, %v2372
        %v2685 = vpack.c.b16 %v2375, %v2374
        %v2686 = vpack.c.b16 %v2377, %v2376
        %v2687 = vpack.c.b16 %v2379, %v2378
        %v2688 = vpack.c.b16 %v2381, %v2380
        %v2689 = vpack.c.b16 %v2383, %v2382
        %v2690 = vpack.c.b16 %v2385, %v2384
        %v2691 = vpack.c.b16 %v2387, %v2386
        %v2692 = vpack.c.b16 %v2389, %v2388
        %v2693 = vpack.c.b16 %v2391, %v2390
        %v2694 = vpack.c.b16 %v2393, %v2392
        %v2695 = vpack.c.b16 %v2395, %v2394
        %v2696 = vpack.c.b16 %v2397, %v2396
        %v2697 = vpack.c.b16 %v2399, %v2398
        %v2698 = vpack.c.b16 %v2401, %v2400
        %v2699 = vpack.c.b16 %v2403, %v2402
        %v2700 = vpack.c.b16 %v2405, %v2404
        %v2701 = vpack.c.b16 %v2407, %v2406
        %v2702 = vpack.c.b16 %v2409, %v2408
        %v2703 = vpack.c.b16 %v2411, %v2410
        %v2704 = vpack.c.b16 %v2413, %v2412
        %v2705 = vpack.c.b16 %v2415, %v2414
        %v2706 = vpack.c.b16 %v2417, %v2416
        %v2707 = vpack.c.b16 %v2419, %v2418
        %v2708 = vpack.c.b16 %v2421, %v2420
        %v2709 = vpack.c.b16 %v2423, %v2422
        %v2710 = vpack.c.b16 %v2425, %v2424
        %v2711 = vpack.c.b16 %v2427, %v2426
        %v2712 = vpack.c.b16 %v2429, %v2428
        %v2713 = vpack.c.b16 %v2431, %v2430
        %v2714 = vpack.c.b16 %v2433, %v2432
        %v2715 = vpack.c.b16 %v2435, %v2434
        %v2716 = vpack.c.b16 %v2437, %v2436
        %v2717 = vpack.c.b16 %v2439, %v2438
        %v2718 = vpack.c.b16 %v2441, %v2440
        %v2719 = vpack.c.b16 %v2443, %v2442
        %v2720 = vpack.c.b16 %v2445, %v2444
        %v2721 = vpack.c.b16 %v2447, %v2446
        %v2722 = vpack.c.b16 %v2449, %v2448
        %v2723 = vpack.c.b16 %v2451, %v2450
        %v2724 = vpack.c.b16 %v2453, %v2452
        %v2725 = vpack.c.b16 %v2455, %v2454
        %v2726 = vpack.c.b16 %v2457, %v2456
        %v2727 = vpack.c.b16 %v2459, %v2458
        %v2728 = vpack.c.b16 %v2461, %v2460
        %v2729 = vpack.c.b16 %v2463, %v2462
        %v2730 = vpack.c.b16 %v2465, %v2464
        %v2731 = vpack.c.b16 %v2467, %v2466
        %v2732 = vpack.c.b16 %v2469, %v2468
        %v2733 = vpack.c.b16 %v2471, %v2470
        %v2734 = vpack.c.b16 %v2473, %v2472
        %v2735 = vpack.c.b16 %v2475, %v2474
        %v2736 = vpack.c.b16 %v2477, %v2476
        %v2737 = vpack.c.b16 %v2479, %v2478
        %v2738 = vpack.c.b16 %v2481, %v2480
        %v2739 = vpack.c.b16 %v2483, %v2482
        %2996 = vmatpush.bf16.msra.mxu0 %v2491
        %2997 = vmatpush.bf16.msra.mxu0 %v2490
        %2998 = vmatpush.bf16.msra.mxu0 %v2489
        %2999 = vmatpush.bf16.msra.mxu0 %v2488
        %3000 = vmatpush.bf16.msra.mxu0 %v2487
        %3001 = vmatpush.bf16.msra.mxu0 %v2486
        %3002 = vmatpush.bf16.msra.mxu0 %v2485
        %3003 = vmatpush.bf16.msra.mxu0 %v2484
        %3004 = vmatmul.bf16.gmra.mxu0 %v1204
        %v3005 = vpop.f32.mrf.mxu0
        %v3006 = vadd.f32 0.0, %v3005
        %v3007 = vpop.f32.mrf.mxu0
        %v3008 = vadd.f32 0.0, %v3007
        %3009 = vmatmul.bf16.gmra.mxu0 %v1236
        %v3010 = vpop.f32.mrf.mxu0
        %v3011 = vadd.f32 0.0, %v3010
        %v3012 = vpop.f32.mrf.mxu0
        %v3013 = vadd.f32 0.0, %v3012
        %3014 = vmatmul.bf16.gmra.mxu0 %v1268
        %v3015 = vpop.f32.mrf.mxu0
        %v3016 = vadd.f32 0.0, %v3015
        %v3017 = vpop.f32.mrf.mxu0
        %v3018 = vadd.f32 0.0, %v3017
        %3019 = vmatmul.bf16.gmra.mxu0 %v1300
        %v3020 = vpop.f32.mrf.mxu0
        %v3021 = vadd.f32 0.0, %v3020
        %v3022 = vpop.f32.mrf.mxu0
        %v3023 = vadd.f32 0.0, %v3022
        %3024 = vdwg.mxu0
        %3025 = vmatpush.bf16.msra.mxu0 %v2499
        %3026 = vmatpush.bf16.msra.mxu0 %v2498
        %3027 = vmatpush.bf16.msra.mxu0 %v2497
        %3028 = vmatpush.bf16.msra.mxu0 %v2496
        %3029 = vmatpush.bf16.msra.mxu0 %v2495
        %3030 = vmatpush.bf16.msra.mxu0 %v2494
        %3031 = vmatpush.bf16.msra.mxu0 %v2493
        %3032 = vmatpush.bf16.msra.mxu0 %v2492
        %3033 = vmatmul.bf16.gmra.mxu0 %v1205
        %v3034 = vpop.f32.mrf.mxu0
        %v3035 = vadd.f32 %v3006, %v3034
        %v3036 = vpop.f32.mrf.mxu0
        %v3037 = vadd.f32 %v3008, %v3036
        %3038 = vmatmul.bf16.gmra.mxu0 %v1237
        %v3039 = vpop.f32.mrf.mxu0
        %v3040 = vadd.f32 %v3011, %v3039
        %v3041 = vpop.f32.mrf.mxu0
        %v3042 = vadd.f32 %v3013, %v3041
        %3043 = vmatmul.bf16.gmra.mxu0 %v1269
        %v3044 = vpop.f32.mrf.mxu0
        %v3045 = vadd.f32 %v3016, %v3044
        %v3046 = vpop.f32.mrf.mxu0
        %v3047 = vadd.f32 %v3018, %v3046
        %3048 = vmatmul.bf16.gmra.mxu0 %v1301
        %v3049 = vpop.f32.mrf.mxu0
        %v3050 = vadd.f32 %v3021, %v3049
        %v3051 = vpop.f32.mrf.mxu0
        %v3052 = vadd.f32 %v3023, %v3051
        %3053 = vdwg.mxu0
        %3054 = vmatpush.bf16.msra.mxu0 %v2507
        %3055 = vmatpush.bf16.msra.mxu0 %v2506
        %3056 = vmatpush.bf16.msra.mxu0 %v2505
        %3057 = vmatpush.bf16.msra.mxu0 %v2504
        %3058 = vmatpush.bf16.msra.mxu0 %v2503
        %3059 = vmatpush.bf16.msra.mxu0 %v2502
        %3060 = vmatpush.bf16.msra.mxu0 %v2501
        %3061 = vmatpush.bf16.msra.mxu0 %v2500
        %3062 = vmatmul.bf16.gmra.mxu0 %v1206
        %v3063 = vpop.f32.mrf.mxu0
        %v3064 = vadd.f32 %v3035, %v3063
        %v3065 = vpop.f32.mrf.mxu0
        %v3066 = vadd.f32 %v3037, %v3065
        %3067 = vmatmul.bf16.gmra.mxu0 %v1238
        %v3068 = vpop.f32.mrf.mxu0
        %v3069 = vadd.f32 %v3040, %v3068
        %v3070 = vpop.f32.mrf.mxu0
        %v3071 = vadd.f32 %v3042, %v3070
        %3072 = vmatmul.bf16.gmra.mxu0 %v1270
        %v3073 = vpop.f32.mrf.mxu0
        %v3074 = vadd.f32 %v3045, %v3073
        %v3075 = vpop.f32.mrf.mxu0
        %v3076 = vadd.f32 %v3047, %v3075
        %3077 = vmatmul.bf16.gmra.mxu0 %v1302
        %v3078 = vpop.f32.mrf.mxu0
        %v3079 = vadd.f32 %v3050, %v3078
        %v3080 = vpop.f32.mrf.mxu0
        %v3081 = vadd.f32 %v3052, %v3080
        %3082 = vdwg.mxu0
        %3083 = vmatpush.bf16.msra.mxu0 %v2515
        %3084 = vmatpush.bf16.msra.mxu0 %v2514
        %3085 = vmatpush.bf16.msra.mxu0 %v2513
        %3086 = vmatpush.bf16.msra.mxu0 %v2512
        %3087 = vmatpush.bf16.msra.mxu0 %v2511
        %3088 = vmatpush.bf16.msra.mxu0 %v2510
        %3089 = vmatpush.bf16.msra.mxu0 %v2509
        %3090 = vmatpush.bf16.msra.mxu0 %v2508
        %3091 = vmatmul.bf16.gmra.mxu0 %v1207
        %v3092 = vpop.f32.mrf.mxu0
        %v3093 = vadd.f32 %v3064, %v3092
        %v3094 = vpop.f32.mrf.mxu0
        %v3095 = vadd.f32 %v3066, %v3094
        %3096 = vmatmul.bf16.gmra.mxu0 %v1239
        %v3097 = vpop.f32.mrf.mxu0
        %v3098 = vadd.f32 %v3069, %v3097
        %v3099 = vpop.f32.mrf.mxu0
        %v3100 = vadd.f32 %v3071, %v3099
        %3101 = vmatmul.bf16.gmra.mxu0 %v1271
        %v3102 = vpop.f32.mrf.mxu0
        %v3103 = vadd.f32 %v3074, %v3102
        %v3104 = vpop.f32.mrf.mxu0
        %v3105 = vadd.f32 %v3076, %v3104
        %3106 = vmatmul.bf16.gmra.mxu0 %v1303
        %v3107 = vpop.f32.mrf.mxu0
        %v3108 = vadd.f32 %v3079, %v3107
        %v3109 = vpop.f32.mrf.mxu0
        %v3110 = vadd.f32 %v3081, %v3109
        %3111 = vdwg.mxu0
        %3112 = vmatpush.bf16.msra.mxu0 %v2523
        %3113 = vmatpush.bf16.msra.mxu0 %v2522
        %3114 = vmatpush.bf16.msra.mxu0 %v2521
        %3115 = vmatpush.bf16.msra.mxu0 %v2520
        %3116 = vmatpush.bf16.msra.mxu0 %v2519
        %3117 = vmatpush.bf16.msra.mxu0 %v2518
        %3118 = vmatpush.bf16.msra.mxu0 %v2517
        %3119 = vmatpush.bf16.msra.mxu0 %v2516
        %3120 = vmatmul.bf16.gmra.mxu0 %v1208
        %v3121 = vpop.f32.mrf.mxu0
        %v3122 = vadd.f32 %v3093, %v3121
        %v3123 = vpop.f32.mrf.mxu0
        %v3124 = vadd.f32 %v3095, %v3123
        %3125 = vmatmul.bf16.gmra.mxu0 %v1240
        %v3126 = vpop.f32.mrf.mxu0
        %v3127 = vadd.f32 %v3098, %v3126
        %v3128 = vpop.f32.mrf.mxu0
        %v3129 = vadd.f32 %v3100, %v3128
        %3130 = vmatmul.bf16.gmra.mxu0 %v1272
        %v3131 = vpop.f32.mrf.mxu0
        %v3132 = vadd.f32 %v3103, %v3131
        %v3133 = vpop.f32.mrf.mxu0
        %v3134 = vadd.f32 %v3105, %v3133
        %3135 = vmatmul.bf16.gmra.mxu0 %v1304
        %v3136 = vpop.f32.mrf.mxu0
        %v3137 = vadd.f32 %v3108, %v3136
        %v3138 = vpop.f32.mrf.mxu0
        %v3139 = vadd.f32 %v3110, %v3138
        %3140 = vdwg.mxu0
        %3141 = vmatpush.bf16.msra.mxu0 %v2531
        %3142 = vmatpush.bf16.msra.mxu0 %v2530
        %3143 = vmatpush.bf16.msra.mxu0 %v2529
        %3144 = vmatpush.bf16.msra.mxu0 %v2528
        %3145 = vmatpush.bf16.msra.mxu0 %v2527
        %3146 = vmatpush.bf16.msra.mxu0 %v2526
        %3147 = vmatpush.bf16.msra.mxu0 %v2525
        %3148 = vmatpush.bf16.msra.mxu0 %v2524
        %3149 = vmatmul.bf16.gmra.mxu0 %v1209
        %v3150 = vpop.f32.mrf.mxu0
        %v3151 = vadd.f32 %v3122, %v3150
        %v3152 = vpop.f32.mrf.mxu0
        %v3153 = vadd.f32 %v3124, %v3152
        %3154 = vmatmul.bf16.gmra.mxu0 %v1241
        %v3155 = vpop.f32.mrf.mxu0
        %v3156 = vadd.f32 %v3127, %v3155
        %v3157 = vpop.f32.mrf.mxu0
        %v3158 = vadd.f32 %v3129, %v3157
        %3159 = vmatmul.bf16.gmra.mxu0 %v1273
        %v3160 = vpop.f32.mrf.mxu0
        %v3161 = vadd.f32 %v3132, %v3160
        %v3162 = vpop.f32.mrf.mxu0
        %v3163 = vadd.f32 %v3134, %v3162
        %3164 = vmatmul.bf16.gmra.mxu0 %v1305
        %v3165 = vpop.f32.mrf.mxu0
        %v3166 = vadd.f32 %v3137, %v3165
        %v3167 = vpop.f32.mrf.mxu0
        %v3168 = vadd.f32 %v3139, %v3167
        %3169 = vdwg.mxu0
        %3170 = vmatpush.bf16.msra.mxu0 %v2539
        %3171 = vmatpush.bf16.msra.mxu0 %v2538
        %3172 = vmatpush.bf16.msra.mxu0 %v2537
        %3173 = vmatpush.bf16.msra.mxu0 %v2536
        %3174 = vmatpush.bf16.msra.mxu0 %v2535
        %3175 = vmatpush.bf16.msra.mxu0 %v2534
        %3176 = vmatpush.bf16.msra.mxu0 %v2533
        %3177 = vmatpush.bf16.msra.mxu0 %v2532
        %3178 = vmatmul.bf16.gmra.mxu0 %v1210
        %v3179 = vpop.f32.mrf.mxu0
        %v3180 = vadd.f32 %v3151, %v3179
        %v3181 = vpop.f32.mrf.mxu0
        %v3182 = vadd.f32 %v3153, %v3181
        %3183 = vmatmul.bf16.gmra.mxu0 %v1242
        %v3184 = vpop.f32.mrf.mxu0
        %v3185 = vadd.f32 %v3156, %v3184
        %v3186 = vpop.f32.mrf.mxu0
        %v3187 = vadd.f32 %v3158, %v3186
        %3188 = vmatmul.bf16.gmra.mxu0 %v1274
        %v3189 = vpop.f32.mrf.mxu0
        %v3190 = vadd.f32 %v3161, %v3189
        %v3191 = vpop.f32.mrf.mxu0
        %v3192 = vadd.f32 %v3163, %v3191
        %3193 = vmatmul.bf16.gmra.mxu0 %v1306
        %v3194 = vpop.f32.mrf.mxu0
        %v3195 = vadd.f32 %v3166, %v3194
        %v3196 = vpop.f32.mrf.mxu0
        %v3197 = vadd.f32 %v3168, %v3196
        %3198 = vdwg.mxu0
        %3199 = vmatpush.bf16.msra.mxu0 %v2547
        %3200 = vmatpush.bf16.msra.mxu0 %v2546
        %3201 = vmatpush.bf16.msra.mxu0 %v2545
        %3202 = vmatpush.bf16.msra.mxu0 %v2544
        %3203 = vmatpush.bf16.msra.mxu0 %v2543
        %3204 = vmatpush.bf16.msra.mxu0 %v2542
        %3205 = vmatpush.bf16.msra.mxu0 %v2541
        %3206 = vmatpush.bf16.msra.mxu0 %v2540
        %3207 = vmatmul.bf16.gmra.mxu0 %v1211
        %v3208 = vpop.f32.mrf.mxu0
        %v3209 = vadd.f32 %v3180, %v3208
        %v3210 = vpop.f32.mrf.mxu0
        %v3211 = vadd.f32 %v3182, %v3210
        %3212 = vmatmul.bf16.gmra.mxu0 %v1243
        %v3213 = vpop.f32.mrf.mxu0
        %v3214 = vadd.f32 %v3185, %v3213
        %v3215 = vpop.f32.mrf.mxu0
        %v3216 = vadd.f32 %v3187, %v3215
        %3217 = vmatmul.bf16.gmra.mxu0 %v1275
        %v3218 = vpop.f32.mrf.mxu0
        %v3219 = vadd.f32 %v3190, %v3218
        %v3220 = vpop.f32.mrf.mxu0
        %v3221 = vadd.f32 %v3192, %v3220
        %3222 = vmatmul.bf16.gmra.mxu0 %v1307
        %v3223 = vpop.f32.mrf.mxu0
        %v3224 = vadd.f32 %v3195, %v3223
        %v3225 = vpop.f32.mrf.mxu0
        %v3226 = vadd.f32 %v3197, %v3225
        %3227 = vdwg.mxu0
        %3228 = vmatpush.bf16.msra.mxu0 %v2555
        %3229 = vmatpush.bf16.msra.mxu0 %v2554
        %3230 = vmatpush.bf16.msra.mxu0 %v2553
        %3231 = vmatpush.bf16.msra.mxu0 %v2552
        %3232 = vmatpush.bf16.msra.mxu0 %v2551
        %3233 = vmatpush.bf16.msra.mxu0 %v2550
        %3234 = vmatpush.bf16.msra.mxu0 %v2549
        %3235 = vmatpush.bf16.msra.mxu0 %v2548
        %3236 = vmatmul.bf16.gmra.mxu0 %v1212
        %v3237 = vpop.f32.mrf.mxu0
        %v3238 = vadd.f32 %v3209, %v3237
        %v3239 = vpop.f32.mrf.mxu0
        %v3240 = vadd.f32 %v3211, %v3239
        %3241 = vmatmul.bf16.gmra.mxu0 %v1244
        %v3242 = vpop.f32.mrf.mxu0
        %v3243 = vadd.f32 %v3214, %v3242
        %v3244 = vpop.f32.mrf.mxu0
        %v3245 = vadd.f32 %v3216, %v3244
        %3246 = vmatmul.bf16.gmra.mxu0 %v1276
        %v3247 = vpop.f32.mrf.mxu0
        %v3248 = vadd.f32 %v3219, %v3247
        %v3249 = vpop.f32.mrf.mxu0
        %v3250 = vadd.f32 %v3221, %v3249
        %3251 = vmatmul.bf16.gmra.mxu0 %v1308
        %v3252 = vpop.f32.mrf.mxu0
        %v3253 = vadd.f32 %v3224, %v3252
        %v3254 = vpop.f32.mrf.mxu0
        %v3255 = vadd.f32 %v3226, %v3254
        %3256 = vdwg.mxu0
        %3257 = vmatpush.bf16.msra.mxu0 %v2563
        %3258 = vmatpush.bf16.msra.mxu0 %v2562
        %3259 = vmatpush.bf16.msra.mxu0 %v2561
        %3260 = vmatpush.bf16.msra.mxu0 %v2560
        %3261 = vmatpush.bf16.msra.mxu0 %v2559
        %3262 = vmatpush.bf16.msra.mxu0 %v2558
        %3263 = vmatpush.bf16.msra.mxu0 %v2557
        %3264 = vmatpush.bf16.msra.mxu0 %v2556
        %3265 = vmatmul.bf16.gmra.mxu0 %v1213
        %v3266 = vpop.f32.mrf.mxu0
        %v3267 = vadd.f32 %v3238, %v3266
        %v3268 = vpop.f32.mrf.mxu0
        %v3269 = vadd.f32 %v3240, %v3268
        %3270 = vmatmul.bf16.gmra.mxu0 %v1245
        %v3271 = vpop.f32.mrf.mxu0
        %v3272 = vadd.f32 %v3243, %v3271
        %v3273 = vpop.f32.mrf.mxu0
        %v3274 = vadd.f32 %v3245, %v3273
        %3275 = vmatmul.bf16.gmra.mxu0 %v1277
        %v3276 = vpop.f32.mrf.mxu0
        %v3277 = vadd.f32 %v3248, %v3276
        %v3278 = vpop.f32.mrf.mxu0
        %v3279 = vadd.f32 %v3250, %v3278
        %3280 = vmatmul.bf16.gmra.mxu0 %v1309
        %v3281 = vpop.f32.mrf.mxu0
        %v3282 = vadd.f32 %v3253, %v3281
        %v3283 = vpop.f32.mrf.mxu0
        %v3284 = vadd.f32 %v3255, %v3283
        %3285 = vdwg.mxu0
        %3286 = vmatpush.bf16.msra.mxu0 %v2571
        %3287 = vmatpush.bf16.msra.mxu0 %v2570
        %3288 = vmatpush.bf16.msra.mxu0 %v2569
        %3289 = vmatpush.bf16.msra.mxu0 %v2568
        %3290 = vmatpush.bf16.msra.mxu0 %v2567
        %3291 = vmatpush.bf16.msra.mxu0 %v2566
        %3292 = vmatpush.bf16.msra.mxu0 %v2565
        %3293 = vmatpush.bf16.msra.mxu0 %v2564
        %3294 = vmatmul.bf16.gmra.mxu0 %v1214
        %v3295 = vpop.f32.mrf.mxu0
        %v3296 = vadd.f32 %v3267, %v3295
        %v3297 = vpop.f32.mrf.mxu0
        %v3298 = vadd.f32 %v3269, %v3297
        %3299 = vmatmul.bf16.gmra.mxu0 %v1246
        %v3300 = vpop.f32.mrf.mxu0
        %v3301 = vadd.f32 %v3272, %v3300
        %v3302 = vpop.f32.mrf.mxu0
        %v3303 = vadd.f32 %v3274, %v3302
        %3304 = vmatmul.bf16.gmra.mxu0 %v1278
        %v3305 = vpop.f32.mrf.mxu0
        %v3306 = vadd.f32 %v3277, %v3305
        %v3307 = vpop.f32.mrf.mxu0
        %v3308 = vadd.f32 %v3279, %v3307
        %3309 = vmatmul.bf16.gmra.mxu0 %v1310
        %v3310 = vpop.f32.mrf.mxu0
        %v3311 = vadd.f32 %v3282, %v3310
        %v3312 = vpop.f32.mrf.mxu0
        %v3313 = vadd.f32 %v3284, %v3312
        %3314 = vdwg.mxu0
        %3315 = vmatpush.bf16.msra.mxu0 %v2579
        %3316 = vmatpush.bf16.msra.mxu0 %v2578
        %3317 = vmatpush.bf16.msra.mxu0 %v2577
        %3318 = vmatpush.bf16.msra.mxu0 %v2576
        %3319 = vmatpush.bf16.msra.mxu0 %v2575
        %3320 = vmatpush.bf16.msra.mxu0 %v2574
        %3321 = vmatpush.bf16.msra.mxu0 %v2573
        %3322 = vmatpush.bf16.msra.mxu0 %v2572
        %3323 = vmatmul.bf16.gmra.mxu0 %v1215
        %v3324 = vpop.f32.mrf.mxu0
        %v3325 = vadd.f32 %v3296, %v3324
        %v3326 = vpop.f32.mrf.mxu0
        %v3327 = vadd.f32 %v3298, %v3326
        %3328 = vmatmul.bf16.gmra.mxu0 %v1247
        %v3329 = vpop.f32.mrf.mxu0
        %v3330 = vadd.f32 %v3301, %v3329
        %v3331 = vpop.f32.mrf.mxu0
        %v3332 = vadd.f32 %v3303, %v3331
        %3333 = vmatmul.bf16.gmra.mxu0 %v1279
        %v3334 = vpop.f32.mrf.mxu0
        %v3335 = vadd.f32 %v3306, %v3334
        %v3336 = vpop.f32.mrf.mxu0
        %v3337 = vadd.f32 %v3308, %v3336
        %3338 = vmatmul.bf16.gmra.mxu0 %v1311
        %v3339 = vpop.f32.mrf.mxu0
        %v3340 = vadd.f32 %v3311, %v3339
        %v3341 = vpop.f32.mrf.mxu0
        %v3342 = vadd.f32 %v3313, %v3341
        %3343 = vdwg.mxu0
        %3344 = vmatpush.bf16.msra.mxu0 %v2587
        %3345 = vmatpush.bf16.msra.mxu0 %v2586
        %3346 = vmatpush.bf16.msra.mxu0 %v2585
        %3347 = vmatpush.bf16.msra.mxu0 %v2584
        %3348 = vmatpush.bf16.msra.mxu0 %v2583
        %3349 = vmatpush.bf16.msra.mxu0 %v2582
        %3350 = vmatpush.bf16.msra.mxu0 %v2581
        %3351 = vmatpush.bf16.msra.mxu0 %v2580
        %3352 = vmatmul.bf16.gmra.mxu0 %v1216
        %v3353 = vpop.f32.mrf.mxu0
        %v3354 = vadd.f32 %v3325, %v3353
        %v3355 = vpop.f32.mrf.mxu0
        %v3356 = vadd.f32 %v3327, %v3355
        %3357 = vmatmul.bf16.gmra.mxu0 %v1248
        %v3358 = vpop.f32.mrf.mxu0
        %v3359 = vadd.f32 %v3330, %v3358
        %v3360 = vpop.f32.mrf.mxu0
        %v3361 = vadd.f32 %v3332, %v3360
        %3362 = vmatmul.bf16.gmra.mxu0 %v1280
        %v3363 = vpop.f32.mrf.mxu0
        %v3364 = vadd.f32 %v3335, %v3363
        %v3365 = vpop.f32.mrf.mxu0
        %v3366 = vadd.f32 %v3337, %v3365
        %3367 = vmatmul.bf16.gmra.mxu0 %v1312
        %v3368 = vpop.f32.mrf.mxu0
        %v3369 = vadd.f32 %v3340, %v3368
        %v3370 = vpop.f32.mrf.mxu0
        %v3371 = vadd.f32 %v3342, %v3370
        %3372 = vdwg.mxu0
        %3373 = vmatpush.bf16.msra.mxu0 %v2595
        %3374 = vmatpush.bf16.msra.mxu0 %v2594
        %3375 = vmatpush.bf16.msra.mxu0 %v2593
        %3376 = vmatpush.bf16.msra.mxu0 %v2592
        %3377 = vmatpush.bf16.msra.mxu0 %v2591
        %3378 = vmatpush.bf16.msra.mxu0 %v2590
        %3379 = vmatpush.bf16.msra.mxu0 %v2589
        %3380 = vmatpush.bf16.msra.mxu0 %v2588
        %3381 = vmatmul.bf16.gmra.mxu0 %v1217
        %v3382 = vpop.f32.mrf.mxu0
        %v3383 = vadd.f32 %v3354, %v3382
        %v3384 = vpop.f32.mrf.mxu0
        %v3385 = vadd.f32 %v3356, %v3384
        %3386 = vmatmul.bf16.gmra.mxu0 %v1249
        %v3387 = vpop.f32.mrf.mxu0
        %v3388 = vadd.f32 %v3359, %v3387
        %v3389 = vpop.f32.mrf.mxu0
        %v3390 = vadd.f32 %v3361, %v3389
        %3391 = vmatmul.bf16.gmra.mxu0 %v1281
        %v3392 = vpop.f32.mrf.mxu0
        %v3393 = vadd.f32 %v3364, %v3392
        %v3394 = vpop.f32.mrf.mxu0
        %v3395 = vadd.f32 %v3366, %v3394
        %3396 = vmatmul.bf16.gmra.mxu0 %v1313
        %v3397 = vpop.f32.mrf.mxu0
        %v3398 = vadd.f32 %v3369, %v3397
        %v3399 = vpop.f32.mrf.mxu0
        %v3400 = vadd.f32 %v3371, %v3399
        %3401 = vdwg.mxu0
        %3402 = vmatpush.bf16.msra.mxu0 %v2603
        %3403 = vmatpush.bf16.msra.mxu0 %v2602
        %3404 = vmatpush.bf16.msra.mxu0 %v2601
        %3405 = vmatpush.bf16.msra.mxu0 %v2600
        %3406 = vmatpush.bf16.msra.mxu0 %v2599
        %3407 = vmatpush.bf16.msra.mxu0 %v2598
        %3408 = vmatpush.bf16.msra.mxu0 %v2597
        %3409 = vmatpush.bf16.msra.mxu0 %v2596
        %3410 = vmatmul.bf16.gmra.mxu0 %v1218
        %v3411 = vpop.f32.mrf.mxu0
        %v3412 = vadd.f32 %v3383, %v3411
        %v3413 = vpop.f32.mrf.mxu0
        %v3414 = vadd.f32 %v3385, %v3413
        %3415 = vmatmul.bf16.gmra.mxu0 %v1250
        %v3416 = vpop.f32.mrf.mxu0
        %v3417 = vadd.f32 %v3388, %v3416
        %v3418 = vpop.f32.mrf.mxu0
        %v3419 = vadd.f32 %v3390, %v3418
        %3420 = vmatmul.bf16.gmra.mxu0 %v1282
        %v3421 = vpop.f32.mrf.mxu0
        %v3422 = vadd.f32 %v3393, %v3421
        %v3423 = vpop.f32.mrf.mxu0
        %v3424 = vadd.f32 %v3395, %v3423
        %3425 = vmatmul.bf16.gmra.mxu0 %v1314
        %v3426 = vpop.f32.mrf.mxu0
        %v3427 = vadd.f32 %v3398, %v3426
        %v3428 = vpop.f32.mrf.mxu0
        %v3429 = vadd.f32 %v3400, %v3428
        %3430 = vdwg.mxu0
        %3431 = vmatpush.bf16.msra.mxu0 %v2611
        %3432 = vmatpush.bf16.msra.mxu0 %v2610
        %3433 = vmatpush.bf16.msra.mxu0 %v2609
        %3434 = vmatpush.bf16.msra.mxu0 %v2608
        %3435 = vmatpush.bf16.msra.mxu0 %v2607
        %3436 = vmatpush.bf16.msra.mxu0 %v2606
        %3437 = vmatpush.bf16.msra.mxu0 %v2605
        %3438 = vmatpush.bf16.msra.mxu0 %v2604
        %3439 = vmatmul.bf16.gmra.mxu0 %v1219
        %v3440 = vpop.f32.mrf.mxu0
        %v3441 = vadd.f32 %v3412, %v3440
        %v3442 = vpop.f32.mrf.mxu0
        %v3443 = vadd.f32 %v3414, %v3442
        %3444 = vmatmul.bf16.gmra.mxu0 %v1251
        %v3445 = vpop.f32.mrf.mxu0
        %v3446 = vadd.f32 %v3417, %v3445
        %v3447 = vpop.f32.mrf.mxu0
        %v3448 = vadd.f32 %v3419, %v3447
        %3449 = vmatmul.bf16.gmra.mxu0 %v1283
        %v3450 = vpop.f32.mrf.mxu0
        %v3451 = vadd.f32 %v3422, %v3450
        %v3452 = vpop.f32.mrf.mxu0
        %v3453 = vadd.f32 %v3424, %v3452
        %3454 = vmatmul.bf16.gmra.mxu0 %v1315
        %v3455 = vpop.f32.mrf.mxu0
        %v3456 = vadd.f32 %v3427, %v3455
        %v3457 = vpop.f32.mrf.mxu0
        %v3458 = vadd.f32 %v3429, %v3457
        %3459 = vdwg.mxu0
        %3460 = vmatpush.bf16.msra.mxu0 %v2619
        %3461 = vmatpush.bf16.msra.mxu0 %v2618
        %3462 = vmatpush.bf16.msra.mxu0 %v2617
        %3463 = vmatpush.bf16.msra.mxu0 %v2616
        %3464 = vmatpush.bf16.msra.mxu0 %v2615
        %3465 = vmatpush.bf16.msra.mxu0 %v2614
        %3466 = vmatpush.bf16.msra.mxu0 %v2613
        %3467 = vmatpush.bf16.msra.mxu0 %v2612
        %3468 = vmatmul.bf16.gmra.mxu0 %v1220
        %v3469 = vpop.f32.mrf.mxu0
        %v3470 = vadd.f32 %v3441, %v3469
        %v3471 = vpop.f32.mrf.mxu0
        %v3472 = vadd.f32 %v3443, %v3471
        %3473 = vmatmul.bf16.gmra.mxu0 %v1252
        %v3474 = vpop.f32.mrf.mxu0
        %v3475 = vadd.f32 %v3446, %v3474
        %v3476 = vpop.f32.mrf.mxu0
        %v3477 = vadd.f32 %v3448, %v3476
        %3478 = vmatmul.bf16.gmra.mxu0 %v1284
        %v3479 = vpop.f32.mrf.mxu0
        %v3480 = vadd.f32 %v3451, %v3479
        %v3481 = vpop.f32.mrf.mxu0
        %v3482 = vadd.f32 %v3453, %v3481
        %3483 = vmatmul.bf16.gmra.mxu0 %v1316
        %v3484 = vpop.f32.mrf.mxu0
        %v3485 = vadd.f32 %v3456, %v3484
        %v3486 = vpop.f32.mrf.mxu0
        %v3487 = vadd.f32 %v3458, %v3486
        %3488 = vdwg.mxu0
        %3489 = vmatpush.bf16.msra.mxu0 %v2627
        %3490 = vmatpush.bf16.msra.mxu0 %v2626
        %3491 = vmatpush.bf16.msra.mxu0 %v2625
        %3492 = vmatpush.bf16.msra.mxu0 %v2624
        %3493 = vmatpush.bf16.msra.mxu0 %v2623
        %3494 = vmatpush.bf16.msra.mxu0 %v2622
        %3495 = vmatpush.bf16.msra.mxu0 %v2621
        %3496 = vmatpush.bf16.msra.mxu0 %v2620
        %3497 = vmatmul.bf16.gmra.mxu0 %v1221
        %v3498 = vpop.f32.mrf.mxu0
        %v3499 = vadd.f32 %v3470, %v3498
        %v3500 = vpop.f32.mrf.mxu0
        %v3501 = vadd.f32 %v3472, %v3500
        %3502 = vmatmul.bf16.gmra.mxu0 %v1253
        %v3503 = vpop.f32.mrf.mxu0
        %v3504 = vadd.f32 %v3475, %v3503
        %v3505 = vpop.f32.mrf.mxu0
        %v3506 = vadd.f32 %v3477, %v3505
        %3507 = vmatmul.bf16.gmra.mxu0 %v1285
        %v3508 = vpop.f32.mrf.mxu0
        %v3509 = vadd.f32 %v3480, %v3508
        %v3510 = vpop.f32.mrf.mxu0
        %v3511 = vadd.f32 %v3482, %v3510
        %3512 = vmatmul.bf16.gmra.mxu0 %v1317
        %v3513 = vpop.f32.mrf.mxu0
        %v3514 = vadd.f32 %v3485, %v3513
        %v3515 = vpop.f32.mrf.mxu0
        %v3516 = vadd.f32 %v3487, %v3515
        %3517 = vdwg.mxu0
        %3518 = vmatpush.bf16.msra.mxu0 %v2635
        %3519 = vmatpush.bf16.msra.mxu0 %v2634
        %3520 = vmatpush.bf16.msra.mxu0 %v2633
        %3521 = vmatpush.bf16.msra.mxu0 %v2632
        %3522 = vmatpush.bf16.msra.mxu0 %v2631
        %3523 = vmatpush.bf16.msra.mxu0 %v2630
        %3524 = vmatpush.bf16.msra.mxu0 %v2629
        %3525 = vmatpush.bf16.msra.mxu0 %v2628
        %3526 = vmatmul.bf16.gmra.mxu0 %v1222
        %v3527 = vpop.f32.mrf.mxu0
        %v3528 = vadd.f32 %v3499, %v3527
        %v3529 = vpop.f32.mrf.mxu0
        %v3530 = vadd.f32 %v3501, %v3529
        %3531 = vmatmul.bf16.gmra.mxu0 %v1254
        %v3532 = vpop.f32.mrf.mxu0
        %v3533 = vadd.f32 %v3504, %v3532
        %v3534 = vpop.f32.mrf.mxu0
        %v3535 = vadd.f32 %v3506, %v3534
        %3536 = vmatmul.bf16.gmra.mxu0 %v1286
        %v3537 = vpop.f32.mrf.mxu0
        %v3538 = vadd.f32 %v3509, %v3537
        %v3539 = vpop.f32.mrf.mxu0
        %v3540 = vadd.f32 %v3511, %v3539
        %3541 = vmatmul.bf16.gmra.mxu0 %v1318
        %v3542 = vpop.f32.mrf.mxu0
        %v3543 = vadd.f32 %v3514, %v3542
        %v3544 = vpop.f32.mrf.mxu0
        %v3545 = vadd.f32 %v3516, %v3544
        %3546 = vdwg.mxu0
        %3547 = vmatpush.bf16.msra.mxu0 %v2643
        %3548 = vmatpush.bf16.msra.mxu0 %v2642
        %3549 = vmatpush.bf16.msra.mxu0 %v2641
        %3550 = vmatpush.bf16.msra.mxu0 %v2640
        %3551 = vmatpush.bf16.msra.mxu0 %v2639
        %3552 = vmatpush.bf16.msra.mxu0 %v2638
        %3553 = vmatpush.bf16.msra.mxu0 %v2637
        %3554 = vmatpush.bf16.msra.mxu0 %v2636
        %3555 = vmatmul.bf16.gmra.mxu0 %v1223
        %v3556 = vpop.f32.mrf.mxu0
        %v3557 = vadd.f32 %v3528, %v3556
        %v3558 = vpop.f32.mrf.mxu0
        %v3559 = vadd.f32 %v3530, %v3558
        %3560 = vmatmul.bf16.gmra.mxu0 %v1255
        %v3561 = vpop.f32.mrf.mxu0
        %v3562 = vadd.f32 %v3533, %v3561
        %v3563 = vpop.f32.mrf.mxu0
        %v3564 = vadd.f32 %v3535, %v3563
        %3565 = vmatmul.bf16.gmra.mxu0 %v1287
        %v3566 = vpop.f32.mrf.mxu0
        %v3567 = vadd.f32 %v3538, %v3566
        %v3568 = vpop.f32.mrf.mxu0
        %v3569 = vadd.f32 %v3540, %v3568
        %3570 = vmatmul.bf16.gmra.mxu0 %v1319
        %v3571 = vpop.f32.mrf.mxu0
        %v3572 = vadd.f32 %v3543, %v3571
        %v3573 = vpop.f32.mrf.mxu0
        %v3574 = vadd.f32 %v3545, %v3573
        %3575 = vdwg.mxu0
        %3576 = vmatpush.bf16.msra.mxu0 %v2651
        %3577 = vmatpush.bf16.msra.mxu0 %v2650
        %3578 = vmatpush.bf16.msra.mxu0 %v2649
        %3579 = vmatpush.bf16.msra.mxu0 %v2648
        %3580 = vmatpush.bf16.msra.mxu0 %v2647
        %3581 = vmatpush.bf16.msra.mxu0 %v2646
        %3582 = vmatpush.bf16.msra.mxu0 %v2645
        %3583 = vmatpush.bf16.msra.mxu0 %v2644
        %3584 = vmatmul.bf16.gmra.mxu0 %v1224
        %v3585 = vpop.f32.mrf.mxu0
        %v3586 = vadd.f32 %v3557, %v3585
        %v3587 = vpop.f32.mrf.mxu0
        %v3588 = vadd.f32 %v3559, %v3587
        %3589 = vmatmul.bf16.gmra.mxu0 %v1256
        %v3590 = vpop.f32.mrf.mxu0
        %v3591 = vadd.f32 %v3562, %v3590
        %v3592 = vpop.f32.mrf.mxu0
        %v3593 = vadd.f32 %v3564, %v3592
        %3594 = vmatmul.bf16.gmra.mxu0 %v1288
        %v3595 = vpop.f32.mrf.mxu0
        %v3596 = vadd.f32 %v3567, %v3595
        %v3597 = vpop.f32.mrf.mxu0
        %v3598 = vadd.f32 %v3569, %v3597
        %3599 = vmatmul.bf16.gmra.mxu0 %v1320
        %v3600 = vpop.f32.mrf.mxu0
        %v3601 = vadd.f32 %v3572, %v3600
        %v3602 = vpop.f32.mrf.mxu0
        %v3603 = vadd.f32 %v3574, %v3602
        %3604 = vdwg.mxu0
        %3605 = vmatpush.bf16.msra.mxu0 %v2659
        %3606 = vmatpush.bf16.msra.mxu0 %v2658
        %3607 = vmatpush.bf16.msra.mxu0 %v2657
        %3608 = vmatpush.bf16.msra.mxu0 %v2656
        %3609 = vmatpush.bf16.msra.mxu0 %v2655
        %3610 = vmatpush.bf16.msra.mxu0 %v2654
        %3611 = vmatpush.bf16.msra.mxu0 %v2653
        %3612 = vmatpush.bf16.msra.mxu0 %v2652
        %3613 = vmatmul.bf16.gmra.mxu0 %v1225
        %v3614 = vpop.f32.mrf.mxu0
        %v3615 = vadd.f32 %v3586, %v3614
        %v3616 = vpop.f32.mrf.mxu0
        %v3617 = vadd.f32 %v3588, %v3616
        %3618 = vmatmul.bf16.gmra.mxu0 %v1257
        %v3619 = vpop.f32.mrf.mxu0
        %v3620 = vadd.f32 %v3591, %v3619
        %v3621 = vpop.f32.mrf.mxu0
        %v3622 = vadd.f32 %v3593, %v3621
        %3623 = vmatmul.bf16.gmra.mxu0 %v1289
        %v3624 = vpop.f32.mrf.mxu0
        %v3625 = vadd.f32 %v3596, %v3624
        %v3626 = vpop.f32.mrf.mxu0
        %v3627 = vadd.f32 %v3598, %v3626
        %3628 = vmatmul.bf16.gmra.mxu0 %v1321
        %v3629 = vpop.f32.mrf.mxu0
        %v3630 = vadd.f32 %v3601, %v3629
        %v3631 = vpop.f32.mrf.mxu0
        %v3632 = vadd.f32 %v3603, %v3631
        %3633 = vdwg.mxu0
        %3634 = vmatpush.bf16.msra.mxu0 %v2667
        %3635 = vmatpush.bf16.msra.mxu0 %v2666
        %3636 = vmatpush.bf16.msra.mxu0 %v2665
        %3637 = vmatpush.bf16.msra.mxu0 %v2664
        %3638 = vmatpush.bf16.msra.mxu0 %v2663
        %3639 = vmatpush.bf16.msra.mxu0 %v2662
        %3640 = vmatpush.bf16.msra.mxu0 %v2661
        %3641 = vmatpush.bf16.msra.mxu0 %v2660
        %3642 = vmatmul.bf16.gmra.mxu0 %v1226
        %v3643 = vpop.f32.mrf.mxu0
        %v3644 = vadd.f32 %v3615, %v3643
        %v3645 = vpop.f32.mrf.mxu0
        %v3646 = vadd.f32 %v3617, %v3645
        %3647 = vmatmul.bf16.gmra.mxu0 %v1258
        %v3648 = vpop.f32.mrf.mxu0
        %v3649 = vadd.f32 %v3620, %v3648
        %v3650 = vpop.f32.mrf.mxu0
        %v3651 = vadd.f32 %v3622, %v3650
        %3652 = vmatmul.bf16.gmra.mxu0 %v1290
        %v3653 = vpop.f32.mrf.mxu0
        %v3654 = vadd.f32 %v3625, %v3653
        %v3655 = vpop.f32.mrf.mxu0
        %v3656 = vadd.f32 %v3627, %v3655
        %3657 = vmatmul.bf16.gmra.mxu0 %v1322
        %v3658 = vpop.f32.mrf.mxu0
        %v3659 = vadd.f32 %v3630, %v3658
        %v3660 = vpop.f32.mrf.mxu0
        %v3661 = vadd.f32 %v3632, %v3660
        %3662 = vdwg.mxu0
        %3663 = vmatpush.bf16.msra.mxu0 %v2675
        %3664 = vmatpush.bf16.msra.mxu0 %v2674
        %3665 = vmatpush.bf16.msra.mxu0 %v2673
        %3666 = vmatpush.bf16.msra.mxu0 %v2672
        %3667 = vmatpush.bf16.msra.mxu0 %v2671
        %3668 = vmatpush.bf16.msra.mxu0 %v2670
        %3669 = vmatpush.bf16.msra.mxu0 %v2669
        %3670 = vmatpush.bf16.msra.mxu0 %v2668
        %3671 = vmatmul.bf16.gmra.mxu0 %v1227
        %v3672 = vpop.f32.mrf.mxu0
        %v3673 = vadd.f32 %v3644, %v3672
        %v3674 = vpop.f32.mrf.mxu0
        %v3675 = vadd.f32 %v3646, %v3674
        %3676 = vmatmul.bf16.gmra.mxu0 %v1259
        %v3677 = vpop.f32.mrf.mxu0
        %v3678 = vadd.f32 %v3649, %v3677
        %v3679 = vpop.f32.mrf.mxu0
        %v3680 = vadd.f32 %v3651, %v3679
        %3681 = vmatmul.bf16.gmra.mxu0 %v1291
        %v3682 = vpop.f32.mrf.mxu0
        %v3683 = vadd.f32 %v3654, %v3682
        %v3684 = vpop.f32.mrf.mxu0
        %v3685 = vadd.f32 %v3656, %v3684
        %3686 = vmatmul.bf16.gmra.mxu0 %v1323
        %v3687 = vpop.f32.mrf.mxu0
        %v3688 = vadd.f32 %v3659, %v3687
        %v3689 = vpop.f32.mrf.mxu0
        %v3690 = vadd.f32 %v3661, %v3689
        %3691 = vdwg.mxu0
        %3692 = vmatpush.bf16.msra.mxu0 %v2683
        %3693 = vmatpush.bf16.msra.mxu0 %v2682
        %3694 = vmatpush.bf16.msra.mxu0 %v2681
        %3695 = vmatpush.bf16.msra.mxu0 %v2680
        %3696 = vmatpush.bf16.msra.mxu0 %v2679
        %3697 = vmatpush.bf16.msra.mxu0 %v2678
        %3698 = vmatpush.bf16.msra.mxu0 %v2677
        %3699 = vmatpush.bf16.msra.mxu0 %v2676
        %3700 = vmatmul.bf16.gmra.mxu0 %v1228
        %v3701 = vpop.f32.mrf.mxu0
        %v3702 = vadd.f32 %v3673, %v3701
        %v3703 = vpop.f32.mrf.mxu0
        %v3704 = vadd.f32 %v3675, %v3703
        %3705 = vmatmul.bf16.gmra.mxu0 %v1260
        %v3706 = vpop.f32.mrf.mxu0
        %v3707 = vadd.f32 %v3678, %v3706
        %v3708 = vpop.f32.mrf.mxu0
        %v3709 = vadd.f32 %v3680, %v3708
        %3710 = vmatmul.bf16.gmra.mxu0 %v1292
        %v3711 = vpop.f32.mrf.mxu0
        %v3712 = vadd.f32 %v3683, %v3711
        %v3713 = vpop.f32.mrf.mxu0
        %v3714 = vadd.f32 %v3685, %v3713
        %3715 = vmatmul.bf16.gmra.mxu0 %v1324
        %v3716 = vpop.f32.mrf.mxu0
        %v3717 = vadd.f32 %v3688, %v3716
        %v3718 = vpop.f32.mrf.mxu0
        %v3719 = vadd.f32 %v3690, %v3718
        %3720 = vdwg.mxu0
        %3721 = vmatpush.bf16.msra.mxu0 %v2691
        %3722 = vmatpush.bf16.msra.mxu0 %v2690
        %3723 = vmatpush.bf16.msra.mxu0 %v2689
        %3724 = vmatpush.bf16.msra.mxu0 %v2688
        %3725 = vmatpush.bf16.msra.mxu0 %v2687
        %3726 = vmatpush.bf16.msra.mxu0 %v2686
        %3727 = vmatpush.bf16.msra.mxu0 %v2685
        %3728 = vmatpush.bf16.msra.mxu0 %v2684
        %3729 = vmatmul.bf16.gmra.mxu0 %v1229
        %v3730 = vpop.f32.mrf.mxu0
        %v3731 = vadd.f32 %v3702, %v3730
        %v3732 = vpop.f32.mrf.mxu0
        %v3733 = vadd.f32 %v3704, %v3732
        %3734 = vmatmul.bf16.gmra.mxu0 %v1261
        %v3735 = vpop.f32.mrf.mxu0
        %v3736 = vadd.f32 %v3707, %v3735
        %v3737 = vpop.f32.mrf.mxu0
        %v3738 = vadd.f32 %v3709, %v3737
        %3739 = vmatmul.bf16.gmra.mxu0 %v1293
        %v3740 = vpop.f32.mrf.mxu0
        %v3741 = vadd.f32 %v3712, %v3740
        %v3742 = vpop.f32.mrf.mxu0
        %v3743 = vadd.f32 %v3714, %v3742
        %3744 = vmatmul.bf16.gmra.mxu0 %v1325
        %v3745 = vpop.f32.mrf.mxu0
        %v3746 = vadd.f32 %v3717, %v3745
        %v3747 = vpop.f32.mrf.mxu0
        %v3748 = vadd.f32 %v3719, %v3747
        %3749 = vdwg.mxu0
        %3750 = vmatpush.bf16.msra.mxu0 %v2699
        %3751 = vmatpush.bf16.msra.mxu0 %v2698
        %3752 = vmatpush.bf16.msra.mxu0 %v2697
        %3753 = vmatpush.bf16.msra.mxu0 %v2696
        %3754 = vmatpush.bf16.msra.mxu0 %v2695
        %3755 = vmatpush.bf16.msra.mxu0 %v2694
        %3756 = vmatpush.bf16.msra.mxu0 %v2693
        %3757 = vmatpush.bf16.msra.mxu0 %v2692
        %3758 = vmatmul.bf16.gmra.mxu0 %v1230
        %v3759 = vpop.f32.mrf.mxu0
        %v3760 = vadd.f32 %v3731, %v3759
        %v3761 = vpop.f32.mrf.mxu0
        %v3762 = vadd.f32 %v3733, %v3761
        %3763 = vmatmul.bf16.gmra.mxu0 %v1262
        %v3764 = vpop.f32.mrf.mxu0
        %v3765 = vadd.f32 %v3736, %v3764
        %v3766 = vpop.f32.mrf.mxu0
        %v3767 = vadd.f32 %v3738, %v3766
        %3768 = vmatmul.bf16.gmra.mxu0 %v1294
        %v3769 = vpop.f32.mrf.mxu0
        %v3770 = vadd.f32 %v3741, %v3769
        %v3771 = vpop.f32.mrf.mxu0
        %v3772 = vadd.f32 %v3743, %v3771
        %3773 = vmatmul.bf16.gmra.mxu0 %v1326
        %v3774 = vpop.f32.mrf.mxu0
        %v3775 = vadd.f32 %v3746, %v3774
        %v3776 = vpop.f32.mrf.mxu0
        %v3777 = vadd.f32 %v3748, %v3776
        %3778 = vdwg.mxu0
        %3779 = vmatpush.bf16.msra.mxu0 %v2707
        %3780 = vmatpush.bf16.msra.mxu0 %v2706
        %3781 = vmatpush.bf16.msra.mxu0 %v2705
        %3782 = vmatpush.bf16.msra.mxu0 %v2704
        %3783 = vmatpush.bf16.msra.mxu0 %v2703
        %3784 = vmatpush.bf16.msra.mxu0 %v2702
        %3785 = vmatpush.bf16.msra.mxu0 %v2701
        %3786 = vmatpush.bf16.msra.mxu0 %v2700
        %3787 = vmatmul.bf16.gmra.mxu0 %v1231
        %v3788 = vpop.f32.mrf.mxu0
        %v3789 = vadd.f32 %v3760, %v3788
        %v3790 = vpop.f32.mrf.mxu0
        %v3791 = vadd.f32 %v3762, %v3790
        %3792 = vmatmul.bf16.gmra.mxu0 %v1263
        %v3793 = vpop.f32.mrf.mxu0
        %v3794 = vadd.f32 %v3765, %v3793
        %v3795 = vpop.f32.mrf.mxu0
        %v3796 = vadd.f32 %v3767, %v3795
        %3797 = vmatmul.bf16.gmra.mxu0 %v1295
        %v3798 = vpop.f32.mrf.mxu0
        %v3799 = vadd.f32 %v3770, %v3798
        %v3800 = vpop.f32.mrf.mxu0
        %v3801 = vadd.f32 %v3772, %v3800
        %3802 = vmatmul.bf16.gmra.mxu0 %v1327
        %v3803 = vpop.f32.mrf.mxu0
        %v3804 = vadd.f32 %v3775, %v3803
        %v3805 = vpop.f32.mrf.mxu0
        %v3806 = vadd.f32 %v3777, %v3805
        %3807 = vdwg.mxu0
        %3808 = vmatpush.bf16.msra.mxu0 %v2715
        %3809 = vmatpush.bf16.msra.mxu0 %v2714
        %3810 = vmatpush.bf16.msra.mxu0 %v2713
        %3811 = vmatpush.bf16.msra.mxu0 %v2712
        %3812 = vmatpush.bf16.msra.mxu0 %v2711
        %3813 = vmatpush.bf16.msra.mxu0 %v2710
        %3814 = vmatpush.bf16.msra.mxu0 %v2709
        %3815 = vmatpush.bf16.msra.mxu0 %v2708
        %3816 = vmatmul.bf16.gmra.mxu0 %v1232
        %v3817 = vpop.f32.mrf.mxu0
        %v3818 = vadd.f32 %v3789, %v3817
        %v3819 = vpop.f32.mrf.mxu0
        %v3820 = vadd.f32 %v3791, %v3819
        %3821 = vmatmul.bf16.gmra.mxu0 %v1264
        %v3822 = vpop.f32.mrf.mxu0
        %v3823 = vadd.f32 %v3794, %v3822
        %v3824 = vpop.f32.mrf.mxu0
        %v3825 = vadd.f32 %v3796, %v3824
        %3826 = vmatmul.bf16.gmra.mxu0 %v1296
        %v3827 = vpop.f32.mrf.mxu0
        %v3828 = vadd.f32 %v3799, %v3827
        %v3829 = vpop.f32.mrf.mxu0
        %v3830 = vadd.f32 %v3801, %v3829
        %3831 = vmatmul.bf16.gmra.mxu0 %v1328
        %v3832 = vpop.f32.mrf.mxu0
        %v3833 = vadd.f32 %v3804, %v3832
        %v3834 = vpop.f32.mrf.mxu0
        %v3835 = vadd.f32 %v3806, %v3834
        %3836 = vdwg.mxu0
        %3837 = vmatpush.bf16.msra.mxu0 %v2723
        %3838 = vmatpush.bf16.msra.mxu0 %v2722
        %3839 = vmatpush.bf16.msra.mxu0 %v2721
        %3840 = vmatpush.bf16.msra.mxu0 %v2720
        %3841 = vmatpush.bf16.msra.mxu0 %v2719
        %3842 = vmatpush.bf16.msra.mxu0 %v2718
        %3843 = vmatpush.bf16.msra.mxu0 %v2717
        %3844 = vmatpush.bf16.msra.mxu0 %v2716
        %3845 = vmatmul.bf16.gmra.mxu0 %v1233
        %v3846 = vpop.f32.mrf.mxu0
        %v3847 = vadd.f32 %v3818, %v3846
        %v3848 = vpop.f32.mrf.mxu0
        %v3849 = vadd.f32 %v3820, %v3848
        %3850 = vmatmul.bf16.gmra.mxu0 %v1265
        %v3851 = vpop.f32.mrf.mxu0
        %v3852 = vadd.f32 %v3823, %v3851
        %v3853 = vpop.f32.mrf.mxu0
        %v3854 = vadd.f32 %v3825, %v3853
        %3855 = vmatmul.bf16.gmra.mxu0 %v1297
        %v3856 = vpop.f32.mrf.mxu0
        %v3857 = vadd.f32 %v3828, %v3856
        %v3858 = vpop.f32.mrf.mxu0
        %v3859 = vadd.f32 %v3830, %v3858
        %3860 = vmatmul.bf16.gmra.mxu0 %v1329
        %v3861 = vpop.f32.mrf.mxu0
        %v3862 = vadd.f32 %v3833, %v3861
        %v3863 = vpop.f32.mrf.mxu0
        %v3864 = vadd.f32 %v3835, %v3863
        %3865 = vdwg.mxu0
        %3866 = vmatpush.bf16.msra.mxu0 %v2731
        %3867 = vmatpush.bf16.msra.mxu0 %v2730
        %3868 = vmatpush.bf16.msra.mxu0 %v2729
        %3869 = vmatpush.bf16.msra.mxu0 %v2728
        %3870 = vmatpush.bf16.msra.mxu0 %v2727
        %3871 = vmatpush.bf16.msra.mxu0 %v2726
        %3872 = vmatpush.bf16.msra.mxu0 %v2725
        %3873 = vmatpush.bf16.msra.mxu0 %v2724
        %3874 = vmatmul.bf16.gmra.mxu0 %v1234
        %v3875 = vpop.f32.mrf.mxu0
        %v3876 = vadd.f32 %v3847, %v3875
        %v3877 = vpop.f32.mrf.mxu0
        %v3878 = vadd.f32 %v3849, %v3877
        %3879 = vmatmul.bf16.gmra.mxu0 %v1266
        %v3880 = vpop.f32.mrf.mxu0
        %v3881 = vadd.f32 %v3852, %v3880
        %v3882 = vpop.f32.mrf.mxu0
        %v3883 = vadd.f32 %v3854, %v3882
        %3884 = vmatmul.bf16.gmra.mxu0 %v1298
        %v3885 = vpop.f32.mrf.mxu0
        %v3886 = vadd.f32 %v3857, %v3885
        %v3887 = vpop.f32.mrf.mxu0
        %v3888 = vadd.f32 %v3859, %v3887
        %3889 = vmatmul.bf16.gmra.mxu0 %v1330
        %v3890 = vpop.f32.mrf.mxu0
        %v3891 = vadd.f32 %v3862, %v3890
        %v3892 = vpop.f32.mrf.mxu0
        %v3893 = vadd.f32 %v3864, %v3892
        %3894 = vdwg.mxu0
        %3895 = vmatpush.bf16.msra.mxu0 %v2739
        %3896 = vmatpush.bf16.msra.mxu0 %v2738
        %3897 = vmatpush.bf16.msra.mxu0 %v2737
        %3898 = vmatpush.bf16.msra.mxu0 %v2736
        %3899 = vmatpush.bf16.msra.mxu0 %v2735
        %3900 = vmatpush.bf16.msra.mxu0 %v2734
        %3901 = vmatpush.bf16.msra.mxu0 %v2733
        %3902 = vmatpush.bf16.msra.mxu0 %v2732
        %3903 = vmatmul.bf16.gmra.mxu0 %v1235
        %v3904 = vpop.f32.mrf.mxu0
        %v3905 = vadd.f32 %v3876, %v3904
        %v3906 = vpop.f32.mrf.mxu0
        %v3907 = vadd.f32 %v3878, %v3906
        %3908 = vmatmul.bf16.gmra.mxu0 %v1267
        %v3909 = vpop.f32.mrf.mxu0
        %v3910 = vadd.f32 %v3881, %v3909
        %v3911 = vpop.f32.mrf.mxu0
        %v3912 = vadd.f32 %v3883, %v3911
        %3913 = vmatmul.bf16.gmra.mxu0 %v1299
        %v3914 = vpop.f32.mrf.mxu0
        %v3915 = vadd.f32 %v3886, %v3914
        %v3916 = vpop.f32.mrf.mxu0
        %v3917 = vadd.f32 %v3888, %v3916
        %3918 = vmatmul.bf16.gmra.mxu0 %v1331
        %v3919 = vpop.f32.mrf.mxu0
        %v3920 = vadd.f32 %v3891, %v3919
        %v3921 = vpop.f32.mrf.mxu0
        %v3922 = vadd.f32 %v3893, %v3921
        %3923 = vdwg.mxu0
        %v3924 = vmul.f32 %v3905, %v3905
        %v3925 = vmul.f32 %v3907, %v3907
        %v3926 = vmul.f32 %v3910, %v3910
        %v3927 = vmul.f32 %v3912, %v3912
        %v3928 = vmul.f32 %v3915, %v3915
        %v3929 = vmul.f32 %v3917, %v3917
        %v3930 = vmul.f32 %v3920, %v3920
        %v3931 = vmul.f32 %v3922, %v3922
        %v3932 = vadd.f32 %v3924, %v3928
        %v3933 = vadd.f32 %v3925, %v3929
        %v3934 = vadd.f32 %v3926, %v3930
        %v3935 = vadd.f32 %v3927, %v3931
        %v3936 = vmax.f32 %v3932, 1e-10
        %v3937 = vmax.f32 %v3933, 1e-10
        %v3938 = vmax.f32 %v3934, 1e-10
        %v3939 = vmax.f32 %v3935, 1e-10
        %v3940 = vlog2.pop %v3936
        %v3941 = vmul.f32 %v3940, 0.6931472
        %v3942 = vlog2.pop %v3937
        %v3943 = vmul.f32 %v3942, 0.6931472
        %v3944 = vlog2.pop %v3938
        %v3945 = vmul.f32 %v3944, 0.6931472
        %v3946 = vlog2.pop %v3939
        %v3947 = vmul.f32 %v3946, 0.6931472
        %v3948 = vmul.f32 %v3941, 0.5
        %v3949 = vmul.f32 %v3943, 0.5
        %v3950 = vmul.f32 %v3945, 0.5
        %v3951 = vmul.f32 %v3947, 0.5
        %3952 = vst [vmem:[%s179] sm:$0xff] %v3948
        %3953 = vst [vmem:[%s179 + $0x8] sm:$0xff] %v3949
        %3954 = vst [vmem:[%s179 + $0x10] sm:$0xff] %v3950
        %3955 = vst [vmem:[%s179 + $0x18] sm:$0xff] %v3951
        %s3956 = sand.u32 %s75, 1
        %s3957 = scalar_lea.sflag [#allocation4], %s3956
        %s3958 = sand.u32 %s75, 1
        %s3959 = smul.addr %s3958, 32
        %s3960 = scalar_lea.vmem [#allocation7], %s3959
        // Predicated region
        $region37: #{tpu_custom_call.1} parent=27 // pred_check
          %p3961 = pneg %p85
        $region38: #{tpu_custom_call.1} parent=27 // pred_check_branch
          %3963 = sbr.rel (%p3961) target = $region40
        $region39: #{tpu_custom_call.1} parent=27 // pred_region
          %3965 = vsyncadd %s3957, 0
          %s3966 = smul.addr %s20, 8
          %s3967 = scalar_lea.hbm %s2, %s3966
          %s3968 = sshll.u32 %s3960, 4
          %s3969 = int_to_ptr.vmem [resolvable:$true] %s3968
          %s3970 = sshll.u32 %s3967, 4
          %s3971 = int_to_ptr.hbm [resolvable:$true] %s3970
          %3976 = dma.vmem_to_hbm [thread:$0]  %s3969, 512, %s3971, %s3957, 128, 256, 8
        $region40: #{tpu_custom_call.1} parent=27 // pred_fallthru
          _
      $region28: #{tpu_custom_call.1} parent=5 // pred_fallthru
        _
      %p3977 = scmp.le.s32.totalorder 2, %s15
      // Predicated region
      $region41: #{tpu_custom_call.1} parent=5 // pred_check
        %p3978 = pneg %p3977
      $region42: #{tpu_custom_call.1} parent=5 // pred_check_branch
        %3980 = sbr.rel (%p3978) target = $region44
      $region43: #{tpu_custom_call.1} parent=5 // pred_region
        %s3981 = ssub.s32 %s15, 2
        // Predicated region
        $region45: #{tpu_custom_call.1} parent=43 // pred_check
          %p3982 = pneg %p91
        $region46: #{tpu_custom_call.1} parent=43 // pred_check_branch
          %3984 = sbr.rel (%p3982) target = $region48
        $region47: #{tpu_custom_call.1} parent=43 // pred_region
          %s3985 = sand.u32 %s76, 1
          %s3986 = scalar_lea.sflag [#allocation4], %s3985
          %s3987 = sand.u32 %s76, 1
          %s3988 = smul.addr %s3987, 32
          %s3989 = scalar_lea.vmem [#allocation7], %s3988
          %3991 = dma.done %s3986, 512
        $region48: #{tpu_custom_call.1} parent=43 // pred_fallthru
          _
      $region44: #{tpu_custom_call.1} parent=5 // pred_fallthru
        _
    $region6: #{tpu_custom_call.1} parent=1 // loop_footer
      %s19 = sadd.s32 1, %s15
    $region7: #{tpu_custom_call.1} parent=1 // loop_footer_branch
      %14 = sbr.rel target = $region3
    $region8: #{tpu_custom_call.1} parent=1 // loop_exit
      _
    %3992 = vsyncpa [#allocation3], 1
    %s3993 = scalar_lea.sflag [#allocation3], 1
    %3994 = vsyncpa %s3993, 1
    %3995 = vsyncpa [#allocation6], 1
    %s3996 = scalar_lea.sflag [#allocation6], 1
    %3997 = vsyncpa %s3996, 1
    %3998 = vsyncpa [#allocation4], 1
    %s3999 = scalar_lea.sflag [#allocation4], 1
    %4000 = vsyncpa %s3999, 1

</llo_original>
